<compile_context>
chip_gen: v6e
topology: v6e:2x2x1
jax: 0.10.0
libtpu: 0.0.40
codegen_flags: <defaults>
</compile_context>

<pallas_src>
import jax
import jax.numpy as jnp
from jax.experimental import pallas as pl
from jax.experimental.pallas import tpu as pltpu

EPS = 1e-5
D_IN = 4096
D_HID = 64


# --------------------------------------------------------------------------- #
# Kernel A: tiled, pipelined  h1 = relu(x @ W1 + b1)
# --------------------------------------------------------------------------- #
def _layer1_kernel(x_ref, w1_ref, b1_ref, h_ref):
    h = jnp.dot(x_ref[...], w1_ref[...], preferred_element_type=jnp.float32)
    h_ref[...] = jnp.maximum(h + b1_ref[...], 0.0)


# --------------------------------------------------------------------------- #
# Kernel B: BN1 -> layer_2 -> ReLU -> BN2 -> layer_out -> sigmoid (all in VMEM)
# --------------------------------------------------------------------------- #
def _head_kernel(h_ref, g1_ref, be1_ref, w2_ref, b2_ref, g2_ref, be2_ref,
                 wo_ref, bo_ref, o_ref):
    h = h_ref[...]                                               # (N, 64) f32

    # ---- batchnorm1 (training-mode batch stats) --------------------------
    mean1 = jnp.mean(h, axis=0, keepdims=True)
    var1 = jnp.mean((h - mean1) * (h - mean1), axis=0, keepdims=True)
    h = (h - mean1) * jax.lax.rsqrt(var1 + EPS)
    h = h * g1_ref[...] + be1_ref[...]

    # ---- layer_2 + ReLU ---------------------------------------------------
    h = jnp.dot(h, w2_ref[...], preferred_element_type=jnp.float32)
    h = jnp.maximum(h + b2_ref[...], 0.0)

    # ---- batchnorm2 ---------------------------------------------------------
    mean2 = jnp.mean(h, axis=0, keepdims=True)
    var2 = jnp.mean((h - mean2) * (h - mean2), axis=0, keepdims=True)
    h = (h - mean2) * jax.lax.rsqrt(var2 + EPS)
    h = h * g2_ref[...] + be2_ref[...]

    # ---- layer_out + sigmoid (VPU multiply + lane reduction, not MXU) ------
    logits = jnp.sum(h * wo_ref[...], axis=-1, keepdims=True) + bo_ref[...]
    o_ref[...] = jax.nn.sigmoid(logits)


# --------------------------------------------------------------------------- #
# Wrapper
# --------------------------------------------------------------------------- #
def _default_tile_m():
    """Per-generation batch tile for the layer_1 streaming kernel."""
    try:
        kind = jax.devices()[0].device_kind.lower()
    except Exception:
        return 256
    if "v6" in kind:
        return 1024      # v6e: 128 MiB physical VMEM, big tile amortizes overhead
    if "v7" in kind or "7x" in kind:
        return 512       # v7x: 64 MiB physical VMEM, stay comfortably inside
    return 256           # v5e / unknown: safe under the 16 MiB default scoped VMEM


def binary_classification_forward(x, params, tile_m=None):
    """x: (N, 4096) float32 (or bfloat16) -> (N, 1) float32."""
    (w1, b1, g1, be1, w2, b2, g2, be2, wo, bo) = params
    n = x.shape[0]
    itemsize = jnp.dtype(x.dtype).itemsize

    if tile_m is None:
        tile_m = _default_tile_m()
    if n <= tile_m:
        tm = n                       # single full block (no (8,128) constraint)
    else:
        tm = max(8, (tile_m // 8) * 8)
    grid_m = pl.cdiv(n, tm)

    # bf16 callers: feed the MXU in its native mode (accumulation stays f32).
    w1c = w1.astype(x.dtype)

    # Double-buffered x tile + double-buffered h1 tile + weights + headroom.
    vmem_budget = int(2 * tm * D_IN * itemsize + 2 * tm * D_HID * 4
                      + 4 * D_IN * D_HID * itemsize + (8 << 20))

    cost = pl.CostEstimate(
        flops=2 * n * D_IN * D_HID,
        transcendentals=0,
        bytes_accessed=n * D_IN * itemsize + D_IN * D_HID * itemsize
        + n * D_HID * 4,
    )

    h1 = pl.pallas_call(
        _layer1_kernel,
        out_shape=jax.ShapeDtypeStruct((n, D_HID), jnp.float32),
        grid_spec=pltpu.PrefetchScalarGridSpec(
            num_scalar_prefetch=0,
            grid=(grid_m,),
            in_specs=[
                pl.BlockSpec((tm, D_IN), lambda i: (i, 0)),      # streamed tiles
                pl.BlockSpec((D_IN, D_HID), lambda i: (0, 0)),   # resident weight
                pl.BlockSpec((1, D_HID), lambda i: (0, 0)),      # resident bias
            ],
            out_specs=pl.BlockSpec((tm, D_HID), lambda i: (i, 0)),
        ),
        compiler_params=pltpu.CompilerParams(
            dimension_semantics=("parallel",),
            vmem_limit_bytes=vmem_budget,
        ),
        cost_estimate=cost,
    )(x, w1c, b1)

    # Head kernel: tiny, whole (N, 64) stays in VMEM; exact batch-stat BN.
    vmem_spec = pl.BlockSpec(memory_space=pltpu.MemorySpace.VMEM)
    out = pl.pallas_call(
        _head_kernel,
        out_shape=jax.ShapeDtypeStruct((n, 1), jnp.float32),
        in_specs=[vmem_spec] * 9,
        out_specs=vmem_spec,
    )(h1, g1, be1, w2, b2, g2, be2, wo, bo)
    return out


# --------------------------------------------------------------------------- #
# Parameters / reference
# --------------------------------------------------------------------------- #
def init_params(key):
    """Synthetic parameters matching the torch module's shapes.

    Linear weights stored as (in_features, out_features); the output-layer
    weight is stored as a (1, 64) row (used via a lane reduction); biases and
    BN scales as (1, out) so everything is >= 2-D for TPU layouts.
    """
    k1, k2, k3, k4, k5, k6 = jax.random.split(key, 6)

    def uniform(k, shape, fan_in):
        bound = 1.0 / jnp.sqrt(fan_in)
        return jax.random.uniform(k, shape, jnp.float32, -bound, bound)

    w1 = uniform(k1, (D_IN, D_HID), float(D_IN))
    b1 = uniform(k2, (1, D_HID), float(D_IN))
    w2 = uniform(k3, (D_HID, D_HID), float(D_HID))
    b2 = uniform(k4, (1, D_HID), float(D_HID))
    wo = uniform(k5, (1, D_HID), float(D_HID))
    bo = uniform(k6, (1, 1), float(D_HID))
    g1 = jnp.ones((1, D_HID), jnp.float32)
    be1 = jnp.zeros((1, D_HID), jnp.float32)
    g2 = jnp.ones((1, D_HID), jnp.float32)
    be2 = jnp.zeros((1, D_HID), jnp.float32)
    return (w1, b1, g1, be1, w2, b2, g2, be2, wo, bo)


def reference_forward(x, params):
    """Pure-JAX reference (training-mode BN, no dropout in forward)."""
    (w1, b1, g1, be1, w2, b2, g2, be2, wo, bo) = params
    h = jnp.maximum(x @ w1 + b1, 0.0)
    m = h.mean(0, keepdims=True)
    v = ((h - m) ** 2).mean(0, keepdims=True)
    h = (h - m) * jax.lax.rsqrt(v + EPS) * g1 + be1
    h = jnp.maximum(h @ w2 + b2, 0.0)
    m = h.mean(0, keepdims=True)
    v = ((h - m) ** 2).mean(0, keepdims=True)
    h = (h - m) * jax.lax.rsqrt(v + EPS) * g2 + be2
    return jax.nn.sigmoid(h @ wo.reshape(D_HID, 1) + bo)


if __name__ == "__main__":
    key = jax.random.PRNGKey(0)
    kx, kp = jax.random.split(key)

    batch = 512  # multiple of every per-generation tile choice -> no partial tiles
    x = jax.random.normal(kx, (batch, D_IN), jnp.float32)
    params = init_params(kp)

    out = binary_classification_forward(x, params)
    out = jax.block_until_ready(out)

    ref = reference_forward(x, params)
    assert out.shape == (batch, 1)
    assert jnp.allclose(out, ref, atol=1e-5, rtol=1e-5), (out, ref)

    print("KERNEL_OK")
</pallas_src>

<mosaic_0001>
module attributes {stable_mosaic.version = 11 : i64} {
  func.func @_layer1_kernel(%arg0: i32, %arg1: memref<256x4096xf32, #tpu.memory_space<vmem>>, %arg2: memref<4096x64xf32, #tpu.memory_space<vmem>>, %arg3: memref<1x64xf32, #tpu.memory_space<vmem>>, %arg4: memref<256x64xf32, #tpu.memory_space<vmem>>) attributes {dimension_semantics = [#tpu.dimension_semantics<parallel>], iteration_bounds = array<i64: 2>, scalar_prefetch = 0 : i64, scratch_operands = 0 : i64, tpu.core_type = #tpu.core_type<tc>, window_params = [{transform_indices = @transform_0, window_bounds = array<i64: 256, 4096>}, {pipeline_mode = #tpu.pipeline_mode<synchronous>, transform_indices = @transform_1, window_bounds = array<i64: 4096, 64>}, {pipeline_mode = #tpu.pipeline_mode<synchronous>, transform_indices = @transform_2, window_bounds = array<i64: 1, 64>}, {transform_indices = @transform_3, window_bounds = array<i64: 256, 64>}]} {
    %c0 = arith.constant 0 : index
    %c0_0 = arith.constant 0 : index
    %0 = vector.load %arg1[%c0, %c0_0] : memref<256x4096xf32, #tpu.memory_space<vmem>>, vector<256x4096xf32>
    %c0_1 = arith.constant 0 : index
    %c0_2 = arith.constant 0 : index
    %1 = vector.load %arg2[%c0_1, %c0_2] : memref<4096x64xf32, #tpu.memory_space<vmem>>, vector<4096x64xf32>
    %cst = arith.constant dense<0.000000e+00> : vector<256x64xf32>
    %2 = tpu.matmul %0, %1, %cst {dimension_numbers = #tpu.dot_dimension_numbers<[1], [0], [0], [1], [0, 0, 1, 1], [], []>} : vector<256x4096xf32>, vector<4096x64xf32>, vector<256x64xf32> -> vector<256x64xf32>
    %c0_3 = arith.constant 0 : index
    %c0_4 = arith.constant 0 : index
    %3 = vector.load %arg3[%c0_3, %c0_4] : memref<1x64xf32, #tpu.memory_space<vmem>>, vector<1x64xf32>
    %4 = vector.broadcast %3 : vector<1x64xf32> to vector<256x64xf32>
    %5 = arith.addf %2, %4 : vector<256x64xf32>
    %cst_5 = arith.constant 0.000000e+00 : f32
    %6 = vector.broadcast %cst_5 : f32 to vector<256x64xf32>
    %7 = arith.maximumf %5, %6 : vector<256x64xf32>
    %c0_6 = arith.constant 0 : index
    %c0_7 = arith.constant 0 : index
    %8 = vector.load %arg4[%c0_6, %c0_7] : memref<256x64xf32, #tpu.memory_space<vmem>>, vector<256x64xf32>
    tpu.vector_store %arg4[%c0_6, %c0_7], %7 {strides = array<i32>} : memref<256x64xf32, #tpu.memory_space<vmem>>, vector<256x64xf32>,
    return
  }
  func.func @transform_0(%arg0: i32) -> (i32, i32) {
    %c0_i32 = arith.constant 0 : i32
    %c0_i32_0 = arith.constant 0 : i32
    return %arg0, %c0_i32 : i32, i32
  }
  func.func @transform_1(%arg0: i32) -> (i32, i32) {
    %c0_i32 = arith.constant 0 : i32
    %c0_i32_0 = arith.constant 0 : i32
    %c0_i32_1 = arith.constant 0 : i32
    return %c0_i32, %c0_i32_0 : i32, i32
  }
  func.func @transform_2(%arg0: i32) -> (i32, i32) {
    %c0_i32 = arith.constant 0 : i32
    %c0_i32_0 = arith.constant 0 : i32
    %c0_i32_1 = arith.constant 0 : i32
    return %c0_i32, %c0_i32_0 : i32, i32
  }
  func.func @transform_3(%arg0: i32) -> (i32, i32) {
    %c0_i32 = arith.constant 0 : i32
    %c0_i32_0 = arith.constant 0 : i32
    return %arg0, %c0_i32 : i32, i32
  }
}

</mosaic_0001>

<llo_original>
// kernel: tpu_custom_call.1
$region0: #{tpu_custom_call.1}
  #allocation0 [shape = 'u32[]', space=smem, size = 0x4, offset = 0x4, fixed_abs, tag = 'smem constant byte address 0x4 - core index']
  #allocation1 [shape = 'u32[144,128]{1,0:T(1,128)}', space=vmem, size = 0x12000, scoped, tag = 'internal scratch']
  %s0 = inlined_call_operand.hbm [shape: f32[512,4096], index: 0, kind: input, shape index: {}]
  %s1 = inlined_call_operand.vmem [shape: f32[4096,64], index: 1, kind: input, shape index: {}]
  %s2 = inlined_call_operand.hbm [shape: f32[1,64], index: 2, kind: input, shape index: {}]
  %s3 = inlined_call_operand.vmem [shape: f32[512,64], index: 3, kind: output, shape index: {}]
  %s4 = sld [smem:[#allocation0]]
  $region53: #{tpu_custom_call.1} parent=0
    _
  %s6 = ssub.s32 1, %s4
  %s7 = scalar_select 0, %s6, %s4
  $region1: #{tpu_custom_call.1} parent=0
    #allocation2 [shape = 'u8[8388608]{0}', space=vmem, size = 0x800000, scoped, tag = 'input window, operand 0']
    #allocation3 [shape = 's32[2]{0}', space=sflag, size = 0x8, scoped, tag = 'scoped memory for tpu_custom_call.1']
    #allocation4 [shape = 'u8[512]{0}', space=vmem, size = 0x400, scoped, tag = 'input window, operand 2, single buffered']
    #allocation5 [shape = 's32[1]{0}', space=sflag, size = 0x4, scoped, tag = 'scoped memory for tpu_custom_call.1']
    %8 = vsyncpa [#allocation3], 0
    %s9 = scalar_lea.sflag [#allocation3], 1
    %10 = vsyncpa %s9, 0
    %11 = vsyncpa [#allocation5], 0
    loop: start=0, step=1, limit=4
    $region2: #{tpu_custom_call.1} parent=1 // loop_pre_header
      _
    $region3: #{tpu_custom_call.1} parent=1 // loop_header
      %s13 = sphi 0, %s17
      %p14 = scmp.ge.s32.totalorder %s13, 4
      %s23 = sphi 0, %s25
      %s26 = sphi 0, %s23
      %s27 = sphi 0, %s26
      %s43 = sphi 0, %s27
      %s47 = sphi 0, %s47
      %s49 = sphi 0, %s47
      %s50 = sphi 0, %s49
      %s64 = sphi 0, %s50
      %s68 = sphi 0, %s68
      %s70 = sphi 0, %s68
      %s71 = sphi 0, %s70
      %s85 = sphi 0, %s71
      %s91 = sphi 0, %s93
      %s94 = sphi 0, %s91
      %s95 = sphi 0, %s94
      %s111 = sphi 0, %s95
    $region4: #{tpu_custom_call.1} parent=1 // loop_header_branch
      %16 = sbr.rel (%p14) target = $region8
    $region5: #{tpu_custom_call.1} parent=1 // loop_body
      %s18 = ssub.s32 %s13, 1
      %s19 = ssub.s32 %s13, 2
      %s20 = sadd.s32 %s13, 1
      %s21 = ssub.s32 %s13, %s20
      %p22 = scmp.eq.s32.totalorder %s21, 0
      %s24 = sadd.s32 %s23, 1
      %s25 = scalar_select %p22, %s23, %s24
      %p28 = pneg %p22
      %p29 = scmp.eq.s32.totalorder %s13, 1
      %p30 = por %p28, %p29
      %p31 = scmp.ne.s32.totalorder %s23, %s26
      %p32 = scmp.eq.s32.totalorder %s13, 0
      %p33 = por %p31, %p32
      %p34 = scmp.ne.s32.totalorder %s23, %s26
      %p35 = scmp.eq.s32.totalorder %s18, 1
      %p36 = por %p34, %p35
      %p37 = scmp.ne.s32.totalorder %s26, %s27
      %p38 = scmp.eq.s32.totalorder %s18, 0
      %p39 = por %p37, %p38
      %p40 = scmp.ne.s32.totalorder %s26, %s27
      %p41 = scmp.eq.s32.totalorder %s19, 1
      %p42 = por %p40, %p41
      %p44 = scmp.ne.s32.totalorder %s27, %s43
      %p45 = scmp.eq.s32.totalorder %s19, 0
      %p46 = por %p44, %p45
      %s48 = sadd.s32 %s47, 1
      %p51 = scmp.eq.s32.totalorder %s13, 1
      %p52 = scmp.ne.s32.totalorder %s47, %s49
      %p53 = scmp.eq.s32.totalorder %s13, 0
      %p54 = por %p52, %p53
      %p55 = scmp.ne.s32.totalorder %s47, %s49
      %p56 = scmp.eq.s32.totalorder %s18, 1
      %p57 = por %p55, %p56
      %p58 = scmp.ne.s32.totalorder %s49, %s50
      %p59 = scmp.eq.s32.totalorder %s18, 0
      %p60 = por %p58, %p59
      %p61 = scmp.ne.s32.totalorder %s49, %s50
      %p62 = scmp.eq.s32.totalorder %s19, 1
      %p63 = por %p61, %p62
      %p65 = scmp.ne.s32.totalorder %s50, %s64
      %p66 = scmp.eq.s32.totalorder %s19, 0
      %p67 = por %p65, %p66
      %s69 = sadd.s32 %s68, 1
      %p72 = scmp.eq.s32.totalorder %s13, 1
      %p73 = scmp.ne.s32.totalorder %s68, %s70
      %p74 = scmp.eq.s32.totalorder %s13, 0
      %p75 = por %p73, %p74
      %p76 = scmp.ne.s32.totalorder %s68, %s70
      %p77 = scmp.eq.s32.totalorder %s18, 1
      %p78 = por %p76, %p77
      %p79 = scmp.ne.s32.totalorder %s70, %s71
      %p80 = scmp.eq.s32.totalorder %s18, 0
      %p81 = por %p79, %p80
      %p82 = scmp.ne.s32.totalorder %s70, %s71
      %p83 = scmp.eq.s32.totalorder %s19, 1
      %p84 = por %p82, %p83
      %p86 = scmp.ne.s32.totalorder %s71, %s85
      %p87 = scmp.eq.s32.totalorder %s19, 0
      %p88 = por %p86, %p87
      %s89 = ssub.s32 %s13, %s20
      %p90 = scmp.eq.s32.totalorder %s89, 0
      %s92 = sadd.s32 %s91, 1
      %s93 = scalar_select %p90, %s91, %s92
      %p96 = pneg %p90
      %p97 = scmp.eq.s32.totalorder %s13, 1
      %p98 = por %p96, %p97
      %p99 = scmp.ne.s32.totalorder %s91, %s94
      %p100 = scmp.eq.s32.totalorder %s13, 0
      %p101 = por %p99, %p100
      %p102 = scmp.ne.s32.totalorder %s91, %s94
      %p103 = scmp.eq.s32.totalorder %s18, 1
      %p104 = por %p102, %p103
      %p105 = scmp.ne.s32.totalorder %s94, %s95
      %p106 = scmp.eq.s32.totalorder %s18, 0
      %p107 = por %p105, %p106
      %p108 = scmp.ne.s32.totalorder %s94, %s95
      %p109 = scmp.eq.s32.totalorder %s19, 1
      %p110 = por %p108, %p109
      %p112 = scmp.ne.s32.totalorder %s95, %s111
      %p113 = scmp.eq.s32.totalorder %s19, 0
      %p114 = por %p112, %p113
      %p115 = scmp.le.s32.totalorder 1, %s13
      %p116 = scmp.lt.s32.totalorder %s13, 3
      %p117 = pnand %p115, %p116
      %p118 = pneg %p117
      // Predicated region
      $region9: #{tpu_custom_call.1} parent=5 // pred_check
        _
      $region10: #{tpu_custom_call.1} parent=5 // pred_check_branch
        %120 = sbr.rel (%p117) target = $region12
      $region11: #{tpu_custom_call.1} parent=5 // pred_region
        %s121 = ssub.s32 %s13, 1
        // Predicated region
        $region13: #{tpu_custom_call.1} parent=11 // pred_check
          %p122 = pneg %p60
        $region14: #{tpu_custom_call.1} parent=11 // pred_check_branch
          %124 = sbr.rel (%p122) target = $region16
        $region15: #{tpu_custom_call.1} parent=11 // pred_region
          _
        $region16: #{tpu_custom_call.1} parent=11 // pred_fallthru
          _
        // Predicated region
        $region17: #{tpu_custom_call.1} parent=11 // pred_check
          %p125 = pneg %p81
        $region18: #{tpu_custom_call.1} parent=11 // pred_check_branch
          %127 = sbr.rel (%p125) target = $region20
        $region19: #{tpu_custom_call.1} parent=11 // pred_region
          %s129 = ssub.s32 16, 16
          %130 = vsyncadd [#allocation5], %s129
          %s132 = sshll.u32 [#allocation4], 4
          %s133 = int_to_ptr.vmem [resolvable:$true] %s132
          %135 = dma.hbm_to_vmem [thread:$0]  %s2, 16, %s133, [#allocation5]
        $region20: #{tpu_custom_call.1} parent=11 // pred_fallthru
          _
      $region12: #{tpu_custom_call.1} parent=5 // pred_fallthru
        _
      %p136 = scmp.lt.s32.totalorder %s13, 2
      // Predicated region
      $region21: #{tpu_custom_call.1} parent=5 // pred_check
        %p137 = pneg %p136
      $region22: #{tpu_custom_call.1} parent=5 // pred_check_branch
        %139 = sbr.rel (%p137) target = $region24
      $region23: #{tpu_custom_call.1} parent=5 // pred_region
        // Predicated region
        $region25: #{tpu_custom_call.1} parent=23 // pred_check
          %p140 = pneg %p33
        $region26: #{tpu_custom_call.1} parent=23 // pred_check_branch
          %142 = sbr.rel (%p140) target = $region28
        $region27: #{tpu_custom_call.1} parent=23 // pred_region
          %s143 = sand.u32 %s23, 1
          %s144 = scalar_lea.sflag [#allocation3], %s143
          %s145 = sand.u32 %s23, 1
          %s146 = smul.addr %s145, 8192
          %s147 = scalar_lea.vmem [#allocation2], %s146
          %s148 = smul.u32 32, %s13
          %s150 = ssub.s32 131072, 131072
          %151 = vsyncadd %s144, %s150
          %s152 = smul.addr %s148, 32
          %s153 = smul.addr %s152, 128
          %s154 = scalar_lea.hbm %s0, %s153
          %s155 = sshll.u32 %s147, 4
          %s156 = int_to_ptr.vmem [resolvable:$true] %s155
          %161 = dma.hbm_to_vmem [thread:$0]  %s154, 131072, %s156, %s144, 4096, 4096, 256
        $region28: #{tpu_custom_call.1} parent=23 // pred_fallthru
          _
      $region24: #{tpu_custom_call.1} parent=5 // pred_fallthru
        _
      %p162 = scmp.le.s32.totalorder 1, %s13
      %p163 = scmp.lt.s32.totalorder %s13, 3
      %p164 = pnand %p162, %p163
      %p165 = pneg %p164
      // Predicated region
      $region29: #{tpu_custom_call.1} parent=5 // pred_check
        _
      $region30: #{tpu_custom_call.1} parent=5 // pred_check_branch
        %167 = sbr.rel (%p164) target = $region32
      $region31: #{tpu_custom_call.1} parent=5 // pred_region
        %s168 = ssub.s32 %s13, 1
        %s169 = sand.u32 %s26, 1
        %s170 = scalar_lea.sflag [#allocation3], %s169
        %s171 = sand.u32 %s26, 1
        %s172 = smul.addr %s171, 8192
        %s173 = scalar_lea.vmem [#allocation2], %s172
        // Predicated region
        $region33: #{tpu_custom_call.1} parent=31 // pred_check
          %p174 = pneg %p39
        $region34: #{tpu_custom_call.1} parent=31 // pred_check_branch
          %176 = sbr.rel (%p174) target = $region36
        $region35: #{tpu_custom_call.1} parent=31 // pred_region
          %177 = dma.done %s170, 131072
        $region36: #{tpu_custom_call.1} parent=31 // pred_fallthru
          _
        // Predicated region
        $region37: #{tpu_custom_call.1} parent=31 // pred_check
          %p178 = pneg %p81
        $region38: #{tpu_custom_call.1} parent=31 // pred_check_branch
          %180 = sbr.rel (%p178) target = $region40
        $region39: #{tpu_custom_call.1} parent=31 // pred_region
          %181 = dma.done [#allocation5], 16
        $region40: #{tpu_custom_call.1} parent=31 // pred_fallthru
          _
        %s182 = sand.u32 %s26, 1
        %s183 = scalar_lea.sflag [#allocation3], %s182
        %s184 = sand.u32 %s26, 1
        %s185 = smul.addr %s184, 8192
        %s186 = scalar_lea.vmem [#allocation2], %s185
        %p187 = pneg %p39
        %p188 = pneg %p36
        %p189 = pneg %p60
        %p190 = pneg %p57
        %p191 = pneg %p81
        %p192 = pneg %p78
        %p193 = pneg %p107
        %p194 = pneg %p104
        %s195 = smul.u32 32, %s18
        %p196 = scmp.lt.s32.totalorder %s195, 63
        %s197 = scalar_select %p196, %s195, 63
        %s198 = smul.addr %s197, 8
        %s199 = scalar_lea.vmem %s3, %s198
        %s200 = smul.u32 32, %s18
        %s201 = smul.u32 32, %s18
        %p202 = scmp.lt.s32.totalorder %s201, 63
        %s203 = scalar_select %p202, %s201, 63
        %s204 = smul.addr %s203, 8
        %s205 = scalar_lea.vmem %s3, %s204
        %s206 = smul.u32 32, %s18
        %v207 = vld [vmem:[%s173] sm:$0xff]
        %v208 = vld [vmem:[%s173 + $0x8] sm:$0xff]
        %v209 = vld [vmem:[%s173 + $0x10] sm:$0xff]
        %v210 = vld [vmem:[%s173 + $0x18] sm:$0xff]
        %v211 = vld [vmem:[%s173 + $0x20] sm:$0xff]
        %v212 = vld [vmem:[%s173 + $0x28] sm:$0xff]
        %v213 = vld [vmem:[%s173 + $0x30] sm:$0xff]
        %v214 = vld [vmem:[%s173 + $0x38] sm:$0xff]
        %v215 = vld [vmem:[%s173 + $0x40] sm:$0xff]
        %v216 = vld [vmem:[%s173 + $0x48] sm:$0xff]
        %v217 = vld [vmem:[%s173 + $0x50] sm:$0xff]
        %v218 = vld [vmem:[%s173 + $0x58] sm:$0xff]
        %v219 = vld [vmem:[%s173 + $0x60] sm:$0xff]
        %v220 = vld [vmem:[%s173 + $0x68] sm:$0xff]
        %v221 = vld [vmem:[%s173 + $0x70] sm:$0xff]
        %v222 = vld [vmem:[%s173 + $0x78] sm:$0xff]
        %v223 = vld [vmem:[%s173 + $0x80] sm:$0xff]
        %v224 = vld [vmem:[%s173 + $0x88] sm:$0xff]
        %v225 = vld [vmem:[%s173 + $0x90] sm:$0xff]
        %v226 = vld [vmem:[%s173 + $0x98] sm:$0xff]
        %v227 = vld [vmem:[%s173 + $0xa0] sm:$0xff]
        %v228 = vld [vmem:[%s173 + $0xa8] sm:$0xff]
        %v229 = vld [vmem:[%s173 + $0xb0] sm:$0xff]
        %v230 = vld [vmem:[%s173 + $0xb8] sm:$0xff]
        %v231 = vld [vmem:[%s173 + $0xc0] sm:$0xff]
        %v232 = vld [vmem:[%s173 + $0xc8] sm:$0xff]
        %v233 = vld [vmem:[%s173 + $0xd0] sm:$0xff]
        %v234 = vld [vmem:[%s173 + $0xd8] sm:$0xff]
        %v235 = vld [vmem:[%s173 + $0xe0] sm:$0xff]
        %v236 = vld [vmem:[%s173 + $0xe8] sm:$0xff]
        %v237 = vld [vmem:[%s173 + $0xf0] sm:$0xff]
        %v238 = vld [vmem:[%s173 + $0xf8] sm:$0xff]
        %v239 = vld [vmem:[%s173 + $0x100] sm:$0xff]
        %v240 = vld [vmem:[%s173 + $0x108] sm:$0xff]
        %v241 = vld [vmem:[%s173 + $0x110] sm:$0xff]
        %v242 = vld [vmem:[%s173 + $0x118] sm:$0xff]
        %v243 = vld [vmem:[%s173 + $0x120] sm:$0xff]
        %v244 = vld [vmem:[%s173 + $0x128] sm:$0xff]
        %v245 = vld [vmem:[%s173 + $0x130] sm:$0xff]
        %v246 = vld [vmem:[%s173 + $0x138] sm:$0xff]
        %v247 = vld [vmem:[%s173 + $0x140] sm:$0xff]
        %v248 = vld [vmem:[%s173 + $0x148] sm:$0xff]
        %v249 = vld [vmem:[%s173 + $0x150] sm:$0xff]
        %v250 = vld [vmem:[%s173 + $0x158] sm:$0xff]
        %v251 = vld [vmem:[%s173 + $0x160] sm:$0xff]
        %v252 = vld [vmem:[%s173 + $0x168] sm:$0xff]
        %v253 = vld [vmem:[%s173 + $0x170] sm:$0xff]
        %v254 = vld [vmem:[%s173 + $0x178] sm:$0xff]
        %v255 = vld [vmem:[%s173 + $0x180] sm:$0xff]
        %v256 = vld [vmem:[%s173 + $0x188] sm:$0xff]
        %v257 = vld [vmem:[%s173 + $0x190] sm:$0xff]
        %v258 = vld [vmem:[%s173 + $0x198] sm:$0xff]
        %v259 = vld [vmem:[%s173 + $0x1a0] sm:$0xff]
        %v260 = vld [vmem:[%s173 + $0x1a8] sm:$0xff]
        %v261 = vld [vmem:[%s173 + $0x1b0] sm:$0xff]
        %v262 = vld [vmem:[%s173 + $0x1b8] sm:$0xff]
        %v263 = vld [vmem:[%s173 + $0x1c0] sm:$0xff]
        %v264 = vld [vmem:[%s173 + $0x1c8] sm:$0xff]
        %v265 = vld [vmem:[%s173 + $0x1d0] sm:$0xff]
        %v266 = vld [vmem:[%s173 + $0x1d8] sm:$0xff]
        %v267 = vld [vmem:[%s173 + $0x1e0] sm:$0xff]
        %v268 = vld [vmem:[%s173 + $0x1e8] sm:$0xff]
        %v269 = vld [vmem:[%s173 + $0x1f0] sm:$0xff]
        %v270 = vld [vmem:[%s173 + $0x1f8] sm:$0xff]
        %v271 = vld [vmem:[%s173 + $0x200] sm:$0xff]
        %v272 = vld [vmem:[%s173 + $0x208] sm:$0xff]
        %v273 = vld [vmem:[%s173 + $0x210] sm:$0xff]
        %v274 = vld [vmem:[%s173 + $0x218] sm:$0xff]
        %v275 = vld [vmem:[%s173 + $0x220] sm:$0xff]
        %v276 = vld [vmem:[%s173 + $0x228] sm:$0xff]
        %v277 = vld [vmem:[%s173 + $0x230] sm:$0xff]
        %v278 = vld [vmem:[%s173 + $0x238] sm:$0xff]
        %v279 = vld [vmem:[%s173 + $0x240] sm:$0xff]
        %v280 = vld [vmem:[%s173 + $0x248] sm:$0xff]
        %v281 = vld [vmem:[%s173 + $0x250] sm:$0xff]
        %v282 = vld [vmem:[%s173 + $0x258] sm:$0xff]
        %v283 = vld [vmem:[%s173 + $0x260] sm:$0xff]
        %v284 = vld [vmem:[%s173 + $0x268] sm:$0xff]
        %v285 = vld [vmem:[%s173 + $0x270] sm:$0xff]
        %v286 = vld [vmem:[%s173 + $0x278] sm:$0xff]
        %v287 = vld [vmem:[%s173 + $0x280] sm:$0xff]
        %v288 = vld [vmem:[%s173 + $0x288] sm:$0xff]
        %v289 = vld [vmem:[%s173 + $0x290] sm:$0xff]
        %v290 = vld [vmem:[%s173 + $0x298] sm:$0xff]
        %v291 = vld [vmem:[%s173 + $0x2a0] sm:$0xff]
        %v292 = vld [vmem:[%s173 + $0x2a8] sm:$0xff]
        %v293 = vld [vmem:[%s173 + $0x2b0] sm:$0xff]
        %v294 = vld [vmem:[%s173 + $0x2b8] sm:$0xff]
        %v295 = vld [vmem:[%s173 + $0x2c0] sm:$0xff]
        %v296 = vld [vmem:[%s173 + $0x2c8] sm:$0xff]
        %v297 = vld [vmem:[%s173 + $0x2d0] sm:$0xff]
        %v298 = vld [vmem:[%s173 + $0x2d8] sm:$0xff]
        %v299 = vld [vmem:[%s173 + $0x2e0] sm:$0xff]
        %v300 = vld [vmem:[%s173 + $0x2e8] sm:$0xff]
        %v301 = vld [vmem:[%s173 + $0x2f0] sm:$0xff]
        %v302 = vld [vmem:[%s173 + $0x2f8] sm:$0xff]
        %v303 = vld [vmem:[%s173 + $0x300] sm:$0xff]
        %v304 = vld [vmem:[%s173 + $0x308] sm:$0xff]
        %v305 = vld [vmem:[%s173 + $0x310] sm:$0xff]
        %v306 = vld [vmem:[%s173 + $0x318] sm:$0xff]
        %v307 = vld [vmem:[%s173 + $0x320] sm:$0xff]
        %v308 = vld [vmem:[%s173 + $0x328] sm:$0xff]
        %v309 = vld [vmem:[%s173 + $0x330] sm:$0xff]
        %v310 = vld [vmem:[%s173 + $0x338] sm:$0xff]
        %v311 = vld [vmem:[%s173 + $0x340] sm:$0xff]
        %v312 = vld [vmem:[%s173 + $0x348] sm:$0xff]
        %v313 = vld [vmem:[%s173 + $0x350] sm:$0xff]
        %v314 = vld [vmem:[%s173 + $0x358] sm:$0xff]
        %v315 = vld [vmem:[%s173 + $0x360] sm:$0xff]
        %v316 = vld [vmem:[%s173 + $0x368] sm:$0xff]
        %v317 = vld [vmem:[%s173 + $0x370] sm:$0xff]
        %v318 = vld [vmem:[%s173 + $0x378] sm:$0xff]
        %v319 = vld [vmem:[%s173 + $0x380] sm:$0xff]
        %v320 = vld [vmem:[%s173 + $0x388] sm:$0xff]
        %v321 = vld [vmem:[%s173 + $0x390] sm:$0xff]
        %v322 = vld [vmem:[%s173 + $0x398] sm:$0xff]
        %v323 = vld [vmem:[%s173 + $0x3a0] sm:$0xff]
        %v324 = vld [vmem:[%s173 + $0x3a8] sm:$0xff]
        %v325 = vld [vmem:[%s173 + $0x3b0] sm:$0xff]
        %v326 = vld [vmem:[%s173 + $0x3b8] sm:$0xff]
        %v327 = vld [vmem:[%s173 + $0x3c0] sm:$0xff]
        %v328 = vld [vmem:[%s173 + $0x3c8] sm:$0xff]
        %v329 = vld [vmem:[%s173 + $0x3d0] sm:$0xff]
        %v330 = vld [vmem:[%s173 + $0x3d8] sm:$0xff]
        %v331 = vld [vmem:[%s173 + $0x3e0] sm:$0xff]
        %v332 = vld [vmem:[%s173 + $0x3e8] sm:$0xff]
        %v333 = vld [vmem:[%s173 + $0x3f0] sm:$0xff]
        %v334 = vld [vmem:[%s173 + $0x3f8] sm:$0xff]
        %v335 = vld [vmem:[%s173 + $0x400] sm:$0xff]
        %v336 = vld [vmem:[%s173 + $0x408] sm:$0xff]
        %v337 = vld [vmem:[%s173 + $0x410] sm:$0xff]
        %v338 = vld [vmem:[%s173 + $0x418] sm:$0xff]
        %v339 = vld [vmem:[%s173 + $0x420] sm:$0xff]
        %v340 = vld [vmem:[%s173 + $0x428] sm:$0xff]
        %v341 = vld [vmem:[%s173 + $0x430] sm:$0xff]
        %v342 = vld [vmem:[%s173 + $0x438] sm:$0xff]
        %v343 = vld [vmem:[%s173 + $0x440] sm:$0xff]
        %v344 = vld [vmem:[%s173 + $0x448] sm:$0xff]
        %v345 = vld [vmem:[%s173 + $0x450] sm:$0xff]
        %v346 = vld [vmem:[%s173 + $0x458] sm:$0xff]
        %v347 = vld [vmem:[%s173 + $0x460] sm:$0xff]
        %v348 = vld [vmem:[%s173 + $0x468] sm:$0xff]
        %v349 = vld [vmem:[%s173 + $0x470] sm:$0xff]
        %v350 = vld [vmem:[%s173 + $0x478] sm:$0xff]
        %v351 = vld [vmem:[%s173 + $0x480] sm:$0xff]
        %v352 = vld [vmem:[%s173 + $0x488] sm:$0xff]
        %v353 = vld [vmem:[%s173 + $0x490] sm:$0xff]
        %v354 = vld [vmem:[%s173 + $0x498] sm:$0xff]
        %v355 = vld [vmem:[%s173 + $0x4a0] sm:$0xff]
        %v356 = vld [vmem:[%s173 + $0x4a8] sm:$0xff]
        %v357 = vld [vmem:[%s173 + $0x4b0] sm:$0xff]
        %v358 = vld [vmem:[%s173 + $0x4b8] sm:$0xff]
        %v359 = vld [vmem:[%s173 + $0x4c0] sm:$0xff]
        %v360 = vld [vmem:[%s173 + $0x4c8] sm:$0xff]
        %v361 = vld [vmem:[%s173 + $0x4d0] sm:$0xff]
        %v362 = vld [vmem:[%s173 + $0x4d8] sm:$0xff]
        %v363 = vld [vmem:[%s173 + $0x4e0] sm:$0xff]
        %v364 = vld [vmem:[%s173 + $0x4e8] sm:$0xff]
        %v365 = vld [vmem:[%s173 + $0x4f0] sm:$0xff]
        %v366 = vld [vmem:[%s173 + $0x4f8] sm:$0xff]
        %v367 = vld [vmem:[%s173 + $0x500] sm:$0xff]
        %v368 = vld [vmem:[%s173 + $0x508] sm:$0xff]
        %v369 = vld [vmem:[%s173 + $0x510] sm:$0xff]
        %v370 = vld [vmem:[%s173 + $0x518] sm:$0xff]
        %v371 = vld [vmem:[%s173 + $0x520] sm:$0xff]
        %v372 = vld [vmem:[%s173 + $0x528] sm:$0xff]
        %v373 = vld [vmem:[%s173 + $0x530] sm:$0xff]
        %v374 = vld [vmem:[%s173 + $0x538] sm:$0xff]
        %v375 = vld [vmem:[%s173 + $0x540] sm:$0xff]
        %v376 = vld [vmem:[%s173 + $0x548] sm:$0xff]
        %v377 = vld [vmem:[%s173 + $0x550] sm:$0xff]
        %v378 = vld [vmem:[%s173 + $0x558] sm:$0xff]
        %v379 = vld [vmem:[%s173 + $0x560] sm:$0xff]
        %v380 = vld [vmem:[%s173 + $0x568] sm:$0xff]
        %v381 = vld [vmem:[%s173 + $0x570] sm:$0xff]
        %v382 = vld [vmem:[%s173 + $0x578] sm:$0xff]
        %v383 = vld [vmem:[%s173 + $0x580] sm:$0xff]
        %v384 = vld [vmem:[%s173 + $0x588] sm:$0xff]
        %v385 = vld [vmem:[%s173 + $0x590] sm:$0xff]
        %v386 = vld [vmem:[%s173 + $0x598] sm:$0xff]
        %v387 = vld [vmem:[%s173 + $0x5a0] sm:$0xff]
        %v388 = vld [vmem:[%s173 + $0x5a8] sm:$0xff]
        %v389 = vld [vmem:[%s173 + $0x5b0] sm:$0xff]
        %v390 = vld [vmem:[%s173 + $0x5b8] sm:$0xff]
        %v391 = vld [vmem:[%s173 + $0x5c0] sm:$0xff]
        %v392 = vld [vmem:[%s173 + $0x5c8] sm:$0xff]
        %v393 = vld [vmem:[%s173 + $0x5d0] sm:$0xff]
        %v394 = vld [vmem:[%s173 + $0x5d8] sm:$0xff]
        %v395 = vld [vmem:[%s173 + $0x5e0] sm:$0xff]
        %v396 = vld [vmem:[%s173 + $0x5e8] sm:$0xff]
        %v397 = vld [vmem:[%s173 + $0x5f0] sm:$0xff]
        %v398 = vld [vmem:[%s173 + $0x5f8] sm:$0xff]
        %v399 = vld [vmem:[%s173 + $0x600] sm:$0xff]
        %v400 = vld [vmem:[%s173 + $0x608] sm:$0xff]
        %v401 = vld [vmem:[%s173 + $0x610] sm:$0xff]
        %v402 = vld [vmem:[%s173 + $0x618] sm:$0xff]
        %v403 = vld [vmem:[%s173 + $0x620] sm:$0xff]
        %v404 = vld [vmem:[%s173 + $0x628] sm:$0xff]
        %v405 = vld [vmem:[%s173 + $0x630] sm:$0xff]
        %v406 = vld [vmem:[%s173 + $0x638] sm:$0xff]
        %v407 = vld [vmem:[%s173 + $0x640] sm:$0xff]
        %v408 = vld [vmem:[%s173 + $0x648] sm:$0xff]
        %v409 = vld [vmem:[%s173 + $0x650] sm:$0xff]
        %v410 = vld [vmem:[%s173 + $0x658] sm:$0xff]
        %v411 = vld [vmem:[%s173 + $0x660] sm:$0xff]
        %v412 = vld [vmem:[%s173 + $0x668] sm:$0xff]
        %v413 = vld [vmem:[%s173 + $0x670] sm:$0xff]
        %v414 = vld [vmem:[%s173 + $0x678] sm:$0xff]
        %v415 = vld [vmem:[%s173 + $0x680] sm:$0xff]
        %v416 = vld [vmem:[%s173 + $0x688] sm:$0xff]
        %v417 = vld [vmem:[%s173 + $0x690] sm:$0xff]
        %v418 = vld [vmem:[%s173 + $0x698] sm:$0xff]
        %v419 = vld [vmem:[%s173 + $0x6a0] sm:$0xff]
        %v420 = vld [vmem:[%s173 + $0x6a8] sm:$0xff]
        %v421 = vld [vmem:[%s173 + $0x6b0] sm:$0xff]
        %v422 = vld [vmem:[%s173 + $0x6b8] sm:$0xff]
        %v423 = vld [vmem:[%s173 + $0x6c0] sm:$0xff]
        %v424 = vld [vmem:[%s173 + $0x6c8] sm:$0xff]
        %v425 = vld [vmem:[%s173 + $0x6d0] sm:$0xff]
        %v426 = vld [vmem:[%s173 + $0x6d8] sm:$0xff]
        %v427 = vld [vmem:[%s173 + $0x6e0] sm:$0xff]
        %v428 = vld [vmem:[%s173 + $0x6e8] sm:$0xff]
        %v429 = vld [vmem:[%s173 + $0x6f0] sm:$0xff]
        %v430 = vld [vmem:[%s173 + $0x6f8] sm:$0xff]
        %v431 = vld [vmem:[%s173 + $0x700] sm:$0xff]
        %v432 = vld [vmem:[%s173 + $0x708] sm:$0xff]
        %v433 = vld [vmem:[%s173 + $0x710] sm:$0xff]
        %v434 = vld [vmem:[%s173 + $0x718] sm:$0xff]
        %v435 = vld [vmem:[%s173 + $0x720] sm:$0xff]
        %v436 = vld [vmem:[%s173 + $0x728] sm:$0xff]
        %v437 = vld [vmem:[%s173 + $0x730] sm:$0xff]
        %v438 = vld [vmem:[%s173 + $0x738] sm:$0xff]
        %v439 = vld [vmem:[%s173 + $0x740] sm:$0xff]
        %v440 = vld [vmem:[%s173 + $0x748] sm:$0xff]
        %v441 = vld [vmem:[%s173 + $0x750] sm:$0xff]
        %v442 = vld [vmem:[%s173 + $0x758] sm:$0xff]
        %v443 = vld [vmem:[%s173 + $0x760] sm:$0xff]
        %v444 = vld [vmem:[%s173 + $0x768] sm:$0xff]
        %v445 = vld [vmem:[%s173 + $0x770] sm:$0xff]
        %v446 = vld [vmem:[%s173 + $0x778] sm:$0xff]
        %v447 = vld [vmem:[%s173 + $0x780] sm:$0xff]
        %v448 = vld [vmem:[%s173 + $0x788] sm:$0xff]
        %v449 = vld [vmem:[%s173 + $0x790] sm:$0xff]
        %v450 = vld [vmem:[%s173 + $0x798] sm:$0xff]
        %v451 = vld [vmem:[%s173 + $0x7a0] sm:$0xff]
        %v452 = vld [vmem:[%s173 + $0x7a8] sm:$0xff]
        %v453 = vld [vmem:[%s173 + $0x7b0] sm:$0xff]
        %v454 = vld [vmem:[%s173 + $0x7b8] sm:$0xff]
        %v455 = vld [vmem:[%s173 + $0x7c0] sm:$0xff]
        %v456 = vld [vmem:[%s173 + $0x7c8] sm:$0xff]
        %v457 = vld [vmem:[%s173 + $0x7d0] sm:$0xff]
        %v458 = vld [vmem:[%s173 + $0x7d8] sm:$0xff]
        %v459 = vld [vmem:[%s173 + $0x7e0] sm:$0xff]
        %v460 = vld [vmem:[%s173 + $0x7e8] sm:$0xff]
        %v461 = vld [vmem:[%s173 + $0x7f0] sm:$0xff]
        %v462 = vld [vmem:[%s173 + $0x7f8] sm:$0xff]
        %v463 = vld [vmem:[%s173 + $0x800] sm:$0xff]
        %v464 = vld [vmem:[%s173 + $0x808] sm:$0xff]
        %v465 = vld [vmem:[%s173 + $0x810] sm:$0xff]
        %v466 = vld [vmem:[%s173 + $0x818] sm:$0xff]
        %v467 = vld [vmem:[%s173 + $0x820] sm:$0xff]
        %v468 = vld [vmem:[%s173 + $0x828] sm:$0xff]
        %v469 = vld [vmem:[%s173 + $0x830] sm:$0xff]
        %v470 = vld [vmem:[%s173 + $0x838] sm:$0xff]
        %v471 = vld [vmem:[%s173 + $0x840] sm:$0xff]
        %v472 = vld [vmem:[%s173 + $0x848] sm:$0xff]
        %v473 = vld [vmem:[%s173 + $0x850] sm:$0xff]
        %v474 = vld [vmem:[%s173 + $0x858] sm:$0xff]
        %v475 = vld [vmem:[%s173 + $0x860] sm:$0xff]
        %v476 = vld [vmem:[%s173 + $0x868] sm:$0xff]
        %v477 = vld [vmem:[%s173 + $0x870] sm:$0xff]
        %v478 = vld [vmem:[%s173 + $0x878] sm:$0xff]
        %v479 = vld [vmem:[%s173 + $0x880] sm:$0xff]
        %v480 = vld [vmem:[%s173 + $0x888] sm:$0xff]
        %v481 = vld [vmem:[%s173 + $0x890] sm:$0xff]
        %v482 = vld [vmem:[%s173 + $0x898] sm:$0xff]
        %v483 = vld [vmem:[%s173 + $0x8a0] sm:$0xff]
        %v484 = vld [vmem:[%s173 + $0x8a8] sm:$0xff]
        %v485 = vld [vmem:[%s173 + $0x8b0] sm:$0xff]
        %v486 = vld [vmem:[%s173 + $0x8b8] sm:$0xff]
        %v487 = vld [vmem:[%s173 + $0x8c0] sm:$0xff]
        %v488 = vld [vmem:[%s173 + $0x8c8] sm:$0xff]
        %v489 = vld [vmem:[%s173 + $0x8d0] sm:$0xff]
        %v490 = vld [vmem:[%s173 + $0x8d8] sm:$0xff]
        %v491 = vld [vmem:[%s173 + $0x8e0] sm:$0xff]
        %v492 = vld [vmem:[%s173 + $0x8e8] sm:$0xff]
        %v493 = vld [vmem:[%s173 + $0x8f0] sm:$0xff]
        %v494 = vld [vmem:[%s173 + $0x8f8] sm:$0xff]
        %v495 = vld [vmem:[%s173 + $0x900] sm:$0xff]
        %v496 = vld [vmem:[%s173 + $0x908] sm:$0xff]
        %v497 = vld [vmem:[%s173 + $0x910] sm:$0xff]
        %v498 = vld [vmem:[%s173 + $0x918] sm:$0xff]
        %v499 = vld [vmem:[%s173 + $0x920] sm:$0xff]
        %v500 = vld [vmem:[%s173 + $0x928] sm:$0xff]
        %v501 = vld [vmem:[%s173 + $0x930] sm:$0xff]
        %v502 = vld [vmem:[%s173 + $0x938] sm:$0xff]
        %v503 = vld [vmem:[%s173 + $0x940] sm:$0xff]
        %v504 = vld [vmem:[%s173 + $0x948] sm:$0xff]
        %v505 = vld [vmem:[%s173 + $0x950] sm:$0xff]
        %v506 = vld [vmem:[%s173 + $0x958] sm:$0xff]
        %v507 = vld [vmem:[%s173 + $0x960] sm:$0xff]
        %v508 = vld [vmem:[%s173 + $0x968] sm:$0xff]
        %v509 = vld [vmem:[%s173 + $0x970] sm:$0xff]
        %v510 = vld [vmem:[%s173 + $0x978] sm:$0xff]
        %v511 = vld [vmem:[%s173 + $0x980] sm:$0xff]
        %v512 = vld [vmem:[%s173 + $0x988] sm:$0xff]
        %v513 = vld [vmem:[%s173 + $0x990] sm:$0xff]
        %v514 = vld [vmem:[%s173 + $0x998] sm:$0xff]
        %v515 = vld [vmem:[%s173 + $0x9a0] sm:$0xff]
        %v516 = vld [vmem:[%s173 + $0x9a8] sm:$0xff]
        %v517 = vld [vmem:[%s173 + $0x9b0] sm:$0xff]
        %v518 = vld [vmem:[%s173 + $0x9b8] sm:$0xff]
        %v519 = vld [vmem:[%s173 + $0x9c0] sm:$0xff]
        %v520 = vld [vmem:[%s173 + $0x9c8] sm:$0xff]
        %v521 = vld [vmem:[%s173 + $0x9d0] sm:$0xff]
        %v522 = vld [vmem:[%s173 + $0x9d8] sm:$0xff]
        %v523 = vld [vmem:[%s173 + $0x9e0] sm:$0xff]
        %v524 = vld [vmem:[%s173 + $0x9e8] sm:$0xff]
        %v525 = vld [vmem:[%s173 + $0x9f0] sm:$0xff]
        %v526 = vld [vmem:[%s173 + $0x9f8] sm:$0xff]
        %v527 = vld [vmem:[%s173 + $0xa00] sm:$0xff]
        %v528 = vld [vmem:[%s173 + $0xa08] sm:$0xff]
        %v529 = vld [vmem:[%s173 + $0xa10] sm:$0xff]
        %v530 = vld [vmem:[%s173 + $0xa18] sm:$0xff]
        %v531 = vld [vmem:[%s173 + $0xa20] sm:$0xff]
        %v532 = vld [vmem:[%s173 + $0xa28] sm:$0xff]
        %v533 = vld [vmem:[%s173 + $0xa30] sm:$0xff]
        %v534 = vld [vmem:[%s173 + $0xa38] sm:$0xff]
        %v535 = vld [vmem:[%s173 + $0xa40] sm:$0xff]
        %v536 = vld [vmem:[%s173 + $0xa48] sm:$0xff]
        %v537 = vld [vmem:[%s173 + $0xa50] sm:$0xff]
        %v538 = vld [vmem:[%s173 + $0xa58] sm:$0xff]
        %v539 = vld [vmem:[%s173 + $0xa60] sm:$0xff]
        %v540 = vld [vmem:[%s173 + $0xa68] sm:$0xff]
        %v541 = vld [vmem:[%s173 + $0xa70] sm:$0xff]
        %v542 = vld [vmem:[%s173 + $0xa78] sm:$0xff]
        %v543 = vld [vmem:[%s173 + $0xa80] sm:$0xff]
        %v544 = vld [vmem:[%s173 + $0xa88] sm:$0xff]
        %v545 = vld [vmem:[%s173 + $0xa90] sm:$0xff]
        %v546 = vld [vmem:[%s173 + $0xa98] sm:$0xff]
        %v547 = vld [vmem:[%s173 + $0xaa0] sm:$0xff]
        %v548 = vld [vmem:[%s173 + $0xaa8] sm:$0xff]
        %v549 = vld [vmem:[%s173 + $0xab0] sm:$0xff]
        %v550 = vld [vmem:[%s173 + $0xab8] sm:$0xff]
        %v551 = vld [vmem:[%s173 + $0xac0] sm:$0xff]
        %v552 = vld [vmem:[%s173 + $0xac8] sm:$0xff]
        %v553 = vld [vmem:[%s173 + $0xad0] sm:$0xff]
        %v554 = vld [vmem:[%s173 + $0xad8] sm:$0xff]
        %v555 = vld [vmem:[%s173 + $0xae0] sm:$0xff]
        %v556 = vld [vmem:[%s173 + $0xae8] sm:$0xff]
        %v557 = vld [vmem:[%s173 + $0xaf0] sm:$0xff]
        %v558 = vld [vmem:[%s173 + $0xaf8] sm:$0xff]
        %v559 = vld [vmem:[%s173 + $0xb00] sm:$0xff]
        %v560 = vld [vmem:[%s173 + $0xb08] sm:$0xff]
        %v561 = vld [vmem:[%s173 + $0xb10] sm:$0xff]
        %v562 = vld [vmem:[%s173 + $0xb18] sm:$0xff]
        %v563 = vld [vmem:[%s173 + $0xb20] sm:$0xff]
        %v564 = vld [vmem:[%s173 + $0xb28] sm:$0xff]
        %v565 = vld [vmem:[%s173 + $0xb30] sm:$0xff]
        %v566 = vld [vmem:[%s173 + $0xb38] sm:$0xff]
        %v567 = vld [vmem:[%s173 + $0xb40] sm:$0xff]
        %v568 = vld [vmem:[%s173 + $0xb48] sm:$0xff]
        %v569 = vld [vmem:[%s173 + $0xb50] sm:$0xff]
        %v570 = vld [vmem:[%s173 + $0xb58] sm:$0xff]
        %v571 = vld [vmem:[%s173 + $0xb60] sm:$0xff]
        %v572 = vld [vmem:[%s173 + $0xb68] sm:$0xff]
        %v573 = vld [vmem:[%s173 + $0xb70] sm:$0xff]
        %v574 = vld [vmem:[%s173 + $0xb78] sm:$0xff]
        %v575 = vld [vmem:[%s173 + $0xb80] sm:$0xff]
        %v576 = vld [vmem:[%s173 + $0xb88] sm:$0xff]
        %v577 = vld [vmem:[%s173 + $0xb90] sm:$0xff]
        %v578 = vld [vmem:[%s173 + $0xb98] sm:$0xff]
        %v579 = vld [vmem:[%s173 + $0xba0] sm:$0xff]
        %v580 = vld [vmem:[%s173 + $0xba8] sm:$0xff]
        %v581 = vld [vmem:[%s173 + $0xbb0] sm:$0xff]
        %v582 = vld [vmem:[%s173 + $0xbb8] sm:$0xff]
        %v583 = vld [vmem:[%s173 + $0xbc0] sm:$0xff]
        %v584 = vld [vmem:[%s173 + $0xbc8] sm:$0xff]
        %v585 = vld [vmem:[%s173 + $0xbd0] sm:$0xff]
        %v586 = vld [vmem:[%s173 + $0xbd8] sm:$0xff]
        %v587 = vld [vmem:[%s173 + $0xbe0] sm:$0xff]
        %v588 = vld [vmem:[%s173 + $0xbe8] sm:$0xff]
        %v589 = vld [vmem:[%s173 + $0xbf0] sm:$0xff]
        %v590 = vld [vmem:[%s173 + $0xbf8] sm:$0xff]
        %v591 = vld [vmem:[%s173 + $0xc00] sm:$0xff]
        %v592 = vld [vmem:[%s173 + $0xc08] sm:$0xff]
        %v593 = vld [vmem:[%s173 + $0xc10] sm:$0xff]
        %v594 = vld [vmem:[%s173 + $0xc18] sm:$0xff]
        %v595 = vld [vmem:[%s173 + $0xc20] sm:$0xff]
        %v596 = vld [vmem:[%s173 + $0xc28] sm:$0xff]
        %v597 = vld [vmem:[%s173 + $0xc30] sm:$0xff]
        %v598 = vld [vmem:[%s173 + $0xc38] sm:$0xff]
        %v599 = vld [vmem:[%s173 + $0xc40] sm:$0xff]
        %v600 = vld [vmem:[%s173 + $0xc48] sm:$0xff]
        %v601 = vld [vmem:[%s173 + $0xc50] sm:$0xff]
        %v602 = vld [vmem:[%s173 + $0xc58] sm:$0xff]
        %v603 = vld [vmem:[%s173 + $0xc60] sm:$0xff]
        %v604 = vld [vmem:[%s173 + $0xc68] sm:$0xff]
        %v605 = vld [vmem:[%s173 + $0xc70] sm:$0xff]
        %v606 = vld [vmem:[%s173 + $0xc78] sm:$0xff]
        %v607 = vld [vmem:[%s173 + $0xc80] sm:$0xff]
        %v608 = vld [vmem:[%s173 + $0xc88] sm:$0xff]
        %v609 = vld [vmem:[%s173 + $0xc90] sm:$0xff]
        %v610 = vld [vmem:[%s173 + $0xc98] sm:$0xff]
        %v611 = vld [vmem:[%s173 + $0xca0] sm:$0xff]
        %v612 = vld [vmem:[%s173 + $0xca8] sm:$0xff]
        %v613 = vld [vmem:[%s173 + $0xcb0] sm:$0xff]
        %v614 = vld [vmem:[%s173 + $0xcb8] sm:$0xff]
        %v615 = vld [vmem:[%s173 + $0xcc0] sm:$0xff]
        %v616 = vld [vmem:[%s173 + $0xcc8] sm:$0xff]
        %v617 = vld [vmem:[%s173 + $0xcd0] sm:$0xff]
        %v618 = vld [vmem:[%s173 + $0xcd8] sm:$0xff]
        %v619 = vld [vmem:[%s173 + $0xce0] sm:$0xff]
        %v620 = vld [vmem:[%s173 + $0xce8] sm:$0xff]
        %v621 = vld [vmem:[%s173 + $0xcf0] sm:$0xff]
        %v622 = vld [vmem:[%s173 + $0xcf8] sm:$0xff]
        %v623 = vld [vmem:[%s173 + $0xd00] sm:$0xff]
        %v624 = vld [vmem:[%s173 + $0xd08] sm:$0xff]
        %v625 = vld [vmem:[%s173 + $0xd10] sm:$0xff]
        %v626 = vld [vmem:[%s173 + $0xd18] sm:$0xff]
        %v627 = vld [vmem:[%s173 + $0xd20] sm:$0xff]
        %v628 = vld [vmem:[%s173 + $0xd28] sm:$0xff]
        %v629 = vld [vmem:[%s173 + $0xd30] sm:$0xff]
        %v630 = vld [vmem:[%s173 + $0xd38] sm:$0xff]
        %v631 = vld [vmem:[%s173 + $0xd40] sm:$0xff]
        %v632 = vld [vmem:[%s173 + $0xd48] sm:$0xff]
        %v633 = vld [vmem:[%s173 + $0xd50] sm:$0xff]
        %v634 = vld [vmem:[%s173 + $0xd58] sm:$0xff]
        %v635 = vld [vmem:[%s173 + $0xd60] sm:$0xff]
        %v636 = vld [vmem:[%s173 + $0xd68] sm:$0xff]
        %v637 = vld [vmem:[%s173 + $0xd70] sm:$0xff]
        %v638 = vld [vmem:[%s173 + $0xd78] sm:$0xff]
        %v639 = vld [vmem:[%s173 + $0xd80] sm:$0xff]
        %v640 = vld [vmem:[%s173 + $0xd88] sm:$0xff]
        %v641 = vld [vmem:[%s173 + $0xd90] sm:$0xff]
        %v642 = vld [vmem:[%s173 + $0xd98] sm:$0xff]
        %v643 = vld [vmem:[%s173 + $0xda0] sm:$0xff]
        %v644 = vld [vmem:[%s173 + $0xda8] sm:$0xff]
        %v645 = vld [vmem:[%s173 + $0xdb0] sm:$0xff]
        %v646 = vld [vmem:[%s173 + $0xdb8] sm:$0xff]
        %v647 = vld [vmem:[%s173 + $0xdc0] sm:$0xff]
        %v648 = vld [vmem:[%s173 + $0xdc8] sm:$0xff]
        %v649 = vld [vmem:[%s173 + $0xdd0] sm:$0xff]
        %v650 = vld [vmem:[%s173 + $0xdd8] sm:$0xff]
        %v651 = vld [vmem:[%s173 + $0xde0] sm:$0xff]
        %v652 = vld [vmem:[%s173 + $0xde8] sm:$0xff]
        %v653 = vld [vmem:[%s173 + $0xdf0] sm:$0xff]
        %v654 = vld [vmem:[%s173 + $0xdf8] sm:$0xff]
        %v655 = vld [vmem:[%s173 + $0xe00] sm:$0xff]
        %v656 = vld [vmem:[%s173 + $0xe08] sm:$0xff]
        %v657 = vld [vmem:[%s173 + $0xe10] sm:$0xff]
        %v658 = vld [vmem:[%s173 + $0xe18] sm:$0xff]
        %v659 = vld [vmem:[%s173 + $0xe20] sm:$0xff]
        %v660 = vld [vmem:[%s173 + $0xe28] sm:$0xff]
        %v661 = vld [vmem:[%s173 + $0xe30] sm:$0xff]
        %v662 = vld [vmem:[%s173 + $0xe38] sm:$0xff]
        %v663 = vld [vmem:[%s173 + $0xe40] sm:$0xff]
        %v664 = vld [vmem:[%s173 + $0xe48] sm:$0xff]
        %v665 = vld [vmem:[%s173 + $0xe50] sm:$0xff]
        %v666 = vld [vmem:[%s173 + $0xe58] sm:$0xff]
        %v667 = vld [vmem:[%s173 + $0xe60] sm:$0xff]
        %v668 = vld [vmem:[%s173 + $0xe68] sm:$0xff]
        %v669 = vld [vmem:[%s173 + $0xe70] sm:$0xff]
        %v670 = vld [vmem:[%s173 + $0xe78] sm:$0xff]
        %v671 = vld [vmem:[%s173 + $0xe80] sm:$0xff]
        %v672 = vld [vmem:[%s173 + $0xe88] sm:$0xff]
        %v673 = vld [vmem:[%s173 + $0xe90] sm:$0xff]
        %v674 = vld [vmem:[%s173 + $0xe98] sm:$0xff]
        %v675 = vld [vmem:[%s173 + $0xea0] sm:$0xff]
        %v676 = vld [vmem:[%s173 + $0xea8] sm:$0xff]
        %v677 = vld [vmem:[%s173 + $0xeb0] sm:$0xff]
        %v678 = vld [vmem:[%s173 + $0xeb8] sm:$0xff]
        %v679 = vld [vmem:[%s173 + $0xec0] sm:$0xff]
        %v680 = vld [vmem:[%s173 + $0xec8] sm:$0xff]
        %v681 = vld [vmem:[%s173 + $0xed0] sm:$0xff]
        %v682 = vld [vmem:[%s173 + $0xed8] sm:$0xff]
        %v683 = vld [vmem:[%s173 + $0xee0] sm:$0xff]
        %v684 = vld [vmem:[%s173 + $0xee8] sm:$0xff]
        %v685 = vld [vmem:[%s173 + $0xef0] sm:$0xff]
        %v686 = vld [vmem:[%s173 + $0xef8] sm:$0xff]
        %v687 = vld [vmem:[%s173 + $0xf00] sm:$0xff]
        %v688 = vld [vmem:[%s173 + $0xf08] sm:$0xff]
        %v689 = vld [vmem:[%s173 + $0xf10] sm:$0xff]
        %v690 = vld [vmem:[%s173 + $0xf18] sm:$0xff]
        %v691 = vld [vmem:[%s173 + $0xf20] sm:$0xff]
        %v692 = vld [vmem:[%s173 + $0xf28] sm:$0xff]
        %v693 = vld [vmem:[%s173 + $0xf30] sm:$0xff]
        %v694 = vld [vmem:[%s173 + $0xf38] sm:$0xff]
        %v695 = vld [vmem:[%s173 + $0xf40] sm:$0xff]
        %v696 = vld [vmem:[%s173 + $0xf48] sm:$0xff]
        %v697 = vld [vmem:[%s173 + $0xf50] sm:$0xff]
        %v698 = vld [vmem:[%s173 + $0xf58] sm:$0xff]
        %v699 = vld [vmem:[%s173 + $0xf60] sm:$0xff]
        %v700 = vld [vmem:[%s173 + $0xf68] sm:$0xff]
        %v701 = vld [vmem:[%s173 + $0xf70] sm:$0xff]
        %v702 = vld [vmem:[%s173 + $0xf78] sm:$0xff]
        %v703 = vld [vmem:[%s173 + $0xf80] sm:$0xff]
        %v704 = vld [vmem:[%s173 + $0xf88] sm:$0xff]
        %v705 = vld [vmem:[%s173 + $0xf90] sm:$0xff]
        %v706 = vld [vmem:[%s173 + $0xf98] sm:$0xff]
        %v707 = vld [vmem:[%s173 + $0xfa0] sm:$0xff]
        %v708 = vld [vmem:[%s173 + $0xfa8] sm:$0xff]
        %v709 = vld [vmem:[%s173 + $0xfb0] sm:$0xff]
        %v710 = vld [vmem:[%s173 + $0xfb8] sm:$0xff]
        %v711 = vld [vmem:[%s173 + $0xfc0] sm:$0xff]
        %v712 = vld [vmem:[%s173 + $0xfc8] sm:$0xff]
        %v713 = vld [vmem:[%s173 + $0xfd0] sm:$0xff]
        %v714 = vld [vmem:[%s173 + $0xfd8] sm:$0xff]
        %v715 = vld [vmem:[%s173 + $0xfe0] sm:$0xff]
        %v716 = vld [vmem:[%s173 + $0xfe8] sm:$0xff]
        %v717 = vld [vmem:[%s173 + $0xff0] sm:$0xff]
        %v718 = vld [vmem:[%s173 + $0xff8] sm:$0xff]
        %v719 = vld [vmem:[%s173 + $0x1000] sm:$0xff]
        %v720 = vld [vmem:[%s173 + $0x1008] sm:$0xff]
        %v721 = vld [vmem:[%s173 + $0x1010] sm:$0xff]
        %v722 = vld [vmem:[%s173 + $0x1018] sm:$0xff]
        %v723 = vld [vmem:[%s173 + $0x1020] sm:$0xff]
        %v724 = vld [vmem:[%s173 + $0x1028] sm:$0xff]
        %v725 = vld [vmem:[%s173 + $0x1030] sm:$0xff]
        %v726 = vld [vmem:[%s173 + $0x1038] sm:$0xff]
        %v727 = vld [vmem:[%s173 + $0x1040] sm:$0xff]
        %v728 = vld [vmem:[%s173 + $0x1048] sm:$0xff]
        %v729 = vld [vmem:[%s173 + $0x1050] sm:$0xff]
        %v730 = vld [vmem:[%s173 + $0x1058] sm:$0xff]
        %v731 = vld [vmem:[%s173 + $0x1060] sm:$0xff]
        %v732 = vld [vmem:[%s173 + $0x1068] sm:$0xff]
        %v733 = vld [vmem:[%s173 + $0x1070] sm:$0xff]
        %v734 = vld [vmem:[%s173 + $0x1078] sm:$0xff]
        %v735 = vld [vmem:[%s173 + $0x1080] sm:$0xff]
        %v736 = vld [vmem:[%s173 + $0x1088] sm:$0xff]
        %v737 = vld [vmem:[%s173 + $0x1090] sm:$0xff]
        %v738 = vld [vmem:[%s173 + $0x1098] sm:$0xff]
        %v739 = vld [vmem:[%s173 + $0x10a0] sm:$0xff]
        %v740 = vld [vmem:[%s173 + $0x10a8] sm:$0xff]
        %v741 = vld [vmem:[%s173 + $0x10b0] sm:$0xff]
        %v742 = vld [vmem:[%s173 + $0x10b8] sm:$0xff]
        %v743 = vld [vmem:[%s173 + $0x10c0] sm:$0xff]
        %v744 = vld [vmem:[%s173 + $0x10c8] sm:$0xff]
        %v745 = vld [vmem:[%s173 + $0x10d0] sm:$0xff]
        %v746 = vld [vmem:[%s173 + $0x10d8] sm:$0xff]
        %v747 = vld [vmem:[%s173 + $0x10e0] sm:$0xff]
        %v748 = vld [vmem:[%s173 + $0x10e8] sm:$0xff]
        %v749 = vld [vmem:[%s173 + $0x10f0] sm:$0xff]
        %v750 = vld [vmem:[%s173 + $0x10f8] sm:$0xff]
        %v751 = vld [vmem:[%s173 + $0x1100] sm:$0xff]
        %v752 = vld [vmem:[%s173 + $0x1108] sm:$0xff]
        %v753 = vld [vmem:[%s173 + $0x1110] sm:$0xff]
        %v754 = vld [vmem:[%s173 + $0x1118] sm:$0xff]
        %v755 = vld [vmem:[%s173 + $0x1120] sm:$0xff]
        %v756 = vld [vmem:[%s173 + $0x1128] sm:$0xff]
        %v757 = vld [vmem:[%s173 + $0x1130] sm:$0xff]
        %v758 = vld [vmem:[%s173 + $0x1138] sm:$0xff]
        %v759 = vld [vmem:[%s173 + $0x1140] sm:$0xff]
        %v760 = vld [vmem:[%s173 + $0x1148] sm:$0xff]
        %v761 = vld [vmem:[%s173 + $0x1150] sm:$0xff]
        %v762 = vld [vmem:[%s173 + $0x1158] sm:$0xff]
        %v763 = vld [vmem:[%s173 + $0x1160] sm:$0xff]
        %v764 = vld [vmem:[%s173 + $0x1168] sm:$0xff]
        %v765 = vld [vmem:[%s173 + $0x1170] sm:$0xff]
        %v766 = vld [vmem:[%s173 + $0x1178] sm:$0xff]
        %v767 = vld [vmem:[%s173 + $0x1180] sm:$0xff]
        %v768 = vld [vmem:[%s173 + $0x1188] sm:$0xff]
        %v769 = vld [vmem:[%s173 + $0x1190] sm:$0xff]
        %v770 = vld [vmem:[%s173 + $0x1198] sm:$0xff]
        %v771 = vld [vmem:[%s173 + $0x11a0] sm:$0xff]
        %v772 = vld [vmem:[%s173 + $0x11a8] sm:$0xff]
        %v773 = vld [vmem:[%s173 + $0x11b0] sm:$0xff]
        %v774 = vld [vmem:[%s173 + $0x11b8] sm:$0xff]
        %v775 = vld [vmem:[%s173 + $0x11c0] sm:$0xff]
        %v776 = vld [vmem:[%s173 + $0x11c8] sm:$0xff]
        %v777 = vld [vmem:[%s173 + $0x11d0] sm:$0xff]
        %v778 = vld [vmem:[%s173 + $0x11d8] sm:$0xff]
        %v779 = vld [vmem:[%s173 + $0x11e0] sm:$0xff]
        %v780 = vld [vmem:[%s173 + $0x11e8] sm:$0xff]
        %v781 = vld [vmem:[%s173 + $0x11f0] sm:$0xff]
        %v782 = vld [vmem:[%s173 + $0x11f8] sm:$0xff]
        %v783 = vld [vmem:[%s173 + $0x1200] sm:$0xff]
        %v784 = vld [vmem:[%s173 + $0x1208] sm:$0xff]
        %v785 = vld [vmem:[%s173 + $0x1210] sm:$0xff]
        %v786 = vld [vmem:[%s173 + $0x1218] sm:$0xff]
        %v787 = vld [vmem:[%s173 + $0x1220] sm:$0xff]
        %v788 = vld [vmem:[%s173 + $0x1228] sm:$0xff]
        %v789 = vld [vmem:[%s173 + $0x1230] sm:$0xff]
        %v790 = vld [vmem:[%s173 + $0x1238] sm:$0xff]
        %v791 = vld [vmem:[%s173 + $0x1240] sm:$0xff]
        %v792 = vld [vmem:[%s173 + $0x1248] sm:$0xff]
        %v793 = vld [vmem:[%s173 + $0x1250] sm:$0xff]
        %v794 = vld [vmem:[%s173 + $0x1258] sm:$0xff]
        %v795 = vld [vmem:[%s173 + $0x1260] sm:$0xff]
        %v796 = vld [vmem:[%s173 + $0x1268] sm:$0xff]
        %v797 = vld [vmem:[%s173 + $0x1270] sm:$0xff]
        %v798 = vld [vmem:[%s173 + $0x1278] sm:$0xff]
        %v799 = vld [vmem:[%s173 + $0x1280] sm:$0xff]
        %v800 = vld [vmem:[%s173 + $0x1288] sm:$0xff]
        %v801 = vld [vmem:[%s173 + $0x1290] sm:$0xff]
        %v802 = vld [vmem:[%s173 + $0x1298] sm:$0xff]
        %v803 = vld [vmem:[%s173 + $0x12a0] sm:$0xff]
        %v804 = vld [vmem:[%s173 + $0x12a8] sm:$0xff]
        %v805 = vld [vmem:[%s173 + $0x12b0] sm:$0xff]
        %v806 = vld [vmem:[%s173 + $0x12b8] sm:$0xff]
        %v807 = vld [vmem:[%s173 + $0x12c0] sm:$0xff]
        %v808 = vld [vmem:[%s173 + $0x12c8] sm:$0xff]
        %v809 = vld [vmem:[%s173 + $0x12d0] sm:$0xff]
        %v810 = vld [vmem:[%s173 + $0x12d8] sm:$0xff]
        %v811 = vld [vmem:[%s173 + $0x12e0] sm:$0xff]
        %v812 = vld [vmem:[%s173 + $0x12e8] sm:$0xff]
        %v813 = vld [vmem:[%s173 + $0x12f0] sm:$0xff]
        %v814 = vld [vmem:[%s173 + $0x12f8] sm:$0xff]
        %v815 = vld [vmem:[%s173 + $0x1300] sm:$0xff]
        %v816 = vld [vmem:[%s173 + $0x1308] sm:$0xff]
        %v817 = vld [vmem:[%s173 + $0x1310] sm:$0xff]
        %v818 = vld [vmem:[%s173 + $0x1318] sm:$0xff]
        %v819 = vld [vmem:[%s173 + $0x1320] sm:$0xff]
        %v820 = vld [vmem:[%s173 + $0x1328] sm:$0xff]
        %v821 = vld [vmem:[%s173 + $0x1330] sm:$0xff]
        %v822 = vld [vmem:[%s173 + $0x1338] sm:$0xff]
        %v823 = vld [vmem:[%s173 + $0x1340] sm:$0xff]
        %v824 = vld [vmem:[%s173 + $0x1348] sm:$0xff]
        %v825 = vld [vmem:[%s173 + $0x1350] sm:$0xff]
        %v826 = vld [vmem:[%s173 + $0x1358] sm:$0xff]
        %v827 = vld [vmem:[%s173 + $0x1360] sm:$0xff]
        %v828 = vld [vmem:[%s173 + $0x1368] sm:$0xff]
        %v829 = vld [vmem:[%s173 + $0x1370] sm:$0xff]
        %v830 = vld [vmem:[%s173 + $0x1378] sm:$0xff]
        %v831 = vld [vmem:[%s173 + $0x1380] sm:$0xff]
        %v832 = vld [vmem:[%s173 + $0x1388] sm:$0xff]
        %v833 = vld [vmem:[%s173 + $0x1390] sm:$0xff]
        %v834 = vld [vmem:[%s173 + $0x1398] sm:$0xff]
        %v835 = vld [vmem:[%s173 + $0x13a0] sm:$0xff]
        %v836 = vld [vmem:[%s173 + $0x13a8] sm:$0xff]
        %v837 = vld [vmem:[%s173 + $0x13b0] sm:$0xff]
        %v838 = vld [vmem:[%s173 + $0x13b8] sm:$0xff]
        %v839 = vld [vmem:[%s173 + $0x13c0] sm:$0xff]
        %v840 = vld [vmem:[%s173 + $0x13c8] sm:$0xff]
        %v841 = vld [vmem:[%s173 + $0x13d0] sm:$0xff]
        %v842 = vld [vmem:[%s173 + $0x13d8] sm:$0xff]
        %v843 = vld [vmem:[%s173 + $0x13e0] sm:$0xff]
        %v844 = vld [vmem:[%s173 + $0x13e8] sm:$0xff]
        %v845 = vld [vmem:[%s173 + $0x13f0] sm:$0xff]
        %v846 = vld [vmem:[%s173 + $0x13f8] sm:$0xff]
        %v847 = vld [vmem:[%s173 + $0x1400] sm:$0xff]
        %v848 = vld [vmem:[%s173 + $0x1408] sm:$0xff]
        %v849 = vld [vmem:[%s173 + $0x1410] sm:$0xff]
        %v850 = vld [vmem:[%s173 + $0x1418] sm:$0xff]
        %v851 = vld [vmem:[%s173 + $0x1420] sm:$0xff]
        %v852 = vld [vmem:[%s173 + $0x1428] sm:$0xff]
        %v853 = vld [vmem:[%s173 + $0x1430] sm:$0xff]
        %v854 = vld [vmem:[%s173 + $0x1438] sm:$0xff]
        %v855 = vld [vmem:[%s173 + $0x1440] sm:$0xff]
        %v856 = vld [vmem:[%s173 + $0x1448] sm:$0xff]
        %v857 = vld [vmem:[%s173 + $0x1450] sm:$0xff]
        %v858 = vld [vmem:[%s173 + $0x1458] sm:$0xff]
        %v859 = vld [vmem:[%s173 + $0x1460] sm:$0xff]
        %v860 = vld [vmem:[%s173 + $0x1468] sm:$0xff]
        %v861 = vld [vmem:[%s173 + $0x1470] sm:$0xff]
        %v862 = vld [vmem:[%s173 + $0x1478] sm:$0xff]
        %v863 = vld [vmem:[%s173 + $0x1480] sm:$0xff]
        %v864 = vld [vmem:[%s173 + $0x1488] sm:$0xff]
        %v865 = vld [vmem:[%s173 + $0x1490] sm:$0xff]
        %v866 = vld [vmem:[%s173 + $0x1498] sm:$0xff]
        %v867 = vld [vmem:[%s173 + $0x14a0] sm:$0xff]
        %v868 = vld [vmem:[%s173 + $0x14a8] sm:$0xff]
        %v869 = vld [vmem:[%s173 + $0x14b0] sm:$0xff]
        %v870 = vld [vmem:[%s173 + $0x14b8] sm:$0xff]
        %v871 = vld [vmem:[%s173 + $0x14c0] sm:$0xff]
        %v872 = vld [vmem:[%s173 + $0x14c8] sm:$0xff]
        %v873 = vld [vmem:[%s173 + $0x14d0] sm:$0xff]
        %v874 = vld [vmem:[%s173 + $0x14d8] sm:$0xff]
        %v875 = vld [vmem:[%s173 + $0x14e0] sm:$0xff]
        %v876 = vld [vmem:[%s173 + $0x14e8] sm:$0xff]
        %v877 = vld [vmem:[%s173 + $0x14f0] sm:$0xff]
        %v878 = vld [vmem:[%s173 + $0x14f8] sm:$0xff]
        %v879 = vld [vmem:[%s173 + $0x1500] sm:$0xff]
        %v880 = vld [vmem:[%s173 + $0x1508] sm:$0xff]
        %v881 = vld [vmem:[%s173 + $0x1510] sm:$0xff]
        %v882 = vld [vmem:[%s173 + $0x1518] sm:$0xff]
        %v883 = vld [vmem:[%s173 + $0x1520] sm:$0xff]
        %v884 = vld [vmem:[%s173 + $0x1528] sm:$0xff]
        %v885 = vld [vmem:[%s173 + $0x1530] sm:$0xff]
        %v886 = vld [vmem:[%s173 + $0x1538] sm:$0xff]
        %v887 = vld [vmem:[%s173 + $0x1540] sm:$0xff]
        %v888 = vld [vmem:[%s173 + $0x1548] sm:$0xff]
        %v889 = vld [vmem:[%s173 + $0x1550] sm:$0xff]
        %v890 = vld [vmem:[%s173 + $0x1558] sm:$0xff]
        %v891 = vld [vmem:[%s173 + $0x1560] sm:$0xff]
        %v892 = vld [vmem:[%s173 + $0x1568] sm:$0xff]
        %v893 = vld [vmem:[%s173 + $0x1570] sm:$0xff]
        %v894 = vld [vmem:[%s173 + $0x1578] sm:$0xff]
        %v895 = vld [vmem:[%s173 + $0x1580] sm:$0xff]
        %v896 = vld [vmem:[%s173 + $0x1588] sm:$0xff]
        %v897 = vld [vmem:[%s173 + $0x1590] sm:$0xff]
        %v898 = vld [vmem:[%s173 + $0x1598] sm:$0xff]
        %v899 = vld [vmem:[%s173 + $0x15a0] sm:$0xff]
        %v900 = vld [vmem:[%s173 + $0x15a8] sm:$0xff]
        %v901 = vld [vmem:[%s173 + $0x15b0] sm:$0xff]
        %v902 = vld [vmem:[%s173 + $0x15b8] sm:$0xff]
        %v903 = vld [vmem:[%s173 + $0x15c0] sm:$0xff]
        %v904 = vld [vmem:[%s173 + $0x15c8] sm:$0xff]
        %v905 = vld [vmem:[%s173 + $0x15d0] sm:$0xff]
        %v906 = vld [vmem:[%s173 + $0x15d8] sm:$0xff]
        %v907 = vld [vmem:[%s173 + $0x15e0] sm:$0xff]
        %v908 = vld [vmem:[%s173 + $0x15e8] sm:$0xff]
        %v909 = vld [vmem:[%s173 + $0x15f0] sm:$0xff]
        %v910 = vld [vmem:[%s173 + $0x15f8] sm:$0xff]
        %v911 = vld [vmem:[%s173 + $0x1600] sm:$0xff]
        %v912 = vld [vmem:[%s173 + $0x1608] sm:$0xff]
        %v913 = vld [vmem:[%s173 + $0x1610] sm:$0xff]
        %v914 = vld [vmem:[%s173 + $0x1618] sm:$0xff]
        %v915 = vld [vmem:[%s173 + $0x1620] sm:$0xff]
        %v916 = vld [vmem:[%s173 + $0x1628] sm:$0xff]
        %v917 = vld [vmem:[%s173 + $0x1630] sm:$0xff]
        %v918 = vld [vmem:[%s173 + $0x1638] sm:$0xff]
        %v919 = vld [vmem:[%s173 + $0x1640] sm:$0xff]
        %v920 = vld [vmem:[%s173 + $0x1648] sm:$0xff]
        %v921 = vld [vmem:[%s173 + $0x1650] sm:$0xff]
        %v922 = vld [vmem:[%s173 + $0x1658] sm:$0xff]
        %v923 = vld [vmem:[%s173 + $0x1660] sm:$0xff]
        %v924 = vld [vmem:[%s173 + $0x1668] sm:$0xff]
        %v925 = vld [vmem:[%s173 + $0x1670] sm:$0xff]
        %v926 = vld [vmem:[%s173 + $0x1678] sm:$0xff]
        %v927 = vld [vmem:[%s173 + $0x1680] sm:$0xff]
        %v928 = vld [vmem:[%s173 + $0x1688] sm:$0xff]
        %v929 = vld [vmem:[%s173 + $0x1690] sm:$0xff]
        %v930 = vld [vmem:[%s173 + $0x1698] sm:$0xff]
        %v931 = vld [vmem:[%s173 + $0x16a0] sm:$0xff]
        %v932 = vld [vmem:[%s173 + $0x16a8] sm:$0xff]
        %v933 = vld [vmem:[%s173 + $0x16b0] sm:$0xff]
        %v934 = vld [vmem:[%s173 + $0x16b8] sm:$0xff]
        %v935 = vld [vmem:[%s173 + $0x16c0] sm:$0xff]
        %v936 = vld [vmem:[%s173 + $0x16c8] sm:$0xff]
        %v937 = vld [vmem:[%s173 + $0x16d0] sm:$0xff]
        %v938 = vld [vmem:[%s173 + $0x16d8] sm:$0xff]
        %v939 = vld [vmem:[%s173 + $0x16e0] sm:$0xff]
        %v940 = vld [vmem:[%s173 + $0x16e8] sm:$0xff]
        %v941 = vld [vmem:[%s173 + $0x16f0] sm:$0xff]
        %v942 = vld [vmem:[%s173 + $0x16f8] sm:$0xff]
        %v943 = vld [vmem:[%s173 + $0x1700] sm:$0xff]
        %v944 = vld [vmem:[%s173 + $0x1708] sm:$0xff]
        %v945 = vld [vmem:[%s173 + $0x1710] sm:$0xff]
        %v946 = vld [vmem:[%s173 + $0x1718] sm:$0xff]
        %v947 = vld [vmem:[%s173 + $0x1720] sm:$0xff]
        %v948 = vld [vmem:[%s173 + $0x1728] sm:$0xff]
        %v949 = vld [vmem:[%s173 + $0x1730] sm:$0xff]
        %v950 = vld [vmem:[%s173 + $0x1738] sm:$0xff]
        %v951 = vld [vmem:[%s173 + $0x1740] sm:$0xff]
        %v952 = vld [vmem:[%s173 + $0x1748] sm:$0xff]
        %v953 = vld [vmem:[%s173 + $0x1750] sm:$0xff]
        %v954 = vld [vmem:[%s173 + $0x1758] sm:$0xff]
        %v955 = vld [vmem:[%s173 + $0x1760] sm:$0xff]
        %v956 = vld [vmem:[%s173 + $0x1768] sm:$0xff]
        %v957 = vld [vmem:[%s173 + $0x1770] sm:$0xff]
        %v958 = vld [vmem:[%s173 + $0x1778] sm:$0xff]
        %v959 = vld [vmem:[%s173 + $0x1780] sm:$0xff]
        %v960 = vld [vmem:[%s173 + $0x1788] sm:$0xff]
        %v961 = vld [vmem:[%s173 + $0x1790] sm:$0xff]
        %v962 = vld [vmem:[%s173 + $0x1798] sm:$0xff]
        %v963 = vld [vmem:[%s173 + $0x17a0] sm:$0xff]
        %v964 = vld [vmem:[%s173 + $0x17a8] sm:$0xff]
        %v965 = vld [vmem:[%s173 + $0x17b0] sm:$0xff]
        %v966 = vld [vmem:[%s173 + $0x17b8] sm:$0xff]
        %v967 = vld [vmem:[%s173 + $0x17c0] sm:$0xff]
        %v968 = vld [vmem:[%s173 + $0x17c8] sm:$0xff]
        %v969 = vld [vmem:[%s173 + $0x17d0] sm:$0xff]
        %v970 = vld [vmem:[%s173 + $0x17d8] sm:$0xff]
        %v971 = vld [vmem:[%s173 + $0x17e0] sm:$0xff]
        %v972 = vld [vmem:[%s173 + $0x17e8] sm:$0xff]
        %v973 = vld [vmem:[%s173 + $0x17f0] sm:$0xff]
        %v974 = vld [vmem:[%s173 + $0x17f8] sm:$0xff]
        %v975 = vld [vmem:[%s173 + $0x1800] sm:$0xff]
        %v976 = vld [vmem:[%s173 + $0x1808] sm:$0xff]
        %v977 = vld [vmem:[%s173 + $0x1810] sm:$0xff]
        %v978 = vld [vmem:[%s173 + $0x1818] sm:$0xff]
        %v979 = vld [vmem:[%s173 + $0x1820] sm:$0xff]
        %v980 = vld [vmem:[%s173 + $0x1828] sm:$0xff]
        %v981 = vld [vmem:[%s173 + $0x1830] sm:$0xff]
        %v982 = vld [vmem:[%s173 + $0x1838] sm:$0xff]
        %v983 = vld [vmem:[%s173 + $0x1840] sm:$0xff]
        %v984 = vld [vmem:[%s173 + $0x1848] sm:$0xff]
        %v985 = vld [vmem:[%s173 + $0x1850] sm:$0xff]
        %v986 = vld [vmem:[%s173 + $0x1858] sm:$0xff]
        %v987 = vld [vmem:[%s173 + $0x1860] sm:$0xff]
        %v988 = vld [vmem:[%s173 + $0x1868] sm:$0xff]
        %v989 = vld [vmem:[%s173 + $0x1870] sm:$0xff]
        %v990 = vld [vmem:[%s173 + $0x1878] sm:$0xff]
        %v991 = vld [vmem:[%s173 + $0x1880] sm:$0xff]
        %v992 = vld [vmem:[%s173 + $0x1888] sm:$0xff]
        %v993 = vld [vmem:[%s173 + $0x1890] sm:$0xff]
        %v994 = vld [vmem:[%s173 + $0x1898] sm:$0xff]
        %v995 = vld [vmem:[%s173 + $0x18a0] sm:$0xff]
        %v996 = vld [vmem:[%s173 + $0x18a8] sm:$0xff]
        %v997 = vld [vmem:[%s173 + $0x18b0] sm:$0xff]
        %v998 = vld [vmem:[%s173 + $0x18b8] sm:$0xff]
        %v999 = vld [vmem:[%s173 + $0x18c0] sm:$0xff]
        %v1000 = vld [vmem:[%s173 + $0x18c8] sm:$0xff]
        %v1001 = vld [vmem:[%s173 + $0x18d0] sm:$0xff]
        %v1002 = vld [vmem:[%s173 + $0x18d8] sm:$0xff]
        %v1003 = vld [vmem:[%s173 + $0x18e0] sm:$0xff]
        %v1004 = vld [vmem:[%s173 + $0x18e8] sm:$0xff]
        %v1005 = vld [vmem:[%s173 + $0x18f0] sm:$0xff]
        %v1006 = vld [vmem:[%s173 + $0x18f8] sm:$0xff]
        %v1007 = vld [vmem:[%s173 + $0x1900] sm:$0xff]
        %v1008 = vld [vmem:[%s173 + $0x1908] sm:$0xff]
        %v1009 = vld [vmem:[%s173 + $0x1910] sm:$0xff]
        %v1010 = vld [vmem:[%s173 + $0x1918] sm:$0xff]
        %v1011 = vld [vmem:[%s173 + $0x1920] sm:$0xff]
        %v1012 = vld [vmem:[%s173 + $0x1928] sm:$0xff]
        %v1013 = vld [vmem:[%s173 + $0x1930] sm:$0xff]
        %v1014 = vld [vmem:[%s173 + $0x1938] sm:$0xff]
        %v1015 = vld [vmem:[%s173 + $0x1940] sm:$0xff]
        %v1016 = vld [vmem:[%s173 + $0x1948] sm:$0xff]
        %v1017 = vld [vmem:[%s173 + $0x1950] sm:$0xff]
        %v1018 = vld [vmem:[%s173 + $0x1958] sm:$0xff]
        %v1019 = vld [vmem:[%s173 + $0x1960] sm:$0xff]
        %v1020 = vld [vmem:[%s173 + $0x1968] sm:$0xff]
        %v1021 = vld [vmem:[%s173 + $0x1970] sm:$0xff]
        %v1022 = vld [vmem:[%s173 + $0x1978] sm:$0xff]
        %v1023 = vld [vmem:[%s173 + $0x1980] sm:$0xff]
        %v1024 = vld [vmem:[%s173 + $0x1988] sm:$0xff]
        %v1025 = vld [vmem:[%s173 + $0x1990] sm:$0xff]
        %v1026 = vld [vmem:[%s173 + $0x1998] sm:$0xff]
        %v1027 = vld [vmem:[%s173 + $0x19a0] sm:$0xff]
        %v1028 = vld [vmem:[%s173 + $0x19a8] sm:$0xff]
        %v1029 = vld [vmem:[%s173 + $0x19b0] sm:$0xff]
        %v1030 = vld [vmem:[%s173 + $0x19b8] sm:$0xff]
        %v1031 = vld [vmem:[%s173 + $0x19c0] sm:$0xff]
        %v1032 = vld [vmem:[%s173 + $0x19c8] sm:$0xff]
        %v1033 = vld [vmem:[%s173 + $0x19d0] sm:$0xff]
        %v1034 = vld [vmem:[%s173 + $0x19d8] sm:$0xff]
        %v1035 = vld [vmem:[%s173 + $0x19e0] sm:$0xff]
        %v1036 = vld [vmem:[%s173 + $0x19e8] sm:$0xff]
        %v1037 = vld [vmem:[%s173 + $0x19f0] sm:$0xff]
        %v1038 = vld [vmem:[%s173 + $0x19f8] sm:$0xff]
        %v1039 = vld [vmem:[%s173 + $0x1a00] sm:$0xff]
        %v1040 = vld [vmem:[%s173 + $0x1a08] sm:$0xff]
        %v1041 = vld [vmem:[%s173 + $0x1a10] sm:$0xff]
        %v1042 = vld [vmem:[%s173 + $0x1a18] sm:$0xff]
        %v1043 = vld [vmem:[%s173 + $0x1a20] sm:$0xff]
        %v1044 = vld [vmem:[%s173 + $0x1a28] sm:$0xff]
        %v1045 = vld [vmem:[%s173 + $0x1a30] sm:$0xff]
        %v1046 = vld [vmem:[%s173 + $0x1a38] sm:$0xff]
        %v1047 = vld [vmem:[%s173 + $0x1a40] sm:$0xff]
        %v1048 = vld [vmem:[%s173 + $0x1a48] sm:$0xff]
        %v1049 = vld [vmem:[%s173 + $0x1a50] sm:$0xff]
        %v1050 = vld [vmem:[%s173 + $0x1a58] sm:$0xff]
        %v1051 = vld [vmem:[%s173 + $0x1a60] sm:$0xff]
        %v1052 = vld [vmem:[%s173 + $0x1a68] sm:$0xff]
        %v1053 = vld [vmem:[%s173 + $0x1a70] sm:$0xff]
        %v1054 = vld [vmem:[%s173 + $0x1a78] sm:$0xff]
        %v1055 = vld [vmem:[%s173 + $0x1a80] sm:$0xff]
        %v1056 = vld [vmem:[%s173 + $0x1a88] sm:$0xff]
        %v1057 = vld [vmem:[%s173 + $0x1a90] sm:$0xff]
        %v1058 = vld [vmem:[%s173 + $0x1a98] sm:$0xff]
        %v1059 = vld [vmem:[%s173 + $0x1aa0] sm:$0xff]
        %v1060 = vld [vmem:[%s173 + $0x1aa8] sm:$0xff]
        %v1061 = vld [vmem:[%s173 + $0x1ab0] sm:$0xff]
        %v1062 = vld [vmem:[%s173 + $0x1ab8] sm:$0xff]
        %v1063 = vld [vmem:[%s173 + $0x1ac0] sm:$0xff]
        %v1064 = vld [vmem:[%s173 + $0x1ac8] sm:$0xff]
        %v1065 = vld [vmem:[%s173 + $0x1ad0] sm:$0xff]
        %v1066 = vld [vmem:[%s173 + $0x1ad8] sm:$0xff]
        %v1067 = vld [vmem:[%s173 + $0x1ae0] sm:$0xff]
        %v1068 = vld [vmem:[%s173 + $0x1ae8] sm:$0xff]
        %v1069 = vld [vmem:[%s173 + $0x1af0] sm:$0xff]
        %v1070 = vld [vmem:[%s173 + $0x1af8] sm:$0xff]
        %v1071 = vld [vmem:[%s173 + $0x1b00] sm:$0xff]
        %v1072 = vld [vmem:[%s173 + $0x1b08] sm:$0xff]
        %v1073 = vld [vmem:[%s173 + $0x1b10] sm:$0xff]
        %v1074 = vld [vmem:[%s173 + $0x1b18] sm:$0xff]
        %v1075 = vld [vmem:[%s173 + $0x1b20] sm:$0xff]
        %v1076 = vld [vmem:[%s173 + $0x1b28] sm:$0xff]
        %v1077 = vld [vmem:[%s173 + $0x1b30] sm:$0xff]
        %v1078 = vld [vmem:[%s173 + $0x1b38] sm:$0xff]
        %v1079 = vld [vmem:[%s173 + $0x1b40] sm:$0xff]
        %v1080 = vld [vmem:[%s173 + $0x1b48] sm:$0xff]
        %v1081 = vld [vmem:[%s173 + $0x1b50] sm:$0xff]
        %v1082 = vld [vmem:[%s173 + $0x1b58] sm:$0xff]
        %v1083 = vld [vmem:[%s173 + $0x1b60] sm:$0xff]
        %v1084 = vld [vmem:[%s173 + $0x1b68] sm:$0xff]
        %v1085 = vld [vmem:[%s173 + $0x1b70] sm:$0xff]
        %v1086 = vld [vmem:[%s173 + $0x1b78] sm:$0xff]
        %v1087 = vld [vmem:[%s173 + $0x1b80] sm:$0xff]
        %v1088 = vld [vmem:[%s173 + $0x1b88] sm:$0xff]
        %v1089 = vld [vmem:[%s173 + $0x1b90] sm:$0xff]
        %v1090 = vld [vmem:[%s173 + $0x1b98] sm:$0xff]
        %v1091 = vld [vmem:[%s173 + $0x1ba0] sm:$0xff]
        %v1092 = vld [vmem:[%s173 + $0x1ba8] sm:$0xff]
        %v1093 = vld [vmem:[%s173 + $0x1bb0] sm:$0xff]
        %v1094 = vld [vmem:[%s173 + $0x1bb8] sm:$0xff]
        %v1095 = vld [vmem:[%s173 + $0x1bc0] sm:$0xff]
        %v1096 = vld [vmem:[%s173 + $0x1bc8] sm:$0xff]
        %v1097 = vld [vmem:[%s173 + $0x1bd0] sm:$0xff]
        %v1098 = vld [vmem:[%s173 + $0x1bd8] sm:$0xff]
        %v1099 = vld [vmem:[%s173 + $0x1be0] sm:$0xff]
        %v1100 = vld [vmem:[%s173 + $0x1be8] sm:$0xff]
        %v1101 = vld [vmem:[%s173 + $0x1bf0] sm:$0xff]
        %v1102 = vld [vmem:[%s173 + $0x1bf8] sm:$0xff]
        %v1103 = vld [vmem:[%s173 + $0x1c00] sm:$0xff]
        %v1104 = vld [vmem:[%s173 + $0x1c08] sm:$0xff]
        %v1105 = vld [vmem:[%s173 + $0x1c10] sm:$0xff]
        %v1106 = vld [vmem:[%s173 + $0x1c18] sm:$0xff]
        %v1107 = vld [vmem:[%s173 + $0x1c20] sm:$0xff]
        %v1108 = vld [vmem:[%s173 + $0x1c28] sm:$0xff]
        %v1109 = vld [vmem:[%s173 + $0x1c30] sm:$0xff]
        %v1110 = vld [vmem:[%s173 + $0x1c38] sm:$0xff]
        %v1111 = vld [vmem:[%s173 + $0x1c40] sm:$0xff]
        %v1112 = vld [vmem:[%s173 + $0x1c48] sm:$0xff]
        %v1113 = vld [vmem:[%s173 + $0x1c50] sm:$0xff]
        %v1114 = vld [vmem:[%s173 + $0x1c58] sm:$0xff]
        %v1115 = vld [vmem:[%s173 + $0x1c60] sm:$0xff]
        %v1116 = vld [vmem:[%s173 + $0x1c68] sm:$0xff]
        %v1117 = vld [vmem:[%s173 + $0x1c70] sm:$0xff]
        %v1118 = vld [vmem:[%s173 + $0x1c78] sm:$0xff]
        %v1119 = vld [vmem:[%s173 + $0x1c80] sm:$0xff]
        %v1120 = vld [vmem:[%s173 + $0x1c88] sm:$0xff]
        %v1121 = vld [vmem:[%s173 + $0x1c90] sm:$0xff]
        %v1122 = vld [vmem:[%s173 + $0x1c98] sm:$0xff]
        %v1123 = vld [vmem:[%s173 + $0x1ca0] sm:$0xff]
        %v1124 = vld [vmem:[%s173 + $0x1ca8] sm:$0xff]
        %v1125 = vld [vmem:[%s173 + $0x1cb0] sm:$0xff]
        %v1126 = vld [vmem:[%s173 + $0x1cb8] sm:$0xff]
        %v1127 = vld [vmem:[%s173 + $0x1cc0] sm:$0xff]
        %v1128 = vld [vmem:[%s173 + $0x1cc8] sm:$0xff]
        %v1129 = vld [vmem:[%s173 + $0x1cd0] sm:$0xff]
        %v1130 = vld [vmem:[%s173 + $0x1cd8] sm:$0xff]
        %v1131 = vld [vmem:[%s173 + $0x1ce0] sm:$0xff]
        %v1132 = vld [vmem:[%s173 + $0x1ce8] sm:$0xff]
        %v1133 = vld [vmem:[%s173 + $0x1cf0] sm:$0xff]
        %v1134 = vld [vmem:[%s173 + $0x1cf8] sm:$0xff]
        %v1135 = vld [vmem:[%s173 + $0x1d00] sm:$0xff]
        %v1136 = vld [vmem:[%s173 + $0x1d08] sm:$0xff]
        %v1137 = vld [vmem:[%s173 + $0x1d10] sm:$0xff]
        %v1138 = vld [vmem:[%s173 + $0x1d18] sm:$0xff]
        %v1139 = vld [vmem:[%s173 + $0x1d20] sm:$0xff]
        %v1140 = vld [vmem:[%s173 + $0x1d28] sm:$0xff]
        %v1141 = vld [vmem:[%s173 + $0x1d30] sm:$0xff]
        %v1142 = vld [vmem:[%s173 + $0x1d38] sm:$0xff]
        %v1143 = vld [vmem:[%s173 + $0x1d40] sm:$0xff]
        %v1144 = vld [vmem:[%s173 + $0x1d48] sm:$0xff]
        %v1145 = vld [vmem:[%s173 + $0x1d50] sm:$0xff]
        %v1146 = vld [vmem:[%s173 + $0x1d58] sm:$0xff]
        %v1147 = vld [vmem:[%s173 + $0x1d60] sm:$0xff]
        %v1148 = vld [vmem:[%s173 + $0x1d68] sm:$0xff]
        %v1149 = vld [vmem:[%s173 + $0x1d70] sm:$0xff]
        %v1150 = vld [vmem:[%s173 + $0x1d78] sm:$0xff]
        %v1151 = vld [vmem:[%s173 + $0x1d80] sm:$0xff]
        %v1152 = vld [vmem:[%s173 + $0x1d88] sm:$0xff]
        %v1153 = vld [vmem:[%s173 + $0x1d90] sm:$0xff]
        %v1154 = vld [vmem:[%s173 + $0x1d98] sm:$0xff]
        %v1155 = vld [vmem:[%s173 + $0x1da0] sm:$0xff]
        %v1156 = vld [vmem:[%s173 + $0x1da8] sm:$0xff]
        %v1157 = vld [vmem:[%s173 + $0x1db0] sm:$0xff]
        %v1158 = vld [vmem:[%s173 + $0x1db8] sm:$0xff]
        %v1159 = vld [vmem:[%s173 + $0x1dc0] sm:$0xff]
        %v1160 = vld [vmem:[%s173 + $0x1dc8] sm:$0xff]
        %v1161 = vld [vmem:[%s173 + $0x1dd0] sm:$0xff]
        %v1162 = vld [vmem:[%s173 + $0x1dd8] sm:$0xff]
        %v1163 = vld [vmem:[%s173 + $0x1de0] sm:$0xff]
        %v1164 = vld [vmem:[%s173 + $0x1de8] sm:$0xff]
        %v1165 = vld [vmem:[%s173 + $0x1df0] sm:$0xff]
        %v1166 = vld [vmem:[%s173 + $0x1df8] sm:$0xff]
        %v1167 = vld [vmem:[%s173 + $0x1e00] sm:$0xff]
        %v1168 = vld [vmem:[%s173 + $0x1e08] sm:$0xff]
        %v1169 = vld [vmem:[%s173 + $0x1e10] sm:$0xff]
        %v1170 = vld [vmem:[%s173 + $0x1e18] sm:$0xff]
        %v1171 = vld [vmem:[%s173 + $0x1e20] sm:$0xff]
        %v1172 = vld [vmem:[%s173 + $0x1e28] sm:$0xff]
        %v1173 = vld [vmem:[%s173 + $0x1e30] sm:$0xff]
        %v1174 = vld [vmem:[%s173 + $0x1e38] sm:$0xff]
        %v1175 = vld [vmem:[%s173 + $0x1e40] sm:$0xff]
        %v1176 = vld [vmem:[%s173 + $0x1e48] sm:$0xff]
        %v1177 = vld [vmem:[%s173 + $0x1e50] sm:$0xff]
        %v1178 = vld [vmem:[%s173 + $0x1e58] sm:$0xff]
        %v1179 = vld [vmem:[%s173 + $0x1e60] sm:$0xff]
        %v1180 = vld [vmem:[%s173 + $0x1e68] sm:$0xff]
        %v1181 = vld [vmem:[%s173 + $0x1e70] sm:$0xff]
        %v1182 = vld [vmem:[%s173 + $0x1e78] sm:$0xff]
        %v1183 = vld [vmem:[%s173 + $0x1e80] sm:$0xff]
        %v1184 = vld [vmem:[%s173 + $0x1e88] sm:$0xff]
        %v1185 = vld [vmem:[%s173 + $0x1e90] sm:$0xff]
        %v1186 = vld [vmem:[%s173 + $0x1e98] sm:$0xff]
        %v1187 = vld [vmem:[%s173 + $0x1ea0] sm:$0xff]
        %v1188 = vld [vmem:[%s173 + $0x1ea8] sm:$0xff]
        %v1189 = vld [vmem:[%s173 + $0x1eb0] sm:$0xff]
        %v1190 = vld [vmem:[%s173 + $0x1eb8] sm:$0xff]
        %v1191 = vld [vmem:[%s173 + $0x1ec0] sm:$0xff]
        %v1192 = vld [vmem:[%s173 + $0x1ec8] sm:$0xff]
        %v1193 = vld [vmem:[%s173 + $0x1ed0] sm:$0xff]
        %v1194 = vld [vmem:[%s173 + $0x1ed8] sm:$0xff]
        %v1195 = vld [vmem:[%s173 + $0x1ee0] sm:$0xff]
        %v1196 = vld [vmem:[%s173 + $0x1ee8] sm:$0xff]
        %v1197 = vld [vmem:[%s173 + $0x1ef0] sm:$0xff]
        %v1198 = vld [vmem:[%s173 + $0x1ef8] sm:$0xff]
        %v1199 = vld [vmem:[%s173 + $0x1f00] sm:$0xff]
        %v1200 = vld [vmem:[%s173 + $0x1f08] sm:$0xff]
        %v1201 = vld [vmem:[%s173 + $0x1f10] sm:$0xff]
        %v1202 = vld [vmem:[%s173 + $0x1f18] sm:$0xff]
        %v1203 = vld [vmem:[%s173 + $0x1f20] sm:$0xff]
        %v1204 = vld [vmem:[%s173 + $0x1f28] sm:$0xff]
        %v1205 = vld [vmem:[%s173 + $0x1f30] sm:$0xff]
        %v1206 = vld [vmem:[%s173 + $0x1f38] sm:$0xff]
        %v1207 = vld [vmem:[%s173 + $0x1f40] sm:$0xff]
        %v1208 = vld [vmem:[%s173 + $0x1f48] sm:$0xff]
        %v1209 = vld [vmem:[%s173 + $0x1f50] sm:$0xff]
        %v1210 = vld [vmem:[%s173 + $0x1f58] sm:$0xff]
        %v1211 = vld [vmem:[%s173 + $0x1f60] sm:$0xff]
        %v1212 = vld [vmem:[%s173 + $0x1f68] sm:$0xff]
        %v1213 = vld [vmem:[%s173 + $0x1f70] sm:$0xff]
        %v1214 = vld [vmem:[%s173 + $0x1f78] sm:$0xff]
        %v1215 = vld [vmem:[%s173 + $0x1f80] sm:$0xff]
        %v1216 = vld [vmem:[%s173 + $0x1f88] sm:$0xff]
        %v1217 = vld [vmem:[%s173 + $0x1f90] sm:$0xff]
        %v1218 = vld [vmem:[%s173 + $0x1f98] sm:$0xff]
        %v1219 = vld [vmem:[%s173 + $0x1fa0] sm:$0xff]
        %v1220 = vld [vmem:[%s173 + $0x1fa8] sm:$0xff]
        %v1221 = vld [vmem:[%s173 + $0x1fb0] sm:$0xff]
        %v1222 = vld [vmem:[%s173 + $0x1fb8] sm:$0xff]
        %v1223 = vld [vmem:[%s173 + $0x1fc0] sm:$0xff]
        %v1224 = vld [vmem:[%s173 + $0x1fc8] sm:$0xff]
        %v1225 = vld [vmem:[%s173 + $0x1fd0] sm:$0xff]
        %v1226 = vld [vmem:[%s173 + $0x1fd8] sm:$0xff]
        %v1227 = vld [vmem:[%s173 + $0x1fe0] sm:$0xff]
        %v1228 = vld [vmem:[%s173 + $0x1fe8] sm:$0xff]
        %v1229 = vld [vmem:[%s173 + $0x1ff0] sm:$0xff]
        %v1230 = vld [vmem:[%s173 + $0x1ff8] sm:$0xff]
        %v1231 = vld [vmem:[%s1] sm:$0xff]
        %v1232 = vld [vmem:[%s1 + $0x8] sm:$0xff]
        %v1233 = vld [vmem:[%s1 + $0x10] sm:$0xff]
        %v1234 = vld [vmem:[%s1 + $0x18] sm:$0xff]
        %v1235 = vld [vmem:[%s1 + $0x20] sm:$0xff]
        %v1236 = vld [vmem:[%s1 + $0x28] sm:$0xff]
        %v1237 = vld [vmem:[%s1 + $0x30] sm:$0xff]
        %v1238 = vld [vmem:[%s1 + $0x38] sm:$0xff]
        %v1239 = vld [vmem:[%s1 + $0x40] sm:$0xff]
        %v1240 = vld [vmem:[%s1 + $0x48] sm:$0xff]
        %v1241 = vld [vmem:[%s1 + $0x50] sm:$0xff]
        %v1242 = vld [vmem:[%s1 + $0x58] sm:$0xff]
        %v1243 = vld [vmem:[%s1 + $0x60] sm:$0xff]
        %v1244 = vld [vmem:[%s1 + $0x68] sm:$0xff]
        %v1245 = vld [vmem:[%s1 + $0x70] sm:$0xff]
        %v1246 = vld [vmem:[%s1 + $0x78] sm:$0xff]
        %v1247 = vld [vmem:[%s1 + $0x80] sm:$0xff]
        %v1248 = vld [vmem:[%s1 + $0x88] sm:$0xff]
        %v1249 = vld [vmem:[%s1 + $0x90] sm:$0xff]
        %v1250 = vld [vmem:[%s1 + $0x98] sm:$0xff]
        %v1251 = vld [vmem:[%s1 + $0xa0] sm:$0xff]
        %v1252 = vld [vmem:[%s1 + $0xa8] sm:$0xff]
        %v1253 = vld [vmem:[%s1 + $0xb0] sm:$0xff]
        %v1254 = vld [vmem:[%s1 + $0xb8] sm:$0xff]
        %v1255 = vld [vmem:[%s1 + $0xc0] sm:$0xff]
        %v1256 = vld [vmem:[%s1 + $0xc8] sm:$0xff]
        %v1257 = vld [vmem:[%s1 + $0xd0] sm:$0xff]
        %v1258 = vld [vmem:[%s1 + $0xd8] sm:$0xff]
        %v1259 = vld [vmem:[%s1 + $0xe0] sm:$0xff]
        %v1260 = vld [vmem:[%s1 + $0xe8] sm:$0xff]
        %v1261 = vld [vmem:[%s1 + $0xf0] sm:$0xff]
        %v1262 = vld [vmem:[%s1 + $0xf8] sm:$0xff]
        %v1263 = vld [vmem:[%s1 + $0x100] sm:$0xff]
        %v1264 = vld [vmem:[%s1 + $0x108] sm:$0xff]
        %v1265 = vld [vmem:[%s1 + $0x110] sm:$0xff]
        %v1266 = vld [vmem:[%s1 + $0x118] sm:$0xff]
        %v1267 = vld [vmem:[%s1 + $0x120] sm:$0xff]
        %v1268 = vld [vmem:[%s1 + $0x128] sm:$0xff]
        %v1269 = vld [vmem:[%s1 + $0x130] sm:$0xff]
        %v1270 = vld [vmem:[%s1 + $0x138] sm:$0xff]
        %v1271 = vld [vmem:[%s1 + $0x140] sm:$0xff]
        %v1272 = vld [vmem:[%s1 + $0x148] sm:$0xff]
        %v1273 = vld [vmem:[%s1 + $0x150] sm:$0xff]
        %v1274 = vld [vmem:[%s1 + $0x158] sm:$0xff]
        %v1275 = vld [vmem:[%s1 + $0x160] sm:$0xff]
        %v1276 = vld [vmem:[%s1 + $0x168] sm:$0xff]
        %v1277 = vld [vmem:[%s1 + $0x170] sm:$0xff]
        %v1278 = vld [vmem:[%s1 + $0x178] sm:$0xff]
        %v1279 = vld [vmem:[%s1 + $0x180] sm:$0xff]
        %v1280 = vld [vmem:[%s1 + $0x188] sm:$0xff]
        %v1281 = vld [vmem:[%s1 + $0x190] sm:$0xff]
        %v1282 = vld [vmem:[%s1 + $0x198] sm:$0xff]
        %v1283 = vld [vmem:[%s1 + $0x1a0] sm:$0xff]
        %v1284 = vld [vmem:[%s1 + $0x1a8] sm:$0xff]
        %v1285 = vld [vmem:[%s1 + $0x1b0] sm:$0xff]
        %v1286 = vld [vmem:[%s1 + $0x1b8] sm:$0xff]
        %v1287 = vld [vmem:[%s1 + $0x1c0] sm:$0xff]
        %v1288 = vld [vmem:[%s1 + $0x1c8] sm:$0xff]
        %v1289 = vld [vmem:[%s1 + $0x1d0] sm:$0xff]
        %v1290 = vld [vmem:[%s1 + $0x1d8] sm:$0xff]
        %v1291 = vld [vmem:[%s1 + $0x1e0] sm:$0xff]
        %v1292 = vld [vmem:[%s1 + $0x1e8] sm:$0xff]
        %v1293 = vld [vmem:[%s1 + $0x1f0] sm:$0xff]
        %v1294 = vld [vmem:[%s1 + $0x1f8] sm:$0xff]
        %v1295 = vld [vmem:[%s1 + $0x200] sm:$0xff]
        %v1296 = vld [vmem:[%s1 + $0x208] sm:$0xff]
        %v1297 = vld [vmem:[%s1 + $0x210] sm:$0xff]
        %v1298 = vld [vmem:[%s1 + $0x218] sm:$0xff]
        %v1299 = vld [vmem:[%s1 + $0x220] sm:$0xff]
        %v1300 = vld [vmem:[%s1 + $0x228] sm:$0xff]
        %v1301 = vld [vmem:[%s1 + $0x230] sm:$0xff]
        %v1302 = vld [vmem:[%s1 + $0x238] sm:$0xff]
        %v1303 = vld [vmem:[%s1 + $0x240] sm:$0xff]
        %v1304 = vld [vmem:[%s1 + $0x248] sm:$0xff]
        %v1305 = vld [vmem:[%s1 + $0x250] sm:$0xff]
        %v1306 = vld [vmem:[%s1 + $0x258] sm:$0xff]
        %v1307 = vld [vmem:[%s1 + $0x260] sm:$0xff]
        %v1308 = vld [vmem:[%s1 + $0x268] sm:$0xff]
        %v1309 = vld [vmem:[%s1 + $0x270] sm:$0xff]
        %v1310 = vld [vmem:[%s1 + $0x278] sm:$0xff]
        %v1311 = vld [vmem:[%s1 + $0x280] sm:$0xff]
        %v1312 = vld [vmem:[%s1 + $0x288] sm:$0xff]
        %v1313 = vld [vmem:[%s1 + $0x290] sm:$0xff]
        %v1314 = vld [vmem:[%s1 + $0x298] sm:$0xff]
        %v1315 = vld [vmem:[%s1 + $0x2a0] sm:$0xff]
        %v1316 = vld [vmem:[%s1 + $0x2a8] sm:$0xff]
        %v1317 = vld [vmem:[%s1 + $0x2b0] sm:$0xff]
        %v1318 = vld [vmem:[%s1 + $0x2b8] sm:$0xff]
        %v1319 = vld [vmem:[%s1 + $0x2c0] sm:$0xff]
        %v1320 = vld [vmem:[%s1 + $0x2c8] sm:$0xff]
        %v1321 = vld [vmem:[%s1 + $0x2d0] sm:$0xff]
        %v1322 = vld [vmem:[%s1 + $0x2d8] sm:$0xff]
        %v1323 = vld [vmem:[%s1 + $0x2e0] sm:$0xff]
        %v1324 = vld [vmem:[%s1 + $0x2e8] sm:$0xff]
        %v1325 = vld [vmem:[%s1 + $0x2f0] sm:$0xff]
        %v1326 = vld [vmem:[%s1 + $0x2f8] sm:$0xff]
        %v1327 = vld [vmem:[%s1 + $0x300] sm:$0xff]
        %v1328 = vld [vmem:[%s1 + $0x308] sm:$0xff]
        %v1329 = vld [vmem:[%s1 + $0x310] sm:$0xff]
        %v1330 = vld [vmem:[%s1 + $0x318] sm:$0xff]
        %v1331 = vld [vmem:[%s1 + $0x320] sm:$0xff]
        %v1332 = vld [vmem:[%s1 + $0x328] sm:$0xff]
        %v1333 = vld [vmem:[%s1 + $0x330] sm:$0xff]
        %v1334 = vld [vmem:[%s1 + $0x338] sm:$0xff]
        %v1335 = vld [vmem:[%s1 + $0x340] sm:$0xff]
        %v1336 = vld [vmem:[%s1 + $0x348] sm:$0xff]
        %v1337 = vld [vmem:[%s1 + $0x350] sm:$0xff]
        %v1338 = vld [vmem:[%s1 + $0x358] sm:$0xff]
        %v1339 = vld [vmem:[%s1 + $0x360] sm:$0xff]
        %v1340 = vld [vmem:[%s1 + $0x368] sm:$0xff]
        %v1341 = vld [vmem:[%s1 + $0x370] sm:$0xff]
        %v1342 = vld [vmem:[%s1 + $0x378] sm:$0xff]
        %v1343 = vld [vmem:[%s1 + $0x380] sm:$0xff]
        %v1344 = vld [vmem:[%s1 + $0x388] sm:$0xff]
        %v1345 = vld [vmem:[%s1 + $0x390] sm:$0xff]
        %v1346 = vld [vmem:[%s1 + $0x398] sm:$0xff]
        %v1347 = vld [vmem:[%s1 + $0x3a0] sm:$0xff]
        %v1348 = vld [vmem:[%s1 + $0x3a8] sm:$0xff]
        %v1349 = vld [vmem:[%s1 + $0x3b0] sm:$0xff]
        %v1350 = vld [vmem:[%s1 + $0x3b8] sm:$0xff]
        %v1351 = vld [vmem:[%s1 + $0x3c0] sm:$0xff]
        %v1352 = vld [vmem:[%s1 + $0x3c8] sm:$0xff]
        %v1353 = vld [vmem:[%s1 + $0x3d0] sm:$0xff]
        %v1354 = vld [vmem:[%s1 + $0x3d8] sm:$0xff]
        %v1355 = vld [vmem:[%s1 + $0x3e0] sm:$0xff]
        %v1356 = vld [vmem:[%s1 + $0x3e8] sm:$0xff]
        %v1357 = vld [vmem:[%s1 + $0x3f0] sm:$0xff]
        %v1358 = vld [vmem:[%s1 + $0x3f8] sm:$0xff]
        %v1359 = vld [vmem:[%s1 + $0x400] sm:$0xff]
        %v1360 = vld [vmem:[%s1 + $0x408] sm:$0xff]
        %v1361 = vld [vmem:[%s1 + $0x410] sm:$0xff]
        %v1362 = vld [vmem:[%s1 + $0x418] sm:$0xff]
        %v1363 = vld [vmem:[%s1 + $0x420] sm:$0xff]
        %v1364 = vld [vmem:[%s1 + $0x428] sm:$0xff]
        %v1365 = vld [vmem:[%s1 + $0x430] sm:$0xff]
        %v1366 = vld [vmem:[%s1 + $0x438] sm:$0xff]
        %v1367 = vld [vmem:[%s1 + $0x440] sm:$0xff]
        %v1368 = vld [vmem:[%s1 + $0x448] sm:$0xff]
        %v1369 = vld [vmem:[%s1 + $0x450] sm:$0xff]
        %v1370 = vld [vmem:[%s1 + $0x458] sm:$0xff]
        %v1371 = vld [vmem:[%s1 + $0x460] sm:$0xff]
        %v1372 = vld [vmem:[%s1 + $0x468] sm:$0xff]
        %v1373 = vld [vmem:[%s1 + $0x470] sm:$0xff]
        %v1374 = vld [vmem:[%s1 + $0x478] sm:$0xff]
        %v1375 = vld [vmem:[%s1 + $0x480] sm:$0xff]
        %v1376 = vld [vmem:[%s1 + $0x488] sm:$0xff]
        %v1377 = vld [vmem:[%s1 + $0x490] sm:$0xff]
        %v1378 = vld [vmem:[%s1 + $0x498] sm:$0xff]
        %v1379 = vld [vmem:[%s1 + $0x4a0] sm:$0xff]
        %v1380 = vld [vmem:[%s1 + $0x4a8] sm:$0xff]
        %v1381 = vld [vmem:[%s1 + $0x4b0] sm:$0xff]
        %v1382 = vld [vmem:[%s1 + $0x4b8] sm:$0xff]
        %v1383 = vld [vmem:[%s1 + $0x4c0] sm:$0xff]
        %v1384 = vld [vmem:[%s1 + $0x4c8] sm:$0xff]
        %v1385 = vld [vmem:[%s1 + $0x4d0] sm:$0xff]
        %v1386 = vld [vmem:[%s1 + $0x4d8] sm:$0xff]
        %v1387 = vld [vmem:[%s1 + $0x4e0] sm:$0xff]
        %v1388 = vld [vmem:[%s1 + $0x4e8] sm:$0xff]
        %v1389 = vld [vmem:[%s1 + $0x4f0] sm:$0xff]
        %v1390 = vld [vmem:[%s1 + $0x4f8] sm:$0xff]
        %v1391 = vld [vmem:[%s1 + $0x500] sm:$0xff]
        %v1392 = vld [vmem:[%s1 + $0x508] sm:$0xff]
        %v1393 = vld [vmem:[%s1 + $0x510] sm:$0xff]
        %v1394 = vld [vmem:[%s1 + $0x518] sm:$0xff]
        %v1395 = vld [vmem:[%s1 + $0x520] sm:$0xff]
        %v1396 = vld [vmem:[%s1 + $0x528] sm:$0xff]
        %v1397 = vld [vmem:[%s1 + $0x530] sm:$0xff]
        %v1398 = vld [vmem:[%s1 + $0x538] sm:$0xff]
        %v1399 = vld [vmem:[%s1 + $0x540] sm:$0xff]
        %v1400 = vld [vmem:[%s1 + $0x548] sm:$0xff]
        %v1401 = vld [vmem:[%s1 + $0x550] sm:$0xff]
        %v1402 = vld [vmem:[%s1 + $0x558] sm:$0xff]
        %v1403 = vld [vmem:[%s1 + $0x560] sm:$0xff]
        %v1404 = vld [vmem:[%s1 + $0x568] sm:$0xff]
        %v1405 = vld [vmem:[%s1 + $0x570] sm:$0xff]
        %v1406 = vld [vmem:[%s1 + $0x578] sm:$0xff]
        %v1407 = vld [vmem:[%s1 + $0x580] sm:$0xff]
        %v1408 = vld [vmem:[%s1 + $0x588] sm:$0xff]
        %v1409 = vld [vmem:[%s1 + $0x590] sm:$0xff]
        %v1410 = vld [vmem:[%s1 + $0x598] sm:$0xff]
        %v1411 = vld [vmem:[%s1 + $0x5a0] sm:$0xff]
        %v1412 = vld [vmem:[%s1 + $0x5a8] sm:$0xff]
        %v1413 = vld [vmem:[%s1 + $0x5b0] sm:$0xff]
        %v1414 = vld [vmem:[%s1 + $0x5b8] sm:$0xff]
        %v1415 = vld [vmem:[%s1 + $0x5c0] sm:$0xff]
        %v1416 = vld [vmem:[%s1 + $0x5c8] sm:$0xff]
        %v1417 = vld [vmem:[%s1 + $0x5d0] sm:$0xff]
        %v1418 = vld [vmem:[%s1 + $0x5d8] sm:$0xff]
        %v1419 = vld [vmem:[%s1 + $0x5e0] sm:$0xff]
        %v1420 = vld [vmem:[%s1 + $0x5e8] sm:$0xff]
        %v1421 = vld [vmem:[%s1 + $0x5f0] sm:$0xff]
        %v1422 = vld [vmem:[%s1 + $0x5f8] sm:$0xff]
        %v1423 = vld [vmem:[%s1 + $0x600] sm:$0xff]
        %v1424 = vld [vmem:[%s1 + $0x608] sm:$0xff]
        %v1425 = vld [vmem:[%s1 + $0x610] sm:$0xff]
        %v1426 = vld [vmem:[%s1 + $0x618] sm:$0xff]
        %v1427 = vld [vmem:[%s1 + $0x620] sm:$0xff]
        %v1428 = vld [vmem:[%s1 + $0x628] sm:$0xff]
        %v1429 = vld [vmem:[%s1 + $0x630] sm:$0xff]
        %v1430 = vld [vmem:[%s1 + $0x638] sm:$0xff]
        %v1431 = vld [vmem:[%s1 + $0x640] sm:$0xff]
        %v1432 = vld [vmem:[%s1 + $0x648] sm:$0xff]
        %v1433 = vld [vmem:[%s1 + $0x650] sm:$0xff]
        %v1434 = vld [vmem:[%s1 + $0x658] sm:$0xff]
        %v1435 = vld [vmem:[%s1 + $0x660] sm:$0xff]
        %v1436 = vld [vmem:[%s1 + $0x668] sm:$0xff]
        %v1437 = vld [vmem:[%s1 + $0x670] sm:$0xff]
        %v1438 = vld [vmem:[%s1 + $0x678] sm:$0xff]
        %v1439 = vld [vmem:[%s1 + $0x680] sm:$0xff]
        %v1440 = vld [vmem:[%s1 + $0x688] sm:$0xff]
        %v1441 = vld [vmem:[%s1 + $0x690] sm:$0xff]
        %v1442 = vld [vmem:[%s1 + $0x698] sm:$0xff]
        %v1443 = vld [vmem:[%s1 + $0x6a0] sm:$0xff]
        %v1444 = vld [vmem:[%s1 + $0x6a8] sm:$0xff]
        %v1445 = vld [vmem:[%s1 + $0x6b0] sm:$0xff]
        %v1446 = vld [vmem:[%s1 + $0x6b8] sm:$0xff]
        %v1447 = vld [vmem:[%s1 + $0x6c0] sm:$0xff]
        %v1448 = vld [vmem:[%s1 + $0x6c8] sm:$0xff]
        %v1449 = vld [vmem:[%s1 + $0x6d0] sm:$0xff]
        %v1450 = vld [vmem:[%s1 + $0x6d8] sm:$0xff]
        %v1451 = vld [vmem:[%s1 + $0x6e0] sm:$0xff]
        %v1452 = vld [vmem:[%s1 + $0x6e8] sm:$0xff]
        %v1453 = vld [vmem:[%s1 + $0x6f0] sm:$0xff]
        %v1454 = vld [vmem:[%s1 + $0x6f8] sm:$0xff]
        %v1455 = vld [vmem:[%s1 + $0x700] sm:$0xff]
        %v1456 = vld [vmem:[%s1 + $0x708] sm:$0xff]
        %v1457 = vld [vmem:[%s1 + $0x710] sm:$0xff]
        %v1458 = vld [vmem:[%s1 + $0x718] sm:$0xff]
        %v1459 = vld [vmem:[%s1 + $0x720] sm:$0xff]
        %v1460 = vld [vmem:[%s1 + $0x728] sm:$0xff]
        %v1461 = vld [vmem:[%s1 + $0x730] sm:$0xff]
        %v1462 = vld [vmem:[%s1 + $0x738] sm:$0xff]
        %v1463 = vld [vmem:[%s1 + $0x740] sm:$0xff]
        %v1464 = vld [vmem:[%s1 + $0x748] sm:$0xff]
        %v1465 = vld [vmem:[%s1 + $0x750] sm:$0xff]
        %v1466 = vld [vmem:[%s1 + $0x758] sm:$0xff]
        %v1467 = vld [vmem:[%s1 + $0x760] sm:$0xff]
        %v1468 = vld [vmem:[%s1 + $0x768] sm:$0xff]
        %v1469 = vld [vmem:[%s1 + $0x770] sm:$0xff]
        %v1470 = vld [vmem:[%s1 + $0x778] sm:$0xff]
        %v1471 = vld [vmem:[%s1 + $0x780] sm:$0xff]
        %v1472 = vld [vmem:[%s1 + $0x788] sm:$0xff]
        %v1473 = vld [vmem:[%s1 + $0x790] sm:$0xff]
        %v1474 = vld [vmem:[%s1 + $0x798] sm:$0xff]
        %v1475 = vld [vmem:[%s1 + $0x7a0] sm:$0xff]
        %v1476 = vld [vmem:[%s1 + $0x7a8] sm:$0xff]
        %v1477 = vld [vmem:[%s1 + $0x7b0] sm:$0xff]
        %v1478 = vld [vmem:[%s1 + $0x7b8] sm:$0xff]
        %v1479 = vld [vmem:[%s1 + $0x7c0] sm:$0xff]
        %v1480 = vld [vmem:[%s1 + $0x7c8] sm:$0xff]
        %v1481 = vld [vmem:[%s1 + $0x7d0] sm:$0xff]
        %v1482 = vld [vmem:[%s1 + $0x7d8] sm:$0xff]
        %v1483 = vld [vmem:[%s1 + $0x7e0] sm:$0xff]
        %v1484 = vld [vmem:[%s1 + $0x7e8] sm:$0xff]
        %v1485 = vld [vmem:[%s1 + $0x7f0] sm:$0xff]
        %v1486 = vld [vmem:[%s1 + $0x7f8] sm:$0xff]
        %v1487 = vld [vmem:[%s1 + $0x800] sm:$0xff]
        %v1488 = vld [vmem:[%s1 + $0x808] sm:$0xff]
        %v1489 = vld [vmem:[%s1 + $0x810] sm:$0xff]
        %v1490 = vld [vmem:[%s1 + $0x818] sm:$0xff]
        %v1491 = vld [vmem:[%s1 + $0x820] sm:$0xff]
        %v1492 = vld [vmem:[%s1 + $0x828] sm:$0xff]
        %v1493 = vld [vmem:[%s1 + $0x830] sm:$0xff]
        %v1494 = vld [vmem:[%s1 + $0x838] sm:$0xff]
        %v1495 = vld [vmem:[%s1 + $0x840] sm:$0xff]
        %v1496 = vld [vmem:[%s1 + $0x848] sm:$0xff]
        %v1497 = vld [vmem:[%s1 + $0x850] sm:$0xff]
        %v1498 = vld [vmem:[%s1 + $0x858] sm:$0xff]
        %v1499 = vld [vmem:[%s1 + $0x860] sm:$0xff]
        %v1500 = vld [vmem:[%s1 + $0x868] sm:$0xff]
        %v1501 = vld [vmem:[%s1 + $0x870] sm:$0xff]
        %v1502 = vld [vmem:[%s1 + $0x878] sm:$0xff]
        %v1503 = vld [vmem:[%s1 + $0x880] sm:$0xff]
        %v1504 = vld [vmem:[%s1 + $0x888] sm:$0xff]
        %v1505 = vld [vmem:[%s1 + $0x890] sm:$0xff]
        %v1506 = vld [vmem:[%s1 + $0x898] sm:$0xff]
        %v1507 = vld [vmem:[%s1 + $0x8a0] sm:$0xff]
        %v1508 = vld [vmem:[%s1 + $0x8a8] sm:$0xff]
        %v1509 = vld [vmem:[%s1 + $0x8b0] sm:$0xff]
        %v1510 = vld [vmem:[%s1 + $0x8b8] sm:$0xff]
        %v1511 = vld [vmem:[%s1 + $0x8c0] sm:$0xff]
        %v1512 = vld [vmem:[%s1 + $0x8c8] sm:$0xff]
        %v1513 = vld [vmem:[%s1 + $0x8d0] sm:$0xff]
        %v1514 = vld [vmem:[%s1 + $0x8d8] sm:$0xff]
        %v1515 = vld [vmem:[%s1 + $0x8e0] sm:$0xff]
        %v1516 = vld [vmem:[%s1 + $0x8e8] sm:$0xff]
        %v1517 = vld [vmem:[%s1 + $0x8f0] sm:$0xff]
        %v1518 = vld [vmem:[%s1 + $0x8f8] sm:$0xff]
        %v1519 = vld [vmem:[%s1 + $0x900] sm:$0xff]
        %v1520 = vld [vmem:[%s1 + $0x908] sm:$0xff]
        %v1521 = vld [vmem:[%s1 + $0x910] sm:$0xff]
        %v1522 = vld [vmem:[%s1 + $0x918] sm:$0xff]
        %v1523 = vld [vmem:[%s1 + $0x920] sm:$0xff]
        %v1524 = vld [vmem:[%s1 + $0x928] sm:$0xff]
        %v1525 = vld [vmem:[%s1 + $0x930] sm:$0xff]
        %v1526 = vld [vmem:[%s1 + $0x938] sm:$0xff]
        %v1527 = vld [vmem:[%s1 + $0x940] sm:$0xff]
        %v1528 = vld [vmem:[%s1 + $0x948] sm:$0xff]
        %v1529 = vld [vmem:[%s1 + $0x950] sm:$0xff]
        %v1530 = vld [vmem:[%s1 + $0x958] sm:$0xff]
        %v1531 = vld [vmem:[%s1 + $0x960] sm:$0xff]
        %v1532 = vld [vmem:[%s1 + $0x968] sm:$0xff]
        %v1533 = vld [vmem:[%s1 + $0x970] sm:$0xff]
        %v1534 = vld [vmem:[%s1 + $0x978] sm:$0xff]
        %v1535 = vld [vmem:[%s1 + $0x980] sm:$0xff]
        %v1536 = vld [vmem:[%s1 + $0x988] sm:$0xff]
        %v1537 = vld [vmem:[%s1 + $0x990] sm:$0xff]
        %v1538 = vld [vmem:[%s1 + $0x998] sm:$0xff]
        %v1539 = vld [vmem:[%s1 + $0x9a0] sm:$0xff]
        %v1540 = vld [vmem:[%s1 + $0x9a8] sm:$0xff]
        %v1541 = vld [vmem:[%s1 + $0x9b0] sm:$0xff]
        %v1542 = vld [vmem:[%s1 + $0x9b8] sm:$0xff]
        %v1543 = vld [vmem:[%s1 + $0x9c0] sm:$0xff]
        %v1544 = vld [vmem:[%s1 + $0x9c8] sm:$0xff]
        %v1545 = vld [vmem:[%s1 + $0x9d0] sm:$0xff]
        %v1546 = vld [vmem:[%s1 + $0x9d8] sm:$0xff]
        %v1547 = vld [vmem:[%s1 + $0x9e0] sm:$0xff]
        %v1548 = vld [vmem:[%s1 + $0x9e8] sm:$0xff]
        %v1549 = vld [vmem:[%s1 + $0x9f0] sm:$0xff]
        %v1550 = vld [vmem:[%s1 + $0x9f8] sm:$0xff]
        %v1551 = vld [vmem:[%s1 + $0xa00] sm:$0xff]
        %v1552 = vld [vmem:[%s1 + $0xa08] sm:$0xff]
        %v1553 = vld [vmem:[%s1 + $0xa10] sm:$0xff]
        %v1554 = vld [vmem:[%s1 + $0xa18] sm:$0xff]
        %v1555 = vld [vmem:[%s1 + $0xa20] sm:$0xff]
        %v1556 = vld [vmem:[%s1 + $0xa28] sm:$0xff]
        %v1557 = vld [vmem:[%s1 + $0xa30] sm:$0xff]
        %v1558 = vld [vmem:[%s1 + $0xa38] sm:$0xff]
        %v1559 = vld [vmem:[%s1 + $0xa40] sm:$0xff]
        %v1560 = vld [vmem:[%s1 + $0xa48] sm:$0xff]
        %v1561 = vld [vmem:[%s1 + $0xa50] sm:$0xff]
        %v1562 = vld [vmem:[%s1 + $0xa58] sm:$0xff]
        %v1563 = vld [vmem:[%s1 + $0xa60] sm:$0xff]
        %v1564 = vld [vmem:[%s1 + $0xa68] sm:$0xff]
        %v1565 = vld [vmem:[%s1 + $0xa70] sm:$0xff]
        %v1566 = vld [vmem:[%s1 + $0xa78] sm:$0xff]
        %v1567 = vld [vmem:[%s1 + $0xa80] sm:$0xff]
        %v1568 = vld [vmem:[%s1 + $0xa88] sm:$0xff]
        %v1569 = vld [vmem:[%s1 + $0xa90] sm:$0xff]
        %v1570 = vld [vmem:[%s1 + $0xa98] sm:$0xff]
        %v1571 = vld [vmem:[%s1 + $0xaa0] sm:$0xff]
        %v1572 = vld [vmem:[%s1 + $0xaa8] sm:$0xff]
        %v1573 = vld [vmem:[%s1 + $0xab0] sm:$0xff]
        %v1574 = vld [vmem:[%s1 + $0xab8] sm:$0xff]
        %v1575 = vld [vmem:[%s1 + $0xac0] sm:$0xff]
        %v1576 = vld [vmem:[%s1 + $0xac8] sm:$0xff]
        %v1577 = vld [vmem:[%s1 + $0xad0] sm:$0xff]
        %v1578 = vld [vmem:[%s1 + $0xad8] sm:$0xff]
        %v1579 = vld [vmem:[%s1 + $0xae0] sm:$0xff]
        %v1580 = vld [vmem:[%s1 + $0xae8] sm:$0xff]
        %v1581 = vld [vmem:[%s1 + $0xaf0] sm:$0xff]
        %v1582 = vld [vmem:[%s1 + $0xaf8] sm:$0xff]
        %v1583 = vld [vmem:[%s1 + $0xb00] sm:$0xff]
        %v1584 = vld [vmem:[%s1 + $0xb08] sm:$0xff]
        %v1585 = vld [vmem:[%s1 + $0xb10] sm:$0xff]
        %v1586 = vld [vmem:[%s1 + $0xb18] sm:$0xff]
        %v1587 = vld [vmem:[%s1 + $0xb20] sm:$0xff]
        %v1588 = vld [vmem:[%s1 + $0xb28] sm:$0xff]
        %v1589 = vld [vmem:[%s1 + $0xb30] sm:$0xff]
        %v1590 = vld [vmem:[%s1 + $0xb38] sm:$0xff]
        %v1591 = vld [vmem:[%s1 + $0xb40] sm:$0xff]
        %v1592 = vld [vmem:[%s1 + $0xb48] sm:$0xff]
        %v1593 = vld [vmem:[%s1 + $0xb50] sm:$0xff]
        %v1594 = vld [vmem:[%s1 + $0xb58] sm:$0xff]
        %v1595 = vld [vmem:[%s1 + $0xb60] sm:$0xff]
        %v1596 = vld [vmem:[%s1 + $0xb68] sm:$0xff]
        %v1597 = vld [vmem:[%s1 + $0xb70] sm:$0xff]
        %v1598 = vld [vmem:[%s1 + $0xb78] sm:$0xff]
        %v1599 = vld [vmem:[%s1 + $0xb80] sm:$0xff]
        %v1600 = vld [vmem:[%s1 + $0xb88] sm:$0xff]
        %v1601 = vld [vmem:[%s1 + $0xb90] sm:$0xff]
        %v1602 = vld [vmem:[%s1 + $0xb98] sm:$0xff]
        %v1603 = vld [vmem:[%s1 + $0xba0] sm:$0xff]
        %v1604 = vld [vmem:[%s1 + $0xba8] sm:$0xff]
        %v1605 = vld [vmem:[%s1 + $0xbb0] sm:$0xff]
        %v1606 = vld [vmem:[%s1 + $0xbb8] sm:$0xff]
        %v1607 = vld [vmem:[%s1 + $0xbc0] sm:$0xff]
        %v1608 = vld [vmem:[%s1 + $0xbc8] sm:$0xff]
        %v1609 = vld [vmem:[%s1 + $0xbd0] sm:$0xff]
        %v1610 = vld [vmem:[%s1 + $0xbd8] sm:$0xff]
        %v1611 = vld [vmem:[%s1 + $0xbe0] sm:$0xff]
        %v1612 = vld [vmem:[%s1 + $0xbe8] sm:$0xff]
        %v1613 = vld [vmem:[%s1 + $0xbf0] sm:$0xff]
        %v1614 = vld [vmem:[%s1 + $0xbf8] sm:$0xff]
        %v1615 = vld [vmem:[%s1 + $0xc00] sm:$0xff]
        %v1616 = vld [vmem:[%s1 + $0xc08] sm:$0xff]
        %v1617 = vld [vmem:[%s1 + $0xc10] sm:$0xff]
        %v1618 = vld [vmem:[%s1 + $0xc18] sm:$0xff]
        %v1619 = vld [vmem:[%s1 + $0xc20] sm:$0xff]
        %v1620 = vld [vmem:[%s1 + $0xc28] sm:$0xff]
        %v1621 = vld [vmem:[%s1 + $0xc30] sm:$0xff]
        %v1622 = vld [vmem:[%s1 + $0xc38] sm:$0xff]
        %v1623 = vld [vmem:[%s1 + $0xc40] sm:$0xff]
        %v1624 = vld [vmem:[%s1 + $0xc48] sm:$0xff]
        %v1625 = vld [vmem:[%s1 + $0xc50] sm:$0xff]
        %v1626 = vld [vmem:[%s1 + $0xc58] sm:$0xff]
        %v1627 = vld [vmem:[%s1 + $0xc60] sm:$0xff]
        %v1628 = vld [vmem:[%s1 + $0xc68] sm:$0xff]
        %v1629 = vld [vmem:[%s1 + $0xc70] sm:$0xff]
        %v1630 = vld [vmem:[%s1 + $0xc78] sm:$0xff]
        %v1631 = vld [vmem:[%s1 + $0xc80] sm:$0xff]
        %v1632 = vld [vmem:[%s1 + $0xc88] sm:$0xff]
        %v1633 = vld [vmem:[%s1 + $0xc90] sm:$0xff]
        %v1634 = vld [vmem:[%s1 + $0xc98] sm:$0xff]
        %v1635 = vld [vmem:[%s1 + $0xca0] sm:$0xff]
        %v1636 = vld [vmem:[%s1 + $0xca8] sm:$0xff]
        %v1637 = vld [vmem:[%s1 + $0xcb0] sm:$0xff]
        %v1638 = vld [vmem:[%s1 + $0xcb8] sm:$0xff]
        %v1639 = vld [vmem:[%s1 + $0xcc0] sm:$0xff]
        %v1640 = vld [vmem:[%s1 + $0xcc8] sm:$0xff]
        %v1641 = vld [vmem:[%s1 + $0xcd0] sm:$0xff]
        %v1642 = vld [vmem:[%s1 + $0xcd8] sm:$0xff]
        %v1643 = vld [vmem:[%s1 + $0xce0] sm:$0xff]
        %v1644 = vld [vmem:[%s1 + $0xce8] sm:$0xff]
        %v1645 = vld [vmem:[%s1 + $0xcf0] sm:$0xff]
        %v1646 = vld [vmem:[%s1 + $0xcf8] sm:$0xff]
        %v1647 = vld [vmem:[%s1 + $0xd00] sm:$0xff]
        %v1648 = vld [vmem:[%s1 + $0xd08] sm:$0xff]
        %v1649 = vld [vmem:[%s1 + $0xd10] sm:$0xff]
        %v1650 = vld [vmem:[%s1 + $0xd18] sm:$0xff]
        %v1651 = vld [vmem:[%s1 + $0xd20] sm:$0xff]
        %v1652 = vld [vmem:[%s1 + $0xd28] sm:$0xff]
        %v1653 = vld [vmem:[%s1 + $0xd30] sm:$0xff]
        %v1654 = vld [vmem:[%s1 + $0xd38] sm:$0xff]
        %v1655 = vld [vmem:[%s1 + $0xd40] sm:$0xff]
        %v1656 = vld [vmem:[%s1 + $0xd48] sm:$0xff]
        %v1657 = vld [vmem:[%s1 + $0xd50] sm:$0xff]
        %v1658 = vld [vmem:[%s1 + $0xd58] sm:$0xff]
        %v1659 = vld [vmem:[%s1 + $0xd60] sm:$0xff]
        %v1660 = vld [vmem:[%s1 + $0xd68] sm:$0xff]
        %v1661 = vld [vmem:[%s1 + $0xd70] sm:$0xff]
        %v1662 = vld [vmem:[%s1 + $0xd78] sm:$0xff]
        %v1663 = vld [vmem:[%s1 + $0xd80] sm:$0xff]
        %v1664 = vld [vmem:[%s1 + $0xd88] sm:$0xff]
        %v1665 = vld [vmem:[%s1 + $0xd90] sm:$0xff]
        %v1666 = vld [vmem:[%s1 + $0xd98] sm:$0xff]
        %v1667 = vld [vmem:[%s1 + $0xda0] sm:$0xff]
        %v1668 = vld [vmem:[%s1 + $0xda8] sm:$0xff]
        %v1669 = vld [vmem:[%s1 + $0xdb0] sm:$0xff]
        %v1670 = vld [vmem:[%s1 + $0xdb8] sm:$0xff]
        %v1671 = vld [vmem:[%s1 + $0xdc0] sm:$0xff]
        %v1672 = vld [vmem:[%s1 + $0xdc8] sm:$0xff]
        %v1673 = vld [vmem:[%s1 + $0xdd0] sm:$0xff]
        %v1674 = vld [vmem:[%s1 + $0xdd8] sm:$0xff]
        %v1675 = vld [vmem:[%s1 + $0xde0] sm:$0xff]
        %v1676 = vld [vmem:[%s1 + $0xde8] sm:$0xff]
        %v1677 = vld [vmem:[%s1 + $0xdf0] sm:$0xff]
        %v1678 = vld [vmem:[%s1 + $0xdf8] sm:$0xff]
        %v1679 = vld [vmem:[%s1 + $0xe00] sm:$0xff]
        %v1680 = vld [vmem:[%s1 + $0xe08] sm:$0xff]
        %v1681 = vld [vmem:[%s1 + $0xe10] sm:$0xff]
        %v1682 = vld [vmem:[%s1 + $0xe18] sm:$0xff]
        %v1683 = vld [vmem:[%s1 + $0xe20] sm:$0xff]
        %v1684 = vld [vmem:[%s1 + $0xe28] sm:$0xff]
        %v1685 = vld [vmem:[%s1 + $0xe30] sm:$0xff]
        %v1686 = vld [vmem:[%s1 + $0xe38] sm:$0xff]
        %v1687 = vld [vmem:[%s1 + $0xe40] sm:$0xff]
        %v1688 = vld [vmem:[%s1 + $0xe48] sm:$0xff]
        %v1689 = vld [vmem:[%s1 + $0xe50] sm:$0xff]
        %v1690 = vld [vmem:[%s1 + $0xe58] sm:$0xff]
        %v1691 = vld [vmem:[%s1 + $0xe60] sm:$0xff]
        %v1692 = vld [vmem:[%s1 + $0xe68] sm:$0xff]
        %v1693 = vld [vmem:[%s1 + $0xe70] sm:$0xff]
        %v1694 = vld [vmem:[%s1 + $0xe78] sm:$0xff]
        %v1695 = vld [vmem:[%s1 + $0xe80] sm:$0xff]
        %v1696 = vld [vmem:[%s1 + $0xe88] sm:$0xff]
        %v1697 = vld [vmem:[%s1 + $0xe90] sm:$0xff]
        %v1698 = vld [vmem:[%s1 + $0xe98] sm:$0xff]
        %v1699 = vld [vmem:[%s1 + $0xea0] sm:$0xff]
        %v1700 = vld [vmem:[%s1 + $0xea8] sm:$0xff]
        %v1701 = vld [vmem:[%s1 + $0xeb0] sm:$0xff]
        %v1702 = vld [vmem:[%s1 + $0xeb8] sm:$0xff]
        %v1703 = vld [vmem:[%s1 + $0xec0] sm:$0xff]
        %v1704 = vld [vmem:[%s1 + $0xec8] sm:$0xff]
        %v1705 = vld [vmem:[%s1 + $0xed0] sm:$0xff]
        %v1706 = vld [vmem:[%s1 + $0xed8] sm:$0xff]
        %v1707 = vld [vmem:[%s1 + $0xee0] sm:$0xff]
        %v1708 = vld [vmem:[%s1 + $0xee8] sm:$0xff]
        %v1709 = vld [vmem:[%s1 + $0xef0] sm:$0xff]
        %v1710 = vld [vmem:[%s1 + $0xef8] sm:$0xff]
        %v1711 = vld [vmem:[%s1 + $0xf00] sm:$0xff]
        %v1712 = vld [vmem:[%s1 + $0xf08] sm:$0xff]
        %v1713 = vld [vmem:[%s1 + $0xf10] sm:$0xff]
        %v1714 = vld [vmem:[%s1 + $0xf18] sm:$0xff]
        %v1715 = vld [vmem:[%s1 + $0xf20] sm:$0xff]
        %v1716 = vld [vmem:[%s1 + $0xf28] sm:$0xff]
        %v1717 = vld [vmem:[%s1 + $0xf30] sm:$0xff]
        %v1718 = vld [vmem:[%s1 + $0xf38] sm:$0xff]
        %v1719 = vld [vmem:[%s1 + $0xf40] sm:$0xff]
        %v1720 = vld [vmem:[%s1 + $0xf48] sm:$0xff]
        %v1721 = vld [vmem:[%s1 + $0xf50] sm:$0xff]
        %v1722 = vld [vmem:[%s1 + $0xf58] sm:$0xff]
        %v1723 = vld [vmem:[%s1 + $0xf60] sm:$0xff]
        %v1724 = vld [vmem:[%s1 + $0xf68] sm:$0xff]
        %v1725 = vld [vmem:[%s1 + $0xf70] sm:$0xff]
        %v1726 = vld [vmem:[%s1 + $0xf78] sm:$0xff]
        %v1727 = vld [vmem:[%s1 + $0xf80] sm:$0xff]
        %v1728 = vld [vmem:[%s1 + $0xf88] sm:$0xff]
        %v1729 = vld [vmem:[%s1 + $0xf90] sm:$0xff]
        %v1730 = vld [vmem:[%s1 + $0xf98] sm:$0xff]
        %v1731 = vld [vmem:[%s1 + $0xfa0] sm:$0xff]
        %v1732 = vld [vmem:[%s1 + $0xfa8] sm:$0xff]
        %v1733 = vld [vmem:[%s1 + $0xfb0] sm:$0xff]
        %v1734 = vld [vmem:[%s1 + $0xfb8] sm:$0xff]
        %v1735 = vld [vmem:[%s1 + $0xfc0] sm:$0xff]
        %v1736 = vld [vmem:[%s1 + $0xfc8] sm:$0xff]
        %v1737 = vld [vmem:[%s1 + $0xfd0] sm:$0xff]
        %v1738 = vld [vmem:[%s1 + $0xfd8] sm:$0xff]
        %v1739 = vld [vmem:[%s1 + $0xfe0] sm:$0xff]
        %v1740 = vld [vmem:[%s1 + $0xfe8] sm:$0xff]
        %v1741 = vld [vmem:[%s1 + $0xff0] sm:$0xff]
        %v1742 = vld [vmem:[%s1 + $0xff8] sm:$0xff]
        %v1743 = vld [vmem:[#allocation4] sm:$0x1]
        %v1745 = vlaneseq
        %v1746 = vshrl.u32 %v1745, 7
        %v1747 = vsub.s32 0, %v1746
        %v1748 = vrot.slane %v1743, %v1747
        %1750 = vmatprep.subr.mxu0 0.0
        %1751 = vmatpush1.msra.mxu0 %v1246
        %1752 = vmatprep.subr.mxu0 0.0
        %1753 = vmatpush1.msra.mxu0 %v1245
        %1754 = vmatprep.subr.mxu0 0.0
        %1755 = vmatpush1.msra.mxu0 %v1244
        %1756 = vmatprep.subr.mxu0 0.0
        %1757 = vmatpush1.msra.mxu0 %v1243
        %1758 = vmatprep.subr.mxu0 0.0
        %1759 = vmatpush1.msra.mxu0 %v1242
        %1760 = vmatprep.subr.mxu0 0.0
        %1761 = vmatpush1.msra.mxu0 %v1241
        %1762 = vmatprep.subr.mxu0 0.0
        %1763 = vmatpush1.msra.mxu0 %v1240
        %1764 = vmatprep.subr.mxu0 0.0
        %1765 = vmatpush1.msra.mxu0 %v1239
        %1766 = vmatprep.subr.mxu0 0.0
        %1767 = vmatpush1.msra.mxu0 %v1238
        %1768 = vmatprep.subr.mxu0 0.0
        %1769 = vmatpush1.msra.mxu0 %v1237
        %1770 = vmatprep.subr.mxu0 0.0
        %1771 = vmatpush1.msra.mxu0 %v1236
        %1772 = vmatprep.subr.mxu0 0.0
        %1773 = vmatpush1.msra.mxu0 %v1235
        %1774 = vmatprep.subr.mxu0 0.0
        %1775 = vmatpush1.msra.mxu0 %v1234
        %1776 = vmatprep.subr.mxu0 0.0
        %1777 = vmatpush1.msra.mxu0 %v1233
        %1778 = vmatprep.subr.mxu0 0.0
        %1779 = vmatpush1.msra.mxu0 %v1232
        %1780 = vmatprep.subr.mxu0 0.0
        %1781 = vmatpush1.msra.mxu0 %v1231
        %1782 = vmatprep.subr.mxu0 0.0
        %1783 = vmatpush2.msra.mxu0 %v1262
        %1784 = vmatprep.subr.mxu0 0.0
        %1785 = vmatpush2.msra.mxu0 %v1261
        %1786 = vmatprep.subr.mxu0 0.0
        %1787 = vmatpush2.msra.mxu0 %v1260
        %1788 = vmatprep.subr.mxu0 0.0
        %1789 = vmatpush2.msra.mxu0 %v1259
        %1790 = vmatprep.subr.mxu0 0.0
        %1791 = vmatpush2.msra.mxu0 %v1258
        %1792 = vmatprep.subr.mxu0 0.0
        %1793 = vmatpush2.msra.mxu0 %v1257
        %1794 = vmatprep.subr.mxu0 0.0
        %1795 = vmatpush2.msra.mxu0 %v1256
        %1796 = vmatprep.subr.mxu0 0.0
        %1797 = vmatpush2.msra.mxu0 %v1255
        %1798 = vmatprep.subr.mxu0 0.0
        %1799 = vmatpush2.msra.mxu0 %v1254
        %1800 = vmatprep.subr.mxu0 0.0
        %1801 = vmatpush2.msra.mxu0 %v1253
        %1802 = vmatprep.subr.mxu0 0.0
        %1803 = vmatpush2.msra.mxu0 %v1252
        %1804 = vmatprep.subr.mxu0 0.0
        %1805 = vmatpush2.msra.mxu0 %v1251
        %1806 = vmatprep.subr.mxu0 0.0
        %1807 = vmatpush2.msra.mxu0 %v1250
        %1808 = vmatprep.subr.mxu0 0.0
        %1809 = vmatpush2.msra.mxu0 %v1249
        %1810 = vmatprep.subr.mxu0 0.0
        %1811 = vmatpush2.msra.mxu0 %v1248
        %1812 = vmatprep.subr.mxu0 0.0
        %1813 = vmatpush2.msra.mxu0 %v1247
        %1814 = vmatprep.mubr.f32.mxu0 %v208
        %1815 = vmatmul.mubr.f32.gmra.mxu0 %v207
        %v1816 = vpop.f32.mrf.mxu0
        %v1817 = vadd.f32 %v1748, %v1816
        %v1818 = vpop.f32.mrf.mxu0
        %1819 = vmatprep.mubr.f32.mxu0 %v240
        %1820 = vmatmul.mubr.f32.gmra.mxu0 %v239
        %v1821 = vpop.f32.mrf.mxu0
        %v1822 = vadd.f32 %v1748, %v1821
        %v1823 = vpop.f32.mrf.mxu0
        %1824 = vmatprep.mubr.f32.mxu0 %v272
        %1825 = vmatmul.mubr.f32.gmra.mxu0 %v271
        %v1826 = vpop.f32.mrf.mxu0
        %v1827 = vadd.f32 %v1748, %v1826
        %v1828 = vpop.f32.mrf.mxu0
        %1829 = vmatprep.mubr.f32.mxu0 %v304
        %1830 = vmatmul.mubr.f32.gmra.mxu0 %v303
        %v1831 = vpop.f32.mrf.mxu0
        %v1832 = vadd.f32 %v1748, %v1831
        %v1833 = vpop.f32.mrf.mxu0
        %1834 = vmatprep.mubr.f32.mxu0 %v336
        %1835 = vmatmul.mubr.f32.gmra.mxu0 %v335
        %v1836 = vpop.f32.mrf.mxu0
        %v1837 = vadd.f32 %v1748, %v1836
        %v1838 = vpop.f32.mrf.mxu0
        %1839 = vmatprep.mubr.f32.mxu0 %v368
        %1840 = vmatmul.mubr.f32.gmra.mxu0 %v367
        %v1841 = vpop.f32.mrf.mxu0
        %v1842 = vadd.f32 %v1748, %v1841
        %v1843 = vpop.f32.mrf.mxu0
        %1844 = vmatprep.mubr.f32.mxu0 %v400
        %1845 = vmatmul.mubr.f32.gmra.mxu0 %v399
        %v1846 = vpop.f32.mrf.mxu0
        %v1847 = vadd.f32 %v1748, %v1846
        %v1848 = vpop.f32.mrf.mxu0
        %1849 = vmatprep.mubr.f32.mxu0 %v432
        %1850 = vmatmul.mubr.f32.gmra.mxu0 %v431
        %v1851 = vpop.f32.mrf.mxu0
        %v1852 = vadd.f32 %v1748, %v1851
        %v1853 = vpop.f32.mrf.mxu0
        %1854 = vmatprep.mubr.f32.mxu0 %v464
        %1855 = vmatmul.mubr.f32.gmra.mxu0 %v463
        %v1856 = vpop.f32.mrf.mxu0
        %v1857 = vadd.f32 %v1748, %v1856
        %v1858 = vpop.f32.mrf.mxu0
        %1859 = vmatprep.mubr.f32.mxu0 %v496
        %1860 = vmatmul.mubr.f32.gmra.mxu0 %v495
        %v1861 = vpop.f32.mrf.mxu0
        %v1862 = vadd.f32 %v1748, %v1861
        %v1863 = vpop.f32.mrf.mxu0
        %1864 = vmatprep.mubr.f32.mxu0 %v528
        %1865 = vmatmul.mubr.f32.gmra.mxu0 %v527
        %v1866 = vpop.f32.mrf.mxu0
        %v1867 = vadd.f32 %v1748, %v1866
        %v1868 = vpop.f32.mrf.mxu0
        %1869 = vmatprep.mubr.f32.mxu0 %v560
        %1870 = vmatmul.mubr.f32.gmra.mxu0 %v559
        %v1871 = vpop.f32.mrf.mxu0
        %v1872 = vadd.f32 %v1748, %v1871
        %v1873 = vpop.f32.mrf.mxu0
        %1874 = vmatprep.mubr.f32.mxu0 %v592
        %1875 = vmatmul.mubr.f32.gmra.mxu0 %v591
        %v1876 = vpop.f32.mrf.mxu0
        %v1877 = vadd.f32 %v1748, %v1876
        %v1878 = vpop.f32.mrf.mxu0
        %1879 = vmatprep.mubr.f32.mxu0 %v624
        %1880 = vmatmul.mubr.f32.gmra.mxu0 %v623
        %v1881 = vpop.f32.mrf.mxu0
        %v1882 = vadd.f32 %v1748, %v1881
        %v1883 = vpop.f32.mrf.mxu0
        %1884 = vmatprep.mubr.f32.mxu0 %v656
        %1885 = vmatmul.mubr.f32.gmra.mxu0 %v655
        %v1886 = vpop.f32.mrf.mxu0
        %v1887 = vadd.f32 %v1748, %v1886
        %v1888 = vpop.f32.mrf.mxu0
        %1889 = vmatprep.mubr.f32.mxu0 %v688
        %1890 = vmatmul.mubr.f32.gmra.mxu0 %v687
        %v1891 = vpop.f32.mrf.mxu0
        %v1892 = vadd.f32 %v1748, %v1891
        %v1893 = vpop.f32.mrf.mxu0
        %1894 = vmatprep.mubr.f32.mxu0 %v720
        %1895 = vmatmul.mubr.f32.gmra.mxu0 %v719
        %v1896 = vpop.f32.mrf.mxu0
        %v1897 = vadd.f32 %v1748, %v1896
        %v1898 = vpop.f32.mrf.mxu0
        %1899 = vmatprep.mubr.f32.mxu0 %v752
        %1900 = vmatmul.mubr.f32.gmra.mxu0 %v751
        %v1901 = vpop.f32.mrf.mxu0
        %v1902 = vadd.f32 %v1748, %v1901
        %v1903 = vpop.f32.mrf.mxu0
        %1904 = vmatprep.mubr.f32.mxu0 %v784
        %1905 = vmatmul.mubr.f32.gmra.mxu0 %v783
        %v1906 = vpop.f32.mrf.mxu0
        %v1907 = vadd.f32 %v1748, %v1906
        %v1908 = vpop.f32.mrf.mxu0
        %1909 = vmatprep.mubr.f32.mxu0 %v816
        %1910 = vmatmul.mubr.f32.gmra.mxu0 %v815
        %v1911 = vpop.f32.mrf.mxu0
        %v1912 = vadd.f32 %v1748, %v1911
        %v1913 = vpop.f32.mrf.mxu0
        %1914 = vmatprep.mubr.f32.mxu0 %v848
        %1915 = vmatmul.mubr.f32.gmra.mxu0 %v847
        %v1916 = vpop.f32.mrf.mxu0
        %v1917 = vadd.f32 %v1748, %v1916
        %v1918 = vpop.f32.mrf.mxu0
        %1919 = vmatprep.mubr.f32.mxu0 %v880
        %1920 = vmatmul.mubr.f32.gmra.mxu0 %v879
        %v1921 = vpop.f32.mrf.mxu0
        %v1922 = vadd.f32 %v1748, %v1921
        %v1923 = vpop.f32.mrf.mxu0
        %1924 = vmatprep.mubr.f32.mxu0 %v912
        %1925 = vmatmul.mubr.f32.gmra.mxu0 %v911
        %v1926 = vpop.f32.mrf.mxu0
        %v1927 = vadd.f32 %v1748, %v1926
        %v1928 = vpop.f32.mrf.mxu0
        %1929 = vmatprep.mubr.f32.mxu0 %v944
        %1930 = vmatmul.mubr.f32.gmra.mxu0 %v943
        %v1931 = vpop.f32.mrf.mxu0
        %v1932 = vadd.f32 %v1748, %v1931
        %v1933 = vpop.f32.mrf.mxu0
        %1934 = vmatprep.mubr.f32.mxu0 %v976
        %1935 = vmatmul.mubr.f32.gmra.mxu0 %v975
        %v1936 = vpop.f32.mrf.mxu0
        %v1937 = vadd.f32 %v1748, %v1936
        %v1938 = vpop.f32.mrf.mxu0
        %1939 = vmatprep.mubr.f32.mxu0 %v1008
        %1940 = vmatmul.mubr.f32.gmra.mxu0 %v1007
        %v1941 = vpop.f32.mrf.mxu0
        %v1942 = vadd.f32 %v1748, %v1941
        %v1943 = vpop.f32.mrf.mxu0
        %1944 = vmatprep.mubr.f32.mxu0 %v1040
        %1945 = vmatmul.mubr.f32.gmra.mxu0 %v1039
        %v1946 = vpop.f32.mrf.mxu0
        %v1947 = vadd.f32 %v1748, %v1946
        %v1948 = vpop.f32.mrf.mxu0
        %1949 = vmatprep.mubr.f32.mxu0 %v1072
        %1950 = vmatmul.mubr.f32.gmra.mxu0 %v1071
        %v1951 = vpop.f32.mrf.mxu0
        %v1952 = vadd.f32 %v1748, %v1951
        %v1953 = vpop.f32.mrf.mxu0
        %1954 = vmatprep.mubr.f32.mxu0 %v1104
        %1955 = vmatmul.mubr.f32.gmra.mxu0 %v1103
        %v1956 = vpop.f32.mrf.mxu0
        %v1957 = vadd.f32 %v1748, %v1956
        %v1958 = vpop.f32.mrf.mxu0
        %1959 = vmatprep.mubr.f32.mxu0 %v1136
        %1960 = vmatmul.mubr.f32.gmra.mxu0 %v1135
        %v1961 = vpop.f32.mrf.mxu0
        %v1962 = vadd.f32 %v1748, %v1961
        %v1963 = vpop.f32.mrf.mxu0
        %1964 = vmatprep.mubr.f32.mxu0 %v1168
        %1965 = vmatmul.mubr.f32.gmra.mxu0 %v1167
        %v1966 = vpop.f32.mrf.mxu0
        %v1967 = vadd.f32 %v1748, %v1966
        %v1968 = vpop.f32.mrf.mxu0
        %1969 = vmatprep.mubr.f32.mxu0 %v1200
        %1970 = vmatmul.mubr.f32.gmra.mxu0 %v1199
        %v1971 = vpop.f32.mrf.mxu0
        %v1972 = vadd.f32 %v1748, %v1971
        %v1973 = vpop.f32.mrf.mxu0
        %1974 = vdwg.mxu0
        %1975 = vmatprep.subr.mxu0 0.0
        %1976 = vmatpush1.msra.mxu0 %v1278
        %1977 = vmatprep.subr.mxu0 0.0
        %1978 = vmatpush1.msra.mxu0 %v1277
        %1979 = vmatprep.subr.mxu0 0.0
        %1980 = vmatpush1.msra.mxu0 %v1276
        %1981 = vmatprep.subr.mxu0 0.0
        %1982 = vmatpush1.msra.mxu0 %v1275
        %1983 = vmatprep.subr.mxu0 0.0
        %1984 = vmatpush1.msra.mxu0 %v1274
        %1985 = vmatprep.subr.mxu0 0.0
        %1986 = vmatpush1.msra.mxu0 %v1273
        %1987 = vmatprep.subr.mxu0 0.0
        %1988 = vmatpush1.msra.mxu0 %v1272
        %1989 = vmatprep.subr.mxu0 0.0
        %1990 = vmatpush1.msra.mxu0 %v1271
        %1991 = vmatprep.subr.mxu0 0.0
        %1992 = vmatpush1.msra.mxu0 %v1270
        %1993 = vmatprep.subr.mxu0 0.0
        %1994 = vmatpush1.msra.mxu0 %v1269
        %1995 = vmatprep.subr.mxu0 0.0
        %1996 = vmatpush1.msra.mxu0 %v1268
        %1997 = vmatprep.subr.mxu0 0.0
        %1998 = vmatpush1.msra.mxu0 %v1267
        %1999 = vmatprep.subr.mxu0 0.0
        %2000 = vmatpush1.msra.mxu0 %v1266
        %2001 = vmatprep.subr.mxu0 0.0
        %2002 = vmatpush1.msra.mxu0 %v1265
        %2003 = vmatprep.subr.mxu0 0.0
        %2004 = vmatpush1.msra.mxu0 %v1264
        %2005 = vmatprep.subr.mxu0 0.0
        %2006 = vmatpush1.msra.mxu0 %v1263
        %2007 = vmatprep.subr.mxu0 0.0
        %2008 = vmatpush2.msra.mxu0 %v1294
        %2009 = vmatprep.subr.mxu0 0.0
        %2010 = vmatpush2.msra.mxu0 %v1293
        %2011 = vmatprep.subr.mxu0 0.0
        %2012 = vmatpush2.msra.mxu0 %v1292
        %2013 = vmatprep.subr.mxu0 0.0
        %2014 = vmatpush2.msra.mxu0 %v1291
        %2015 = vmatprep.subr.mxu0 0.0
        %2016 = vmatpush2.msra.mxu0 %v1290
        %2017 = vmatprep.subr.mxu0 0.0
        %2018 = vmatpush2.msra.mxu0 %v1289
        %2019 = vmatprep.subr.mxu0 0.0
        %2020 = vmatpush2.msra.mxu0 %v1288
        %2021 = vmatprep.subr.mxu0 0.0
        %2022 = vmatpush2.msra.mxu0 %v1287
        %2023 = vmatprep.subr.mxu0 0.0
        %2024 = vmatpush2.msra.mxu0 %v1286
        %2025 = vmatprep.subr.mxu0 0.0
        %2026 = vmatpush2.msra.mxu0 %v1285
        %2027 = vmatprep.subr.mxu0 0.0
        %2028 = vmatpush2.msra.mxu0 %v1284
        %2029 = vmatprep.subr.mxu0 0.0
        %2030 = vmatpush2.msra.mxu0 %v1283
        %2031 = vmatprep.subr.mxu0 0.0
        %2032 = vmatpush2.msra.mxu0 %v1282
        %2033 = vmatprep.subr.mxu0 0.0
        %2034 = vmatpush2.msra.mxu0 %v1281
        %2035 = vmatprep.subr.mxu0 0.0
        %2036 = vmatpush2.msra.mxu0 %v1280
        %2037 = vmatprep.subr.mxu0 0.0
        %2038 = vmatpush2.msra.mxu0 %v1279
        %2039 = vmatprep.mubr.f32.mxu0 %v210
        %2040 = vmatmul.mubr.f32.gmra.mxu0 %v209
        %v2041 = vpop.f32.mrf.mxu0
        %v2042 = vadd.f32 %v1817, %v2041
        %v2043 = vpop.f32.mrf.mxu0
        %2044 = vmatprep.mubr.f32.mxu0 %v242
        %2045 = vmatmul.mubr.f32.gmra.mxu0 %v241
        %v2046 = vpop.f32.mrf.mxu0
        %v2047 = vadd.f32 %v1822, %v2046
        %v2048 = vpop.f32.mrf.mxu0
        %2049 = vmatprep.mubr.f32.mxu0 %v274
        %2050 = vmatmul.mubr.f32.gmra.mxu0 %v273
        %v2051 = vpop.f32.mrf.mxu0
        %v2052 = vadd.f32 %v1827, %v2051
        %v2053 = vpop.f32.mrf.mxu0
        %2054 = vmatprep.mubr.f32.mxu0 %v306
        %2055 = vmatmul.mubr.f32.gmra.mxu0 %v305
        %v2056 = vpop.f32.mrf.mxu0
        %v2057 = vadd.f32 %v1832, %v2056
        %v2058 = vpop.f32.mrf.mxu0
        %2059 = vmatprep.mubr.f32.mxu0 %v338
        %2060 = vmatmul.mubr.f32.gmra.mxu0 %v337
        %v2061 = vpop.f32.mrf.mxu0
        %v2062 = vadd.f32 %v1837, %v2061
        %v2063 = vpop.f32.mrf.mxu0
        %2064 = vmatprep.mubr.f32.mxu0 %v370
        %2065 = vmatmul.mubr.f32.gmra.mxu0 %v369
        %v2066 = vpop.f32.mrf.mxu0
        %v2067 = vadd.f32 %v1842, %v2066
        %v2068 = vpop.f32.mrf.mxu0
        %2069 = vmatprep.mubr.f32.mxu0 %v402
        %2070 = vmatmul.mubr.f32.gmra.mxu0 %v401
        %v2071 = vpop.f32.mrf.mxu0
        %v2072 = vadd.f32 %v1847, %v2071
        %v2073 = vpop.f32.mrf.mxu0
        %2074 = vmatprep.mubr.f32.mxu0 %v434
        %2075 = vmatmul.mubr.f32.gmra.mxu0 %v433
        %v2076 = vpop.f32.mrf.mxu0
        %v2077 = vadd.f32 %v1852, %v2076
        %v2078 = vpop.f32.mrf.mxu0
        %2079 = vmatprep.mubr.f32.mxu0 %v466
        %2080 = vmatmul.mubr.f32.gmra.mxu0 %v465
        %v2081 = vpop.f32.mrf.mxu0
        %v2082 = vadd.f32 %v1857, %v2081
        %v2083 = vpop.f32.mrf.mxu0
        %2084 = vmatprep.mubr.f32.mxu0 %v498
        %2085 = vmatmul.mubr.f32.gmra.mxu0 %v497
        %v2086 = vpop.f32.mrf.mxu0
        %v2087 = vadd.f32 %v1862, %v2086
        %v2088 = vpop.f32.mrf.mxu0
        %2089 = vmatprep.mubr.f32.mxu0 %v530
        %2090 = vmatmul.mubr.f32.gmra.mxu0 %v529
        %v2091 = vpop.f32.mrf.mxu0
        %v2092 = vadd.f32 %v1867, %v2091
        %v2093 = vpop.f32.mrf.mxu0
        %2094 = vmatprep.mubr.f32.mxu0 %v562
        %2095 = vmatmul.mubr.f32.gmra.mxu0 %v561
        %v2096 = vpop.f32.mrf.mxu0
        %v2097 = vadd.f32 %v1872, %v2096
        %v2098 = vpop.f32.mrf.mxu0
        %2099 = vmatprep.mubr.f32.mxu0 %v594
        %2100 = vmatmul.mubr.f32.gmra.mxu0 %v593
        %v2101 = vpop.f32.mrf.mxu0
        %v2102 = vadd.f32 %v1877, %v2101
        %v2103 = vpop.f32.mrf.mxu0
        %2104 = vmatprep.mubr.f32.mxu0 %v626
        %2105 = vmatmul.mubr.f32.gmra.mxu0 %v625
        %v2106 = vpop.f32.mrf.mxu0
        %v2107 = vadd.f32 %v1882, %v2106
        %v2108 = vpop.f32.mrf.mxu0
        %2109 = vmatprep.mubr.f32.mxu0 %v658
        %2110 = vmatmul.mubr.f32.gmra.mxu0 %v657
        %v2111 = vpop.f32.mrf.mxu0
        %v2112 = vadd.f32 %v1887, %v2111
        %v2113 = vpop.f32.mrf.mxu0
        %2114 = vmatprep.mubr.f32.mxu0 %v690
        %2115 = vmatmul.mubr.f32.gmra.mxu0 %v689
        %v2116 = vpop.f32.mrf.mxu0
        %v2117 = vadd.f32 %v1892, %v2116
        %v2118 = vpop.f32.mrf.mxu0
        %2119 = vmatprep.mubr.f32.mxu0 %v722
        %2120 = vmatmul.mubr.f32.gmra.mxu0 %v721
        %v2121 = vpop.f32.mrf.mxu0
        %v2122 = vadd.f32 %v1897, %v2121
        %v2123 = vpop.f32.mrf.mxu0
        %2124 = vmatprep.mubr.f32.mxu0 %v754
        %2125 = vmatmul.mubr.f32.gmra.mxu0 %v753
        %v2126 = vpop.f32.mrf.mxu0
        %v2127 = vadd.f32 %v1902, %v2126
        %v2128 = vpop.f32.mrf.mxu0
        %2129 = vmatprep.mubr.f32.mxu0 %v786
        %2130 = vmatmul.mubr.f32.gmra.mxu0 %v785
        %v2131 = vpop.f32.mrf.mxu0
        %v2132 = vadd.f32 %v1907, %v2131
        %v2133 = vpop.f32.mrf.mxu0
        %2134 = vmatprep.mubr.f32.mxu0 %v818
        %2135 = vmatmul.mubr.f32.gmra.mxu0 %v817
        %v2136 = vpop.f32.mrf.mxu0
        %v2137 = vadd.f32 %v1912, %v2136
        %v2138 = vpop.f32.mrf.mxu0
        %2139 = vmatprep.mubr.f32.mxu0 %v850
        %2140 = vmatmul.mubr.f32.gmra.mxu0 %v849
        %v2141 = vpop.f32.mrf.mxu0
        %v2142 = vadd.f32 %v1917, %v2141
        %v2143 = vpop.f32.mrf.mxu0
        %2144 = vmatprep.mubr.f32.mxu0 %v882
        %2145 = vmatmul.mubr.f32.gmra.mxu0 %v881
        %v2146 = vpop.f32.mrf.mxu0
        %v2147 = vadd.f32 %v1922, %v2146
        %v2148 = vpop.f32.mrf.mxu0
        %2149 = vmatprep.mubr.f32.mxu0 %v914
        %2150 = vmatmul.mubr.f32.gmra.mxu0 %v913
        %v2151 = vpop.f32.mrf.mxu0
        %v2152 = vadd.f32 %v1927, %v2151
        %v2153 = vpop.f32.mrf.mxu0
        %2154 = vmatprep.mubr.f32.mxu0 %v946
        %2155 = vmatmul.mubr.f32.gmra.mxu0 %v945
        %v2156 = vpop.f32.mrf.mxu0
        %v2157 = vadd.f32 %v1932, %v2156
        %v2158 = vpop.f32.mrf.mxu0
        %2159 = vmatprep.mubr.f32.mxu0 %v978
        %2160 = vmatmul.mubr.f32.gmra.mxu0 %v977
        %v2161 = vpop.f32.mrf.mxu0
        %v2162 = vadd.f32 %v1937, %v2161
        %v2163 = vpop.f32.mrf.mxu0
        %2164 = vmatprep.mubr.f32.mxu0 %v1010
        %2165 = vmatmul.mubr.f32.gmra.mxu0 %v1009
        %v2166 = vpop.f32.mrf.mxu0
        %v2167 = vadd.f32 %v1942, %v2166
        %v2168 = vpop.f32.mrf.mxu0
        %2169 = vmatprep.mubr.f32.mxu0 %v1042
        %2170 = vmatmul.mubr.f32.gmra.mxu0 %v1041
        %v2171 = vpop.f32.mrf.mxu0
        %v2172 = vadd.f32 %v1947, %v2171
        %v2173 = vpop.f32.mrf.mxu0
        %2174 = vmatprep.mubr.f32.mxu0 %v1074
        %2175 = vmatmul.mubr.f32.gmra.mxu0 %v1073
        %v2176 = vpop.f32.mrf.mxu0
        %v2177 = vadd.f32 %v1952, %v2176
        %v2178 = vpop.f32.mrf.mxu0
        %2179 = vmatprep.mubr.f32.mxu0 %v1106
        %2180 = vmatmul.mubr.f32.gmra.mxu0 %v1105
        %v2181 = vpop.f32.mrf.mxu0
        %v2182 = vadd.f32 %v1957, %v2181
        %v2183 = vpop.f32.mrf.mxu0
        %2184 = vmatprep.mubr.f32.mxu0 %v1138
        %2185 = vmatmul.mubr.f32.gmra.mxu0 %v1137
        %v2186 = vpop.f32.mrf.mxu0
        %v2187 = vadd.f32 %v1962, %v2186
        %v2188 = vpop.f32.mrf.mxu0
        %2189 = vmatprep.mubr.f32.mxu0 %v1170
        %2190 = vmatmul.mubr.f32.gmra.mxu0 %v1169
        %v2191 = vpop.f32.mrf.mxu0
        %v2192 = vadd.f32 %v1967, %v2191
        %v2193 = vpop.f32.mrf.mxu0
        %2194 = vmatprep.mubr.f32.mxu0 %v1202
        %2195 = vmatmul.mubr.f32.gmra.mxu0 %v1201
        %v2196 = vpop.f32.mrf.mxu0
        %v2197 = vadd.f32 %v1972, %v2196
        %v2198 = vpop.f32.mrf.mxu0
        %2199 = vdwg.mxu0
        %2200 = vmatprep.subr.mxu0 0.0
        %2201 = vmatpush1.msra.mxu0 %v1310
        %2202 = vmatprep.subr.mxu0 0.0
        %2203 = vmatpush1.msra.mxu0 %v1309
        %2204 = vmatprep.subr.mxu0 0.0
        %2205 = vmatpush1.msra.mxu0 %v1308
        %2206 = vmatprep.subr.mxu0 0.0
        %2207 = vmatpush1.msra.mxu0 %v1307
        %2208 = vmatprep.subr.mxu0 0.0
        %2209 = vmatpush1.msra.mxu0 %v1306
        %2210 = vmatprep.subr.mxu0 0.0
        %2211 = vmatpush1.msra.mxu0 %v1305
        %2212 = vmatprep.subr.mxu0 0.0
        %2213 = vmatpush1.msra.mxu0 %v1304
        %2214 = vmatprep.subr.mxu0 0.0
        %2215 = vmatpush1.msra.mxu0 %v1303
        %2216 = vmatprep.subr.mxu0 0.0
        %2217 = vmatpush1.msra.mxu0 %v1302
        %2218 = vmatprep.subr.mxu0 0.0
        %2219 = vmatpush1.msra.mxu0 %v1301
        %2220 = vmatprep.subr.mxu0 0.0
        %2221 = vmatpush1.msra.mxu0 %v1300
        %2222 = vmatprep.subr.mxu0 0.0
        %2223 = vmatpush1.msra.mxu0 %v1299
        %2224 = vmatprep.subr.mxu0 0.0
        %2225 = vmatpush1.msra.mxu0 %v1298
        %2226 = vmatprep.subr.mxu0 0.0
        %2227 = vmatpush1.msra.mxu0 %v1297
        %2228 = vmatprep.subr.mxu0 0.0
        %2229 = vmatpush1.msra.mxu0 %v1296
        %2230 = vmatprep.subr.mxu0 0.0
        %2231 = vmatpush1.msra.mxu0 %v1295
        %2232 = vmatprep.subr.mxu0 0.0
        %2233 = vmatpush2.msra.mxu0 %v1326
        %2234 = vmatprep.subr.mxu0 0.0
        %2235 = vmatpush2.msra.mxu0 %v1325
        %2236 = vmatprep.subr.mxu0 0.0
        %2237 = vmatpush2.msra.mxu0 %v1324
        %2238 = vmatprep.subr.mxu0 0.0
        %2239 = vmatpush2.msra.mxu0 %v1323
        %2240 = vmatprep.subr.mxu0 0.0
        %2241 = vmatpush2.msra.mxu0 %v1322
        %2242 = vmatprep.subr.mxu0 0.0
        %2243 = vmatpush2.msra.mxu0 %v1321
        %2244 = vmatprep.subr.mxu0 0.0
        %2245 = vmatpush2.msra.mxu0 %v1320
        %2246 = vmatprep.subr.mxu0 0.0
        %2247 = vmatpush2.msra.mxu0 %v1319
        %2248 = vmatprep.subr.mxu0 0.0
        %2249 = vmatpush2.msra.mxu0 %v1318
        %2250 = vmatprep.subr.mxu0 0.0
        %2251 = vmatpush2.msra.mxu0 %v1317
        %2252 = vmatprep.subr.mxu0 0.0
        %2253 = vmatpush2.msra.mxu0 %v1316
        %2254 = vmatprep.subr.mxu0 0.0
        %2255 = vmatpush2.msra.mxu0 %v1315
        %2256 = vmatprep.subr.mxu0 0.0
        %2257 = vmatpush2.msra.mxu0 %v1314
        %2258 = vmatprep.subr.mxu0 0.0
        %2259 = vmatpush2.msra.mxu0 %v1313
        %2260 = vmatprep.subr.mxu0 0.0
        %2261 = vmatpush2.msra.mxu0 %v1312
        %2262 = vmatprep.subr.mxu0 0.0
        %2263 = vmatpush2.msra.mxu0 %v1311
        %2264 = vmatprep.mubr.f32.mxu0 %v212
        %2265 = vmatmul.mubr.f32.gmra.mxu0 %v211
        %v2266 = vpop.f32.mrf.mxu0
        %v2267 = vadd.f32 %v2042, %v2266
        %v2268 = vpop.f32.mrf.mxu0
        %2269 = vmatprep.mubr.f32.mxu0 %v244
        %2270 = vmatmul.mubr.f32.gmra.mxu0 %v243
        %v2271 = vpop.f32.mrf.mxu0
        %v2272 = vadd.f32 %v2047, %v2271
        %v2273 = vpop.f32.mrf.mxu0
        %2274 = vmatprep.mubr.f32.mxu0 %v276
        %2275 = vmatmul.mubr.f32.gmra.mxu0 %v275
        %v2276 = vpop.f32.mrf.mxu0
        %v2277 = vadd.f32 %v2052, %v2276
        %v2278 = vpop.f32.mrf.mxu0
        %2279 = vmatprep.mubr.f32.mxu0 %v308
        %2280 = vmatmul.mubr.f32.gmra.mxu0 %v307
        %v2281 = vpop.f32.mrf.mxu0
        %v2282 = vadd.f32 %v2057, %v2281
        %v2283 = vpop.f32.mrf.mxu0
        %2284 = vmatprep.mubr.f32.mxu0 %v340
        %2285 = vmatmul.mubr.f32.gmra.mxu0 %v339
        %v2286 = vpop.f32.mrf.mxu0
        %v2287 = vadd.f32 %v2062, %v2286
        %v2288 = vpop.f32.mrf.mxu0
        %2289 = vmatprep.mubr.f32.mxu0 %v372
        %2290 = vmatmul.mubr.f32.gmra.mxu0 %v371
        %v2291 = vpop.f32.mrf.mxu0
        %v2292 = vadd.f32 %v2067, %v2291
        %v2293 = vpop.f32.mrf.mxu0
        %2294 = vmatprep.mubr.f32.mxu0 %v404
        %2295 = vmatmul.mubr.f32.gmra.mxu0 %v403
        %v2296 = vpop.f32.mrf.mxu0
        %v2297 = vadd.f32 %v2072, %v2296
        %v2298 = vpop.f32.mrf.mxu0
        %2299 = vmatprep.mubr.f32.mxu0 %v436
        %2300 = vmatmul.mubr.f32.gmra.mxu0 %v435
        %v2301 = vpop.f32.mrf.mxu0
        %v2302 = vadd.f32 %v2077, %v2301
        %v2303 = vpop.f32.mrf.mxu0
        %2304 = vmatprep.mubr.f32.mxu0 %v468
        %2305 = vmatmul.mubr.f32.gmra.mxu0 %v467
        %v2306 = vpop.f32.mrf.mxu0
        %v2307 = vadd.f32 %v2082, %v2306
        %v2308 = vpop.f32.mrf.mxu0
        %2309 = vmatprep.mubr.f32.mxu0 %v500
        %2310 = vmatmul.mubr.f32.gmra.mxu0 %v499
        %v2311 = vpop.f32.mrf.mxu0
        %v2312 = vadd.f32 %v2087, %v2311
        %v2313 = vpop.f32.mrf.mxu0
        %2314 = vmatprep.mubr.f32.mxu0 %v532
        %2315 = vmatmul.mubr.f32.gmra.mxu0 %v531
        %v2316 = vpop.f32.mrf.mxu0
        %v2317 = vadd.f32 %v2092, %v2316
        %v2318 = vpop.f32.mrf.mxu0
        %2319 = vmatprep.mubr.f32.mxu0 %v564
        %2320 = vmatmul.mubr.f32.gmra.mxu0 %v563
        %v2321 = vpop.f32.mrf.mxu0
        %v2322 = vadd.f32 %v2097, %v2321
        %v2323 = vpop.f32.mrf.mxu0
        %2324 = vmatprep.mubr.f32.mxu0 %v596
        %2325 = vmatmul.mubr.f32.gmra.mxu0 %v595
        %v2326 = vpop.f32.mrf.mxu0
        %v2327 = vadd.f32 %v2102, %v2326
        %v2328 = vpop.f32.mrf.mxu0
        %2329 = vmatprep.mubr.f32.mxu0 %v628
        %2330 = vmatmul.mubr.f32.gmra.mxu0 %v627
        %v2331 = vpop.f32.mrf.mxu0
        %v2332 = vadd.f32 %v2107, %v2331
        %v2333 = vpop.f32.mrf.mxu0
        %2334 = vmatprep.mubr.f32.mxu0 %v660
        %2335 = vmatmul.mubr.f32.gmra.mxu0 %v659
        %v2336 = vpop.f32.mrf.mxu0
        %v2337 = vadd.f32 %v2112, %v2336
        %v2338 = vpop.f32.mrf.mxu0
        %2339 = vmatprep.mubr.f32.mxu0 %v692
        %2340 = vmatmul.mubr.f32.gmra.mxu0 %v691
        %v2341 = vpop.f32.mrf.mxu0
        %v2342 = vadd.f32 %v2117, %v2341
        %v2343 = vpop.f32.mrf.mxu0
        %2344 = vmatprep.mubr.f32.mxu0 %v724
        %2345 = vmatmul.mubr.f32.gmra.mxu0 %v723
        %v2346 = vpop.f32.mrf.mxu0
        %v2347 = vadd.f32 %v2122, %v2346
        %v2348 = vpop.f32.mrf.mxu0
        %2349 = vmatprep.mubr.f32.mxu0 %v756
        %2350 = vmatmul.mubr.f32.gmra.mxu0 %v755
        %v2351 = vpop.f32.mrf.mxu0
        %v2352 = vadd.f32 %v2127, %v2351
        %v2353 = vpop.f32.mrf.mxu0
        %2354 = vmatprep.mubr.f32.mxu0 %v788
        %2355 = vmatmul.mubr.f32.gmra.mxu0 %v787
        %v2356 = vpop.f32.mrf.mxu0
        %v2357 = vadd.f32 %v2132, %v2356
        %v2358 = vpop.f32.mrf.mxu0
        %2359 = vmatprep.mubr.f32.mxu0 %v820
        %2360 = vmatmul.mubr.f32.gmra.mxu0 %v819
        %v2361 = vpop.f32.mrf.mxu0
        %v2362 = vadd.f32 %v2137, %v2361
        %v2363 = vpop.f32.mrf.mxu0
        %2364 = vmatprep.mubr.f32.mxu0 %v852
        %2365 = vmatmul.mubr.f32.gmra.mxu0 %v851
        %v2366 = vpop.f32.mrf.mxu0
        %v2367 = vadd.f32 %v2142, %v2366
        %v2368 = vpop.f32.mrf.mxu0
        %2369 = vmatprep.mubr.f32.mxu0 %v884
        %2370 = vmatmul.mubr.f32.gmra.mxu0 %v883
        %v2371 = vpop.f32.mrf.mxu0
        %v2372 = vadd.f32 %v2147, %v2371
        %v2373 = vpop.f32.mrf.mxu0
        %2374 = vmatprep.mubr.f32.mxu0 %v916
        %2375 = vmatmul.mubr.f32.gmra.mxu0 %v915
        %v2376 = vpop.f32.mrf.mxu0
        %v2377 = vadd.f32 %v2152, %v2376
        %v2378 = vpop.f32.mrf.mxu0
        %2379 = vmatprep.mubr.f32.mxu0 %v948
        %2380 = vmatmul.mubr.f32.gmra.mxu0 %v947
        %v2381 = vpop.f32.mrf.mxu0
        %v2382 = vadd.f32 %v2157, %v2381
        %v2383 = vpop.f32.mrf.mxu0
        %2384 = vmatprep.mubr.f32.mxu0 %v980
        %2385 = vmatmul.mubr.f32.gmra.mxu0 %v979
        %v2386 = vpop.f32.mrf.mxu0
        %v2387 = vadd.f32 %v2162, %v2386
        %v2388 = vpop.f32.mrf.mxu0
        %2389 = vmatprep.mubr.f32.mxu0 %v1012
        %2390 = vmatmul.mubr.f32.gmra.mxu0 %v1011
        %v2391 = vpop.f32.mrf.mxu0
        %v2392 = vadd.f32 %v2167, %v2391
        %v2393 = vpop.f32.mrf.mxu0
        %2394 = vmatprep.mubr.f32.mxu0 %v1044
        %2395 = vmatmul.mubr.f32.gmra.mxu0 %v1043
        %v2396 = vpop.f32.mrf.mxu0
        %v2397 = vadd.f32 %v2172, %v2396
        %v2398 = vpop.f32.mrf.mxu0
        %2399 = vmatprep.mubr.f32.mxu0 %v1076
        %2400 = vmatmul.mubr.f32.gmra.mxu0 %v1075
        %v2401 = vpop.f32.mrf.mxu0
        %v2402 = vadd.f32 %v2177, %v2401
        %v2403 = vpop.f32.mrf.mxu0
        %2404 = vmatprep.mubr.f32.mxu0 %v1108
        %2405 = vmatmul.mubr.f32.gmra.mxu0 %v1107
        %v2406 = vpop.f32.mrf.mxu0
        %v2407 = vadd.f32 %v2182, %v2406
        %v2408 = vpop.f32.mrf.mxu0
        %2409 = vmatprep.mubr.f32.mxu0 %v1140
        %2410 = vmatmul.mubr.f32.gmra.mxu0 %v1139
        %v2411 = vpop.f32.mrf.mxu0
        %v2412 = vadd.f32 %v2187, %v2411
        %v2413 = vpop.f32.mrf.mxu0
        %2414 = vmatprep.mubr.f32.mxu0 %v1172
        %2415 = vmatmul.mubr.f32.gmra.mxu0 %v1171
        %v2416 = vpop.f32.mrf.mxu0
        %v2417 = vadd.f32 %v2192, %v2416
        %v2418 = vpop.f32.mrf.mxu0
        %2419 = vmatprep.mubr.f32.mxu0 %v1204
        %2420 = vmatmul.mubr.f32.gmra.mxu0 %v1203
        %v2421 = vpop.f32.mrf.mxu0
        %v2422 = vadd.f32 %v2197, %v2421
        %v2423 = vpop.f32.mrf.mxu0
        %2424 = vdwg.mxu0
        %2425 = vmatprep.subr.mxu0 0.0
        %2426 = vmatpush1.msra.mxu0 %v1342
        %2427 = vmatprep.subr.mxu0 0.0
        %2428 = vmatpush1.msra.mxu0 %v1341
        %2429 = vmatprep.subr.mxu0 0.0
        %2430 = vmatpush1.msra.mxu0 %v1340
        %2431 = vmatprep.subr.mxu0 0.0
        %2432 = vmatpush1.msra.mxu0 %v1339
        %2433 = vmatprep.subr.mxu0 0.0
        %2434 = vmatpush1.msra.mxu0 %v1338
        %2435 = vmatprep.subr.mxu0 0.0
        %2436 = vmatpush1.msra.mxu0 %v1337
        %2437 = vmatprep.subr.mxu0 0.0
        %2438 = vmatpush1.msra.mxu0 %v1336
        %2439 = vmatprep.subr.mxu0 0.0
        %2440 = vmatpush1.msra.mxu0 %v1335
        %2441 = vmatprep.subr.mxu0 0.0
        %2442 = vmatpush1.msra.mxu0 %v1334
        %2443 = vmatprep.subr.mxu0 0.0
        %2444 = vmatpush1.msra.mxu0 %v1333
        %2445 = vmatprep.subr.mxu0 0.0
        %2446 = vmatpush1.msra.mxu0 %v1332
        %2447 = vmatprep.subr.mxu0 0.0
        %2448 = vmatpush1.msra.mxu0 %v1331
        %2449 = vmatprep.subr.mxu0 0.0
        %2450 = vmatpush1.msra.mxu0 %v1330
        %2451 = vmatprep.subr.mxu0 0.0
        %2452 = vmatpush1.msra.mxu0 %v1329
        %2453 = vmatprep.subr.mxu0 0.0
        %2454 = vmatpush1.msra.mxu0 %v1328
        %2455 = vmatprep.subr.mxu0 0.0
        %2456 = vmatpush1.msra.mxu0 %v1327
        %2457 = vmatprep.subr.mxu0 0.0
        %2458 = vmatpush2.msra.mxu0 %v1358
        %2459 = vmatprep.subr.mxu0 0.0
        %2460 = vmatpush2.msra.mxu0 %v1357
        %2461 = vmatprep.subr.mxu0 0.0
        %2462 = vmatpush2.msra.mxu0 %v1356
        %2463 = vmatprep.subr.mxu0 0.0
        %2464 = vmatpush2.msra.mxu0 %v1355
        %2465 = vmatprep.subr.mxu0 0.0
        %2466 = vmatpush2.msra.mxu0 %v1354
        %2467 = vmatprep.subr.mxu0 0.0
        %2468 = vmatpush2.msra.mxu0 %v1353
        %2469 = vmatprep.subr.mxu0 0.0
        %2470 = vmatpush2.msra.mxu0 %v1352
        %2471 = vmatprep.subr.mxu0 0.0
        %2472 = vmatpush2.msra.mxu0 %v1351
        %2473 = vmatprep.subr.mxu0 0.0
        %2474 = vmatpush2.msra.mxu0 %v1350
        %2475 = vmatprep.subr.mxu0 0.0
        %2476 = vmatpush2.msra.mxu0 %v1349
        %2477 = vmatprep.subr.mxu0 0.0
        %2478 = vmatpush2.msra.mxu0 %v1348
        %2479 = vmatprep.subr.mxu0 0.0
        %2480 = vmatpush2.msra.mxu0 %v1347
        %2481 = vmatprep.subr.mxu0 0.0
        %2482 = vmatpush2.msra.mxu0 %v1346
        %2483 = vmatprep.subr.mxu0 0.0
        %2484 = vmatpush2.msra.mxu0 %v1345
        %2485 = vmatprep.subr.mxu0 0.0
        %2486 = vmatpush2.msra.mxu0 %v1344
        %2487 = vmatprep.subr.mxu0 0.0
        %2488 = vmatpush2.msra.mxu0 %v1343
        %2489 = vmatprep.mubr.f32.mxu0 %v214
        %2490 = vmatmul.mubr.f32.gmra.mxu0 %v213
        %v2491 = vpop.f32.mrf.mxu0
        %v2492 = vadd.f32 %v2267, %v2491
        %v2493 = vpop.f32.mrf.mxu0
        %2494 = vmatprep.mubr.f32.mxu0 %v246
        %2495 = vmatmul.mubr.f32.gmra.mxu0 %v245
        %v2496 = vpop.f32.mrf.mxu0
        %v2497 = vadd.f32 %v2272, %v2496
        %v2498 = vpop.f32.mrf.mxu0
        %2499 = vmatprep.mubr.f32.mxu0 %v278
        %2500 = vmatmul.mubr.f32.gmra.mxu0 %v277
        %v2501 = vpop.f32.mrf.mxu0
        %v2502 = vadd.f32 %v2277, %v2501
        %v2503 = vpop.f32.mrf.mxu0
        %2504 = vmatprep.mubr.f32.mxu0 %v310
        %2505 = vmatmul.mubr.f32.gmra.mxu0 %v309
        %v2506 = vpop.f32.mrf.mxu0
        %v2507 = vadd.f32 %v2282, %v2506
        %v2508 = vpop.f32.mrf.mxu0
        %2509 = vmatprep.mubr.f32.mxu0 %v342
        %2510 = vmatmul.mubr.f32.gmra.mxu0 %v341
        %v2511 = vpop.f32.mrf.mxu0
        %v2512 = vadd.f32 %v2287, %v2511
        %v2513 = vpop.f32.mrf.mxu0
        %2514 = vmatprep.mubr.f32.mxu0 %v374
        %2515 = vmatmul.mubr.f32.gmra.mxu0 %v373
        %v2516 = vpop.f32.mrf.mxu0
        %v2517 = vadd.f32 %v2292, %v2516
        %v2518 = vpop.f32.mrf.mxu0
        %2519 = vmatprep.mubr.f32.mxu0 %v406
        %2520 = vmatmul.mubr.f32.gmra.mxu0 %v405
        %v2521 = vpop.f32.mrf.mxu0
        %v2522 = vadd.f32 %v2297, %v2521
        %v2523 = vpop.f32.mrf.mxu0
        %2524 = vmatprep.mubr.f32.mxu0 %v438
        %2525 = vmatmul.mubr.f32.gmra.mxu0 %v437
        %v2526 = vpop.f32.mrf.mxu0
        %v2527 = vadd.f32 %v2302, %v2526
        %v2528 = vpop.f32.mrf.mxu0
        %2529 = vmatprep.mubr.f32.mxu0 %v470
        %2530 = vmatmul.mubr.f32.gmra.mxu0 %v469
        %v2531 = vpop.f32.mrf.mxu0
        %v2532 = vadd.f32 %v2307, %v2531
        %v2533 = vpop.f32.mrf.mxu0
        %2534 = vmatprep.mubr.f32.mxu0 %v502
        %2535 = vmatmul.mubr.f32.gmra.mxu0 %v501
        %v2536 = vpop.f32.mrf.mxu0
        %v2537 = vadd.f32 %v2312, %v2536
        %v2538 = vpop.f32.mrf.mxu0
        %2539 = vmatprep.mubr.f32.mxu0 %v534
        %2540 = vmatmul.mubr.f32.gmra.mxu0 %v533
        %v2541 = vpop.f32.mrf.mxu0
        %v2542 = vadd.f32 %v2317, %v2541
        %v2543 = vpop.f32.mrf.mxu0
        %2544 = vmatprep.mubr.f32.mxu0 %v566
        %2545 = vmatmul.mubr.f32.gmra.mxu0 %v565
        %v2546 = vpop.f32.mrf.mxu0
        %v2547 = vadd.f32 %v2322, %v2546
        %v2548 = vpop.f32.mrf.mxu0
        %2549 = vmatprep.mubr.f32.mxu0 %v598
        %2550 = vmatmul.mubr.f32.gmra.mxu0 %v597
        %v2551 = vpop.f32.mrf.mxu0
        %v2552 = vadd.f32 %v2327, %v2551
        %v2553 = vpop.f32.mrf.mxu0
        %2554 = vmatprep.mubr.f32.mxu0 %v630
        %2555 = vmatmul.mubr.f32.gmra.mxu0 %v629
        %v2556 = vpop.f32.mrf.mxu0
        %v2557 = vadd.f32 %v2332, %v2556
        %v2558 = vpop.f32.mrf.mxu0
        %2559 = vmatprep.mubr.f32.mxu0 %v662
        %2560 = vmatmul.mubr.f32.gmra.mxu0 %v661
        %v2561 = vpop.f32.mrf.mxu0
        %v2562 = vadd.f32 %v2337, %v2561
        %v2563 = vpop.f32.mrf.mxu0
        %2564 = vmatprep.mubr.f32.mxu0 %v694
        %2565 = vmatmul.mubr.f32.gmra.mxu0 %v693
        %v2566 = vpop.f32.mrf.mxu0
        %v2567 = vadd.f32 %v2342, %v2566
        %v2568 = vpop.f32.mrf.mxu0
        %2569 = vmatprep.mubr.f32.mxu0 %v726
        %2570 = vmatmul.mubr.f32.gmra.mxu0 %v725
        %v2571 = vpop.f32.mrf.mxu0
        %v2572 = vadd.f32 %v2347, %v2571
        %v2573 = vpop.f32.mrf.mxu0
        %2574 = vmatprep.mubr.f32.mxu0 %v758
        %2575 = vmatmul.mubr.f32.gmra.mxu0 %v757
        %v2576 = vpop.f32.mrf.mxu0
        %v2577 = vadd.f32 %v2352, %v2576
        %v2578 = vpop.f32.mrf.mxu0
        %2579 = vmatprep.mubr.f32.mxu0 %v790
        %2580 = vmatmul.mubr.f32.gmra.mxu0 %v789
        %v2581 = vpop.f32.mrf.mxu0
        %v2582 = vadd.f32 %v2357, %v2581
        %v2583 = vpop.f32.mrf.mxu0
        %2584 = vmatprep.mubr.f32.mxu0 %v822
        %2585 = vmatmul.mubr.f32.gmra.mxu0 %v821
        %v2586 = vpop.f32.mrf.mxu0
        %v2587 = vadd.f32 %v2362, %v2586
        %v2588 = vpop.f32.mrf.mxu0
        %2589 = vmatprep.mubr.f32.mxu0 %v854
        %2590 = vmatmul.mubr.f32.gmra.mxu0 %v853
        %v2591 = vpop.f32.mrf.mxu0
        %v2592 = vadd.f32 %v2367, %v2591
        %v2593 = vpop.f32.mrf.mxu0
        %2594 = vmatprep.mubr.f32.mxu0 %v886
        %2595 = vmatmul.mubr.f32.gmra.mxu0 %v885
        %v2596 = vpop.f32.mrf.mxu0
        %v2597 = vadd.f32 %v2372, %v2596
        %v2598 = vpop.f32.mrf.mxu0
        %2599 = vmatprep.mubr.f32.mxu0 %v918
        %2600 = vmatmul.mubr.f32.gmra.mxu0 %v917
        %v2601 = vpop.f32.mrf.mxu0
        %v2602 = vadd.f32 %v2377, %v2601
        %v2603 = vpop.f32.mrf.mxu0
        %2604 = vmatprep.mubr.f32.mxu0 %v950
        %2605 = vmatmul.mubr.f32.gmra.mxu0 %v949
        %v2606 = vpop.f32.mrf.mxu0
        %v2607 = vadd.f32 %v2382, %v2606
        %v2608 = vpop.f32.mrf.mxu0
        %2609 = vmatprep.mubr.f32.mxu0 %v982
        %2610 = vmatmul.mubr.f32.gmra.mxu0 %v981
        %v2611 = vpop.f32.mrf.mxu0
        %v2612 = vadd.f32 %v2387, %v2611
        %v2613 = vpop.f32.mrf.mxu0
        %2614 = vmatprep.mubr.f32.mxu0 %v1014
        %2615 = vmatmul.mubr.f32.gmra.mxu0 %v1013
        %v2616 = vpop.f32.mrf.mxu0
        %v2617 = vadd.f32 %v2392, %v2616
        %v2618 = vpop.f32.mrf.mxu0
        %2619 = vmatprep.mubr.f32.mxu0 %v1046
        %2620 = vmatmul.mubr.f32.gmra.mxu0 %v1045
        %v2621 = vpop.f32.mrf.mxu0
        %v2622 = vadd.f32 %v2397, %v2621
        %v2623 = vpop.f32.mrf.mxu0
        %2624 = vmatprep.mubr.f32.mxu0 %v1078
        %2625 = vmatmul.mubr.f32.gmra.mxu0 %v1077
        %v2626 = vpop.f32.mrf.mxu0
        %v2627 = vadd.f32 %v2402, %v2626
        %v2628 = vpop.f32.mrf.mxu0
        %2629 = vmatprep.mubr.f32.mxu0 %v1110
        %2630 = vmatmul.mubr.f32.gmra.mxu0 %v1109
        %v2631 = vpop.f32.mrf.mxu0
        %v2632 = vadd.f32 %v2407, %v2631
        %v2633 = vpop.f32.mrf.mxu0
        %2634 = vmatprep.mubr.f32.mxu0 %v1142
        %2635 = vmatmul.mubr.f32.gmra.mxu0 %v1141
        %v2636 = vpop.f32.mrf.mxu0
        %v2637 = vadd.f32 %v2412, %v2636
        %v2638 = vpop.f32.mrf.mxu0
        %2639 = vmatprep.mubr.f32.mxu0 %v1174
        %2640 = vmatmul.mubr.f32.gmra.mxu0 %v1173
        %v2641 = vpop.f32.mrf.mxu0
        %v2642 = vadd.f32 %v2417, %v2641
        %v2643 = vpop.f32.mrf.mxu0
        %2644 = vmatprep.mubr.f32.mxu0 %v1206
        %2645 = vmatmul.mubr.f32.gmra.mxu0 %v1205
        %v2646 = vpop.f32.mrf.mxu0
        %v2647 = vadd.f32 %v2422, %v2646
        %v2648 = vpop.f32.mrf.mxu0
        %2649 = vdwg.mxu0
        %2650 = vmatprep.subr.mxu0 0.0
        %2651 = vmatpush1.msra.mxu0 %v1374
        %2652 = vmatprep.subr.mxu0 0.0
        %2653 = vmatpush1.msra.mxu0 %v1373
        %2654 = vmatprep.subr.mxu0 0.0
        %2655 = vmatpush1.msra.mxu0 %v1372
        %2656 = vmatprep.subr.mxu0 0.0
        %2657 = vmatpush1.msra.mxu0 %v1371
        %2658 = vmatprep.subr.mxu0 0.0
        %2659 = vmatpush1.msra.mxu0 %v1370
        %2660 = vmatprep.subr.mxu0 0.0
        %2661 = vmatpush1.msra.mxu0 %v1369
        %2662 = vmatprep.subr.mxu0 0.0
        %2663 = vmatpush1.msra.mxu0 %v1368
        %2664 = vmatprep.subr.mxu0 0.0
        %2665 = vmatpush1.msra.mxu0 %v1367
        %2666 = vmatprep.subr.mxu0 0.0
        %2667 = vmatpush1.msra.mxu0 %v1366
        %2668 = vmatprep.subr.mxu0 0.0
        %2669 = vmatpush1.msra.mxu0 %v1365
        %2670 = vmatprep.subr.mxu0 0.0
        %2671 = vmatpush1.msra.mxu0 %v1364
        %2672 = vmatprep.subr.mxu0 0.0
        %2673 = vmatpush1.msra.mxu0 %v1363
        %2674 = vmatprep.subr.mxu0 0.0
        %2675 = vmatpush1.msra.mxu0 %v1362
        %2676 = vmatprep.subr.mxu0 0.0
        %2677 = vmatpush1.msra.mxu0 %v1361
        %2678 = vmatprep.subr.mxu0 0.0
        %2679 = vmatpush1.msra.mxu0 %v1360
        %2680 = vmatprep.subr.mxu0 0.0
        %2681 = vmatpush1.msra.mxu0 %v1359
        %2682 = vmatprep.subr.mxu0 0.0
        %2683 = vmatpush2.msra.mxu0 %v1390
        %2684 = vmatprep.subr.mxu0 0.0
        %2685 = vmatpush2.msra.mxu0 %v1389
        %2686 = vmatprep.subr.mxu0 0.0
        %2687 = vmatpush2.msra.mxu0 %v1388
        %2688 = vmatprep.subr.mxu0 0.0
        %2689 = vmatpush2.msra.mxu0 %v1387
        %2690 = vmatprep.subr.mxu0 0.0
        %2691 = vmatpush2.msra.mxu0 %v1386
        %2692 = vmatprep.subr.mxu0 0.0
        %2693 = vmatpush2.msra.mxu0 %v1385
        %2694 = vmatprep.subr.mxu0 0.0
        %2695 = vmatpush2.msra.mxu0 %v1384
        %2696 = vmatprep.subr.mxu0 0.0
        %2697 = vmatpush2.msra.mxu0 %v1383
        %2698 = vmatprep.subr.mxu0 0.0
        %2699 = vmatpush2.msra.mxu0 %v1382
        %2700 = vmatprep.subr.mxu0 0.0
        %2701 = vmatpush2.msra.mxu0 %v1381
        %2702 = vmatprep.subr.mxu0 0.0
        %2703 = vmatpush2.msra.mxu0 %v1380
        %2704 = vmatprep.subr.mxu0 0.0
        %2705 = vmatpush2.msra.mxu0 %v1379
        %2706 = vmatprep.subr.mxu0 0.0
        %2707 = vmatpush2.msra.mxu0 %v1378
        %2708 = vmatprep.subr.mxu0 0.0
        %2709 = vmatpush2.msra.mxu0 %v1377
        %2710 = vmatprep.subr.mxu0 0.0
        %2711 = vmatpush2.msra.mxu0 %v1376
        %2712 = vmatprep.subr.mxu0 0.0
        %2713 = vmatpush2.msra.mxu0 %v1375
        %2714 = vmatprep.mubr.f32.mxu0 %v216
        %2715 = vmatmul.mubr.f32.gmra.mxu0 %v215
        %v2716 = vpop.f32.mrf.mxu0
        %v2717 = vadd.f32 %v2492, %v2716
        %v2718 = vpop.f32.mrf.mxu0
        %2719 = vmatprep.mubr.f32.mxu0 %v248
        %2720 = vmatmul.mubr.f32.gmra.mxu0 %v247
        %v2721 = vpop.f32.mrf.mxu0
        %v2722 = vadd.f32 %v2497, %v2721
        %v2723 = vpop.f32.mrf.mxu0
        %2724 = vmatprep.mubr.f32.mxu0 %v280
        %2725 = vmatmul.mubr.f32.gmra.mxu0 %v279
        %v2726 = vpop.f32.mrf.mxu0
        %v2727 = vadd.f32 %v2502, %v2726
        %v2728 = vpop.f32.mrf.mxu0
        %2729 = vmatprep.mubr.f32.mxu0 %v312
        %2730 = vmatmul.mubr.f32.gmra.mxu0 %v311
        %v2731 = vpop.f32.mrf.mxu0
        %v2732 = vadd.f32 %v2507, %v2731
        %v2733 = vpop.f32.mrf.mxu0
        %2734 = vmatprep.mubr.f32.mxu0 %v344
        %2735 = vmatmul.mubr.f32.gmra.mxu0 %v343
        %v2736 = vpop.f32.mrf.mxu0
        %v2737 = vadd.f32 %v2512, %v2736
        %v2738 = vpop.f32.mrf.mxu0
        %2739 = vmatprep.mubr.f32.mxu0 %v376
        %2740 = vmatmul.mubr.f32.gmra.mxu0 %v375
        %v2741 = vpop.f32.mrf.mxu0
        %v2742 = vadd.f32 %v2517, %v2741
        %v2743 = vpop.f32.mrf.mxu0
        %2744 = vmatprep.mubr.f32.mxu0 %v408
        %2745 = vmatmul.mubr.f32.gmra.mxu0 %v407
        %v2746 = vpop.f32.mrf.mxu0
        %v2747 = vadd.f32 %v2522, %v2746
        %v2748 = vpop.f32.mrf.mxu0
        %2749 = vmatprep.mubr.f32.mxu0 %v440
        %2750 = vmatmul.mubr.f32.gmra.mxu0 %v439
        %v2751 = vpop.f32.mrf.mxu0
        %v2752 = vadd.f32 %v2527, %v2751
        %v2753 = vpop.f32.mrf.mxu0
        %2754 = vmatprep.mubr.f32.mxu0 %v472
        %2755 = vmatmul.mubr.f32.gmra.mxu0 %v471
        %v2756 = vpop.f32.mrf.mxu0
        %v2757 = vadd.f32 %v2532, %v2756
        %v2758 = vpop.f32.mrf.mxu0
        %2759 = vmatprep.mubr.f32.mxu0 %v504
        %2760 = vmatmul.mubr.f32.gmra.mxu0 %v503
        %v2761 = vpop.f32.mrf.mxu0
        %v2762 = vadd.f32 %v2537, %v2761
        %v2763 = vpop.f32.mrf.mxu0
        %2764 = vmatprep.mubr.f32.mxu0 %v536
        %2765 = vmatmul.mubr.f32.gmra.mxu0 %v535
        %v2766 = vpop.f32.mrf.mxu0
        %v2767 = vadd.f32 %v2542, %v2766
        %v2768 = vpop.f32.mrf.mxu0
        %2769 = vmatprep.mubr.f32.mxu0 %v568
        %2770 = vmatmul.mubr.f32.gmra.mxu0 %v567
        %v2771 = vpop.f32.mrf.mxu0
        %v2772 = vadd.f32 %v2547, %v2771
        %v2773 = vpop.f32.mrf.mxu0
        %2774 = vmatprep.mubr.f32.mxu0 %v600
        %2775 = vmatmul.mubr.f32.gmra.mxu0 %v599
        %v2776 = vpop.f32.mrf.mxu0
        %v2777 = vadd.f32 %v2552, %v2776
        %v2778 = vpop.f32.mrf.mxu0
        %2779 = vmatprep.mubr.f32.mxu0 %v632
        %2780 = vmatmul.mubr.f32.gmra.mxu0 %v631
        %v2781 = vpop.f32.mrf.mxu0
        %v2782 = vadd.f32 %v2557, %v2781
        %v2783 = vpop.f32.mrf.mxu0
        %2784 = vmatprep.mubr.f32.mxu0 %v664
        %2785 = vmatmul.mubr.f32.gmra.mxu0 %v663
        %v2786 = vpop.f32.mrf.mxu0
        %v2787 = vadd.f32 %v2562, %v2786
        %v2788 = vpop.f32.mrf.mxu0
        %2789 = vmatprep.mubr.f32.mxu0 %v696
        %2790 = vmatmul.mubr.f32.gmra.mxu0 %v695
        %v2791 = vpop.f32.mrf.mxu0
        %v2792 = vadd.f32 %v2567, %v2791
        %v2793 = vpop.f32.mrf.mxu0
        %2794 = vmatprep.mubr.f32.mxu0 %v728
        %2795 = vmatmul.mubr.f32.gmra.mxu0 %v727
        %v2796 = vpop.f32.mrf.mxu0
        %v2797 = vadd.f32 %v2572, %v2796
        %v2798 = vpop.f32.mrf.mxu0
        %2799 = vmatprep.mubr.f32.mxu0 %v760
        %2800 = vmatmul.mubr.f32.gmra.mxu0 %v759
        %v2801 = vpop.f32.mrf.mxu0
        %v2802 = vadd.f32 %v2577, %v2801
        %v2803 = vpop.f32.mrf.mxu0
        %2804 = vmatprep.mubr.f32.mxu0 %v792
        %2805 = vmatmul.mubr.f32.gmra.mxu0 %v791
        %v2806 = vpop.f32.mrf.mxu0
        %v2807 = vadd.f32 %v2582, %v2806
        %v2808 = vpop.f32.mrf.mxu0
        %2809 = vmatprep.mubr.f32.mxu0 %v824
        %2810 = vmatmul.mubr.f32.gmra.mxu0 %v823
        %v2811 = vpop.f32.mrf.mxu0
        %v2812 = vadd.f32 %v2587, %v2811
        %v2813 = vpop.f32.mrf.mxu0
        %2814 = vmatprep.mubr.f32.mxu0 %v856
        %2815 = vmatmul.mubr.f32.gmra.mxu0 %v855
        %v2816 = vpop.f32.mrf.mxu0
        %v2817 = vadd.f32 %v2592, %v2816
        %v2818 = vpop.f32.mrf.mxu0
        %2819 = vmatprep.mubr.f32.mxu0 %v888
        %2820 = vmatmul.mubr.f32.gmra.mxu0 %v887
        %v2821 = vpop.f32.mrf.mxu0
        %v2822 = vadd.f32 %v2597, %v2821
        %v2823 = vpop.f32.mrf.mxu0
        %2824 = vmatprep.mubr.f32.mxu0 %v920
        %2825 = vmatmul.mubr.f32.gmra.mxu0 %v919
        %v2826 = vpop.f32.mrf.mxu0
        %v2827 = vadd.f32 %v2602, %v2826
        %v2828 = vpop.f32.mrf.mxu0
        %2829 = vmatprep.mubr.f32.mxu0 %v952
        %2830 = vmatmul.mubr.f32.gmra.mxu0 %v951
        %v2831 = vpop.f32.mrf.mxu0
        %v2832 = vadd.f32 %v2607, %v2831
        %v2833 = vpop.f32.mrf.mxu0
        %2834 = vmatprep.mubr.f32.mxu0 %v984
        %2835 = vmatmul.mubr.f32.gmra.mxu0 %v983
        %v2836 = vpop.f32.mrf.mxu0
        %v2837 = vadd.f32 %v2612, %v2836
        %v2838 = vpop.f32.mrf.mxu0
        %2839 = vmatprep.mubr.f32.mxu0 %v1016
        %2840 = vmatmul.mubr.f32.gmra.mxu0 %v1015
        %v2841 = vpop.f32.mrf.mxu0
        %v2842 = vadd.f32 %v2617, %v2841
        %v2843 = vpop.f32.mrf.mxu0
        %2844 = vmatprep.mubr.f32.mxu0 %v1048
        %2845 = vmatmul.mubr.f32.gmra.mxu0 %v1047
        %v2846 = vpop.f32.mrf.mxu0
        %v2847 = vadd.f32 %v2622, %v2846
        %v2848 = vpop.f32.mrf.mxu0
        %2849 = vmatprep.mubr.f32.mxu0 %v1080
        %2850 = vmatmul.mubr.f32.gmra.mxu0 %v1079
        %v2851 = vpop.f32.mrf.mxu0
        %v2852 = vadd.f32 %v2627, %v2851
        %v2853 = vpop.f32.mrf.mxu0
        %2854 = vmatprep.mubr.f32.mxu0 %v1112
        %2855 = vmatmul.mubr.f32.gmra.mxu0 %v1111
        %v2856 = vpop.f32.mrf.mxu0
        %v2857 = vadd.f32 %v2632, %v2856
        %v2858 = vpop.f32.mrf.mxu0
        %2859 = vmatprep.mubr.f32.mxu0 %v1144
        %2860 = vmatmul.mubr.f32.gmra.mxu0 %v1143
        %v2861 = vpop.f32.mrf.mxu0
        %v2862 = vadd.f32 %v2637, %v2861
        %v2863 = vpop.f32.mrf.mxu0
        %2864 = vmatprep.mubr.f32.mxu0 %v1176
        %2865 = vmatmul.mubr.f32.gmra.mxu0 %v1175
        %v2866 = vpop.f32.mrf.mxu0
        %v2867 = vadd.f32 %v2642, %v2866
        %v2868 = vpop.f32.mrf.mxu0
        %2869 = vmatprep.mubr.f32.mxu0 %v1208
        %2870 = vmatmul.mubr.f32.gmra.mxu0 %v1207
        %v2871 = vpop.f32.mrf.mxu0
        %v2872 = vadd.f32 %v2647, %v2871
        %v2873 = vpop.f32.mrf.mxu0
        %2874 = vdwg.mxu0
        %2875 = vmatprep.subr.mxu0 0.0
        %2876 = vmatpush1.msra.mxu0 %v1406
        %2877 = vmatprep.subr.mxu0 0.0
        %2878 = vmatpush1.msra.mxu0 %v1405
        %2879 = vmatprep.subr.mxu0 0.0
        %2880 = vmatpush1.msra.mxu0 %v1404
        %2881 = vmatprep.subr.mxu0 0.0
        %2882 = vmatpush1.msra.mxu0 %v1403
        %2883 = vmatprep.subr.mxu0 0.0
        %2884 = vmatpush1.msra.mxu0 %v1402
        %2885 = vmatprep.subr.mxu0 0.0
        %2886 = vmatpush1.msra.mxu0 %v1401
        %2887 = vmatprep.subr.mxu0 0.0
        %2888 = vmatpush1.msra.mxu0 %v1400
        %2889 = vmatprep.subr.mxu0 0.0
        %2890 = vmatpush1.msra.mxu0 %v1399
        %2891 = vmatprep.subr.mxu0 0.0
        %2892 = vmatpush1.msra.mxu0 %v1398
        %2893 = vmatprep.subr.mxu0 0.0
        %2894 = vmatpush1.msra.mxu0 %v1397
        %2895 = vmatprep.subr.mxu0 0.0
        %2896 = vmatpush1.msra.mxu0 %v1396
        %2897 = vmatprep.subr.mxu0 0.0
        %2898 = vmatpush1.msra.mxu0 %v1395
        %2899 = vmatprep.subr.mxu0 0.0
        %2900 = vmatpush1.msra.mxu0 %v1394
        %2901 = vmatprep.subr.mxu0 0.0
        %2902 = vmatpush1.msra.mxu0 %v1393
        %2903 = vmatprep.subr.mxu0 0.0
        %2904 = vmatpush1.msra.mxu0 %v1392
        %2905 = vmatprep.subr.mxu0 0.0
        %2906 = vmatpush1.msra.mxu0 %v1391
        %2907 = vmatprep.subr.mxu0 0.0
        %2908 = vmatpush2.msra.mxu0 %v1422
        %2909 = vmatprep.subr.mxu0 0.0
        %2910 = vmatpush2.msra.mxu0 %v1421
        %2911 = vmatprep.subr.mxu0 0.0
        %2912 = vmatpush2.msra.mxu0 %v1420
        %2913 = vmatprep.subr.mxu0 0.0
        %2914 = vmatpush2.msra.mxu0 %v1419
        %2915 = vmatprep.subr.mxu0 0.0
        %2916 = vmatpush2.msra.mxu0 %v1418
        %2917 = vmatprep.subr.mxu0 0.0
        %2918 = vmatpush2.msra.mxu0 %v1417
        %2919 = vmatprep.subr.mxu0 0.0
        %2920 = vmatpush2.msra.mxu0 %v1416
        %2921 = vmatprep.subr.mxu0 0.0
        %2922 = vmatpush2.msra.mxu0 %v1415
        %2923 = vmatprep.subr.mxu0 0.0
        %2924 = vmatpush2.msra.mxu0 %v1414
        %2925 = vmatprep.subr.mxu0 0.0
        %2926 = vmatpush2.msra.mxu0 %v1413
        %2927 = vmatprep.subr.mxu0 0.0
        %2928 = vmatpush2.msra.mxu0 %v1412
        %2929 = vmatprep.subr.mxu0 0.0
        %2930 = vmatpush2.msra.mxu0 %v1411
        %2931 = vmatprep.subr.mxu0 0.0
        %2932 = vmatpush2.msra.mxu0 %v1410
        %2933 = vmatprep.subr.mxu0 0.0
        %2934 = vmatpush2.msra.mxu0 %v1409
        %2935 = vmatprep.subr.mxu0 0.0
        %2936 = vmatpush2.msra.mxu0 %v1408
        %2937 = vmatprep.subr.mxu0 0.0
        %2938 = vmatpush2.msra.mxu0 %v1407
        %2939 = vmatprep.mubr.f32.mxu0 %v218
        %2940 = vmatmul.mubr.f32.gmra.mxu0 %v217
        %v2941 = vpop.f32.mrf.mxu0
        %v2942 = vadd.f32 %v2717, %v2941
        %v2943 = vpop.f32.mrf.mxu0
        %2944 = vmatprep.mubr.f32.mxu0 %v250
        %2945 = vmatmul.mubr.f32.gmra.mxu0 %v249
        %v2946 = vpop.f32.mrf.mxu0
        %v2947 = vadd.f32 %v2722, %v2946
        %v2948 = vpop.f32.mrf.mxu0
        %2949 = vmatprep.mubr.f32.mxu0 %v282
        %2950 = vmatmul.mubr.f32.gmra.mxu0 %v281
        %v2951 = vpop.f32.mrf.mxu0
        %v2952 = vadd.f32 %v2727, %v2951
        %v2953 = vpop.f32.mrf.mxu0
        %2954 = vmatprep.mubr.f32.mxu0 %v314
        %2955 = vmatmul.mubr.f32.gmra.mxu0 %v313
        %v2956 = vpop.f32.mrf.mxu0
        %v2957 = vadd.f32 %v2732, %v2956
        %v2958 = vpop.f32.mrf.mxu0
        %2959 = vmatprep.mubr.f32.mxu0 %v346
        %2960 = vmatmul.mubr.f32.gmra.mxu0 %v345
        %v2961 = vpop.f32.mrf.mxu0
        %v2962 = vadd.f32 %v2737, %v2961
        %v2963 = vpop.f32.mrf.mxu0
        %2964 = vmatprep.mubr.f32.mxu0 %v378
        %2965 = vmatmul.mubr.f32.gmra.mxu0 %v377
        %v2966 = vpop.f32.mrf.mxu0
        %v2967 = vadd.f32 %v2742, %v2966
        %v2968 = vpop.f32.mrf.mxu0
        %2969 = vmatprep.mubr.f32.mxu0 %v410
        %2970 = vmatmul.mubr.f32.gmra.mxu0 %v409
        %v2971 = vpop.f32.mrf.mxu0
        %v2972 = vadd.f32 %v2747, %v2971
        %v2973 = vpop.f32.mrf.mxu0
        %2974 = vmatprep.mubr.f32.mxu0 %v442
        %2975 = vmatmul.mubr.f32.gmra.mxu0 %v441
        %v2976 = vpop.f32.mrf.mxu0
        %v2977 = vadd.f32 %v2752, %v2976
        %v2978 = vpop.f32.mrf.mxu0
        %2979 = vmatprep.mubr.f32.mxu0 %v474
        %2980 = vmatmul.mubr.f32.gmra.mxu0 %v473
        %v2981 = vpop.f32.mrf.mxu0
        %v2982 = vadd.f32 %v2757, %v2981
        %v2983 = vpop.f32.mrf.mxu0
        %2984 = vmatprep.mubr.f32.mxu0 %v506
        %2985 = vmatmul.mubr.f32.gmra.mxu0 %v505
        %v2986 = vpop.f32.mrf.mxu0
        %v2987 = vadd.f32 %v2762, %v2986
        %v2988 = vpop.f32.mrf.mxu0
        %2989 = vmatprep.mubr.f32.mxu0 %v538
        %2990 = vmatmul.mubr.f32.gmra.mxu0 %v537
        %v2991 = vpop.f32.mrf.mxu0
        %v2992 = vadd.f32 %v2767, %v2991
        %v2993 = vpop.f32.mrf.mxu0
        %2994 = vmatprep.mubr.f32.mxu0 %v570
        %2995 = vmatmul.mubr.f32.gmra.mxu0 %v569
        %v2996 = vpop.f32.mrf.mxu0
        %v2997 = vadd.f32 %v2772, %v2996
        %v2998 = vpop.f32.mrf.mxu0
        %2999 = vmatprep.mubr.f32.mxu0 %v602
        %3000 = vmatmul.mubr.f32.gmra.mxu0 %v601
        %v3001 = vpop.f32.mrf.mxu0
        %v3002 = vadd.f32 %v2777, %v3001
        %v3003 = vpop.f32.mrf.mxu0
        %3004 = vmatprep.mubr.f32.mxu0 %v634
        %3005 = vmatmul.mubr.f32.gmra.mxu0 %v633
        %v3006 = vpop.f32.mrf.mxu0
        %v3007 = vadd.f32 %v2782, %v3006
        %v3008 = vpop.f32.mrf.mxu0
        %3009 = vmatprep.mubr.f32.mxu0 %v666
        %3010 = vmatmul.mubr.f32.gmra.mxu0 %v665
        %v3011 = vpop.f32.mrf.mxu0
        %v3012 = vadd.f32 %v2787, %v3011
        %v3013 = vpop.f32.mrf.mxu0
        %3014 = vmatprep.mubr.f32.mxu0 %v698
        %3015 = vmatmul.mubr.f32.gmra.mxu0 %v697
        %v3016 = vpop.f32.mrf.mxu0
        %v3017 = vadd.f32 %v2792, %v3016
        %v3018 = vpop.f32.mrf.mxu0
        %3019 = vmatprep.mubr.f32.mxu0 %v730
        %3020 = vmatmul.mubr.f32.gmra.mxu0 %v729
        %v3021 = vpop.f32.mrf.mxu0
        %v3022 = vadd.f32 %v2797, %v3021
        %v3023 = vpop.f32.mrf.mxu0
        %3024 = vmatprep.mubr.f32.mxu0 %v762
        %3025 = vmatmul.mubr.f32.gmra.mxu0 %v761
        %v3026 = vpop.f32.mrf.mxu0
        %v3027 = vadd.f32 %v2802, %v3026
        %v3028 = vpop.f32.mrf.mxu0
        %3029 = vmatprep.mubr.f32.mxu0 %v794
        %3030 = vmatmul.mubr.f32.gmra.mxu0 %v793
        %v3031 = vpop.f32.mrf.mxu0
        %v3032 = vadd.f32 %v2807, %v3031
        %v3033 = vpop.f32.mrf.mxu0
        %3034 = vmatprep.mubr.f32.mxu0 %v826
        %3035 = vmatmul.mubr.f32.gmra.mxu0 %v825
        %v3036 = vpop.f32.mrf.mxu0
        %v3037 = vadd.f32 %v2812, %v3036
        %v3038 = vpop.f32.mrf.mxu0
        %3039 = vmatprep.mubr.f32.mxu0 %v858
        %3040 = vmatmul.mubr.f32.gmra.mxu0 %v857
        %v3041 = vpop.f32.mrf.mxu0
        %v3042 = vadd.f32 %v2817, %v3041
        %v3043 = vpop.f32.mrf.mxu0
        %3044 = vmatprep.mubr.f32.mxu0 %v890
        %3045 = vmatmul.mubr.f32.gmra.mxu0 %v889
        %v3046 = vpop.f32.mrf.mxu0
        %v3047 = vadd.f32 %v2822, %v3046
        %v3048 = vpop.f32.mrf.mxu0
        %3049 = vmatprep.mubr.f32.mxu0 %v922
        %3050 = vmatmul.mubr.f32.gmra.mxu0 %v921
        %v3051 = vpop.f32.mrf.mxu0
        %v3052 = vadd.f32 %v2827, %v3051
        %v3053 = vpop.f32.mrf.mxu0
        %3054 = vmatprep.mubr.f32.mxu0 %v954
        %3055 = vmatmul.mubr.f32.gmra.mxu0 %v953
        %v3056 = vpop.f32.mrf.mxu0
        %v3057 = vadd.f32 %v2832, %v3056
        %v3058 = vpop.f32.mrf.mxu0
        %3059 = vmatprep.mubr.f32.mxu0 %v986
        %3060 = vmatmul.mubr.f32.gmra.mxu0 %v985
        %v3061 = vpop.f32.mrf.mxu0
        %v3062 = vadd.f32 %v2837, %v3061
        %v3063 = vpop.f32.mrf.mxu0
        %3064 = vmatprep.mubr.f32.mxu0 %v1018
        %3065 = vmatmul.mubr.f32.gmra.mxu0 %v1017
        %v3066 = vpop.f32.mrf.mxu0
        %v3067 = vadd.f32 %v2842, %v3066
        %v3068 = vpop.f32.mrf.mxu0
        %3069 = vmatprep.mubr.f32.mxu0 %v1050
        %3070 = vmatmul.mubr.f32.gmra.mxu0 %v1049
        %v3071 = vpop.f32.mrf.mxu0
        %v3072 = vadd.f32 %v2847, %v3071
        %v3073 = vpop.f32.mrf.mxu0
        %3074 = vmatprep.mubr.f32.mxu0 %v1082
        %3075 = vmatmul.mubr.f32.gmra.mxu0 %v1081
        %v3076 = vpop.f32.mrf.mxu0
        %v3077 = vadd.f32 %v2852, %v3076
        %v3078 = vpop.f32.mrf.mxu0
        %3079 = vmatprep.mubr.f32.mxu0 %v1114
        %3080 = vmatmul.mubr.f32.gmra.mxu0 %v1113
        %v3081 = vpop.f32.mrf.mxu0
        %v3082 = vadd.f32 %v2857, %v3081
        %v3083 = vpop.f32.mrf.mxu0
        %3084 = vmatprep.mubr.f32.mxu0 %v1146
        %3085 = vmatmul.mubr.f32.gmra.mxu0 %v1145
        %v3086 = vpop.f32.mrf.mxu0
        %v3087 = vadd.f32 %v2862, %v3086
        %v3088 = vpop.f32.mrf.mxu0
        %3089 = vmatprep.mubr.f32.mxu0 %v1178
        %3090 = vmatmul.mubr.f32.gmra.mxu0 %v1177
        %v3091 = vpop.f32.mrf.mxu0
        %v3092 = vadd.f32 %v2867, %v3091
        %v3093 = vpop.f32.mrf.mxu0
        %3094 = vmatprep.mubr.f32.mxu0 %v1210
        %3095 = vmatmul.mubr.f32.gmra.mxu0 %v1209
        %v3096 = vpop.f32.mrf.mxu0
        %v3097 = vadd.f32 %v2872, %v3096
        %v3098 = vpop.f32.mrf.mxu0
        %3099 = vdwg.mxu0
        %3100 = vmatprep.subr.mxu0 0.0
        %3101 = vmatpush1.msra.mxu0 %v1438
        %3102 = vmatprep.subr.mxu0 0.0
        %3103 = vmatpush1.msra.mxu0 %v1437
        %3104 = vmatprep.subr.mxu0 0.0
        %3105 = vmatpush1.msra.mxu0 %v1436
        %3106 = vmatprep.subr.mxu0 0.0
        %3107 = vmatpush1.msra.mxu0 %v1435
        %3108 = vmatprep.subr.mxu0 0.0
        %3109 = vmatpush1.msra.mxu0 %v1434
        %3110 = vmatprep.subr.mxu0 0.0
        %3111 = vmatpush1.msra.mxu0 %v1433
        %3112 = vmatprep.subr.mxu0 0.0
        %3113 = vmatpush1.msra.mxu0 %v1432
        %3114 = vmatprep.subr.mxu0 0.0
        %3115 = vmatpush1.msra.mxu0 %v1431
        %3116 = vmatprep.subr.mxu0 0.0
        %3117 = vmatpush1.msra.mxu0 %v1430
        %3118 = vmatprep.subr.mxu0 0.0
        %3119 = vmatpush1.msra.mxu0 %v1429
        %3120 = vmatprep.subr.mxu0 0.0
        %3121 = vmatpush1.msra.mxu0 %v1428
        %3122 = vmatprep.subr.mxu0 0.0
        %3123 = vmatpush1.msra.mxu0 %v1427
        %3124 = vmatprep.subr.mxu0 0.0
        %3125 = vmatpush1.msra.mxu0 %v1426
        %3126 = vmatprep.subr.mxu0 0.0
        %3127 = vmatpush1.msra.mxu0 %v1425
        %3128 = vmatprep.subr.mxu0 0.0
        %3129 = vmatpush1.msra.mxu0 %v1424
        %3130 = vmatprep.subr.mxu0 0.0
        %3131 = vmatpush1.msra.mxu0 %v1423
        %3132 = vmatprep.subr.mxu0 0.0
        %3133 = vmatpush2.msra.mxu0 %v1454
        %3134 = vmatprep.subr.mxu0 0.0
        %3135 = vmatpush2.msra.mxu0 %v1453
        %3136 = vmatprep.subr.mxu0 0.0
        %3137 = vmatpush2.msra.mxu0 %v1452
        %3138 = vmatprep.subr.mxu0 0.0
        %3139 = vmatpush2.msra.mxu0 %v1451
        %3140 = vmatprep.subr.mxu0 0.0
        %3141 = vmatpush2.msra.mxu0 %v1450
        %3142 = vmatprep.subr.mxu0 0.0
        %3143 = vmatpush2.msra.mxu0 %v1449
        %3144 = vmatprep.subr.mxu0 0.0
        %3145 = vmatpush2.msra.mxu0 %v1448
        %3146 = vmatprep.subr.mxu0 0.0
        %3147 = vmatpush2.msra.mxu0 %v1447
        %3148 = vmatprep.subr.mxu0 0.0
        %3149 = vmatpush2.msra.mxu0 %v1446
        %3150 = vmatprep.subr.mxu0 0.0
        %3151 = vmatpush2.msra.mxu0 %v1445
        %3152 = vmatprep.subr.mxu0 0.0
        %3153 = vmatpush2.msra.mxu0 %v1444
        %3154 = vmatprep.subr.mxu0 0.0
        %3155 = vmatpush2.msra.mxu0 %v1443
        %3156 = vmatprep.subr.mxu0 0.0
        %3157 = vmatpush2.msra.mxu0 %v1442
        %3158 = vmatprep.subr.mxu0 0.0
        %3159 = vmatpush2.msra.mxu0 %v1441
        %3160 = vmatprep.subr.mxu0 0.0
        %3161 = vmatpush2.msra.mxu0 %v1440
        %3162 = vmatprep.subr.mxu0 0.0
        %3163 = vmatpush2.msra.mxu0 %v1439
        %3164 = vmatprep.mubr.f32.mxu0 %v220
        %3165 = vmatmul.mubr.f32.gmra.mxu0 %v219
        %v3166 = vpop.f32.mrf.mxu0
        %v3167 = vadd.f32 %v2942, %v3166
        %v3168 = vpop.f32.mrf.mxu0
        %3169 = vmatprep.mubr.f32.mxu0 %v252
        %3170 = vmatmul.mubr.f32.gmra.mxu0 %v251
        %v3171 = vpop.f32.mrf.mxu0
        %v3172 = vadd.f32 %v2947, %v3171
        %v3173 = vpop.f32.mrf.mxu0
        %3174 = vmatprep.mubr.f32.mxu0 %v284
        %3175 = vmatmul.mubr.f32.gmra.mxu0 %v283
        %v3176 = vpop.f32.mrf.mxu0
        %v3177 = vadd.f32 %v2952, %v3176
        %v3178 = vpop.f32.mrf.mxu0
        %3179 = vmatprep.mubr.f32.mxu0 %v316
        %3180 = vmatmul.mubr.f32.gmra.mxu0 %v315
        %v3181 = vpop.f32.mrf.mxu0
        %v3182 = vadd.f32 %v2957, %v3181
        %v3183 = vpop.f32.mrf.mxu0
        %3184 = vmatprep.mubr.f32.mxu0 %v348
        %3185 = vmatmul.mubr.f32.gmra.mxu0 %v347
        %v3186 = vpop.f32.mrf.mxu0
        %v3187 = vadd.f32 %v2962, %v3186
        %v3188 = vpop.f32.mrf.mxu0
        %3189 = vmatprep.mubr.f32.mxu0 %v380
        %3190 = vmatmul.mubr.f32.gmra.mxu0 %v379
        %v3191 = vpop.f32.mrf.mxu0
        %v3192 = vadd.f32 %v2967, %v3191
        %v3193 = vpop.f32.mrf.mxu0
        %3194 = vmatprep.mubr.f32.mxu0 %v412
        %3195 = vmatmul.mubr.f32.gmra.mxu0 %v411
        %v3196 = vpop.f32.mrf.mxu0
        %v3197 = vadd.f32 %v2972, %v3196
        %v3198 = vpop.f32.mrf.mxu0
        %3199 = vmatprep.mubr.f32.mxu0 %v444
        %3200 = vmatmul.mubr.f32.gmra.mxu0 %v443
        %v3201 = vpop.f32.mrf.mxu0
        %v3202 = vadd.f32 %v2977, %v3201
        %v3203 = vpop.f32.mrf.mxu0
        %3204 = vmatprep.mubr.f32.mxu0 %v476
        %3205 = vmatmul.mubr.f32.gmra.mxu0 %v475
        %v3206 = vpop.f32.mrf.mxu0
        %v3207 = vadd.f32 %v2982, %v3206
        %v3208 = vpop.f32.mrf.mxu0
        %3209 = vmatprep.mubr.f32.mxu0 %v508
        %3210 = vmatmul.mubr.f32.gmra.mxu0 %v507
        %v3211 = vpop.f32.mrf.mxu0
        %v3212 = vadd.f32 %v2987, %v3211
        %v3213 = vpop.f32.mrf.mxu0
        %3214 = vmatprep.mubr.f32.mxu0 %v540
        %3215 = vmatmul.mubr.f32.gmra.mxu0 %v539
        %v3216 = vpop.f32.mrf.mxu0
        %v3217 = vadd.f32 %v2992, %v3216
        %v3218 = vpop.f32.mrf.mxu0
        %3219 = vmatprep.mubr.f32.mxu0 %v572
        %3220 = vmatmul.mubr.f32.gmra.mxu0 %v571
        %v3221 = vpop.f32.mrf.mxu0
        %v3222 = vadd.f32 %v2997, %v3221
        %v3223 = vpop.f32.mrf.mxu0
        %3224 = vmatprep.mubr.f32.mxu0 %v604
        %3225 = vmatmul.mubr.f32.gmra.mxu0 %v603
        %v3226 = vpop.f32.mrf.mxu0
        %v3227 = vadd.f32 %v3002, %v3226
        %v3228 = vpop.f32.mrf.mxu0
        %3229 = vmatprep.mubr.f32.mxu0 %v636
        %3230 = vmatmul.mubr.f32.gmra.mxu0 %v635
        %v3231 = vpop.f32.mrf.mxu0
        %v3232 = vadd.f32 %v3007, %v3231
        %v3233 = vpop.f32.mrf.mxu0
        %3234 = vmatprep.mubr.f32.mxu0 %v668
        %3235 = vmatmul.mubr.f32.gmra.mxu0 %v667
        %v3236 = vpop.f32.mrf.mxu0
        %v3237 = vadd.f32 %v3012, %v3236
        %v3238 = vpop.f32.mrf.mxu0
        %3239 = vmatprep.mubr.f32.mxu0 %v700
        %3240 = vmatmul.mubr.f32.gmra.mxu0 %v699
        %v3241 = vpop.f32.mrf.mxu0
        %v3242 = vadd.f32 %v3017, %v3241
        %v3243 = vpop.f32.mrf.mxu0
        %3244 = vmatprep.mubr.f32.mxu0 %v732
        %3245 = vmatmul.mubr.f32.gmra.mxu0 %v731
        %v3246 = vpop.f32.mrf.mxu0
        %v3247 = vadd.f32 %v3022, %v3246
        %v3248 = vpop.f32.mrf.mxu0
        %3249 = vmatprep.mubr.f32.mxu0 %v764
        %3250 = vmatmul.mubr.f32.gmra.mxu0 %v763
        %v3251 = vpop.f32.mrf.mxu0
        %v3252 = vadd.f32 %v3027, %v3251
        %v3253 = vpop.f32.mrf.mxu0
        %3254 = vmatprep.mubr.f32.mxu0 %v796
        %3255 = vmatmul.mubr.f32.gmra.mxu0 %v795
        %v3256 = vpop.f32.mrf.mxu0
        %v3257 = vadd.f32 %v3032, %v3256
        %v3258 = vpop.f32.mrf.mxu0
        %3259 = vmatprep.mubr.f32.mxu0 %v828
        %3260 = vmatmul.mubr.f32.gmra.mxu0 %v827
        %v3261 = vpop.f32.mrf.mxu0
        %v3262 = vadd.f32 %v3037, %v3261
        %v3263 = vpop.f32.mrf.mxu0
        %3264 = vmatprep.mubr.f32.mxu0 %v860
        %3265 = vmatmul.mubr.f32.gmra.mxu0 %v859
        %v3266 = vpop.f32.mrf.mxu0
        %v3267 = vadd.f32 %v3042, %v3266
        %v3268 = vpop.f32.mrf.mxu0
        %3269 = vmatprep.mubr.f32.mxu0 %v892
        %3270 = vmatmul.mubr.f32.gmra.mxu0 %v891
        %v3271 = vpop.f32.mrf.mxu0
        %v3272 = vadd.f32 %v3047, %v3271
        %v3273 = vpop.f32.mrf.mxu0
        %3274 = vmatprep.mubr.f32.mxu0 %v924
        %3275 = vmatmul.mubr.f32.gmra.mxu0 %v923
        %v3276 = vpop.f32.mrf.mxu0
        %v3277 = vadd.f32 %v3052, %v3276
        %v3278 = vpop.f32.mrf.mxu0
        %3279 = vmatprep.mubr.f32.mxu0 %v956
        %3280 = vmatmul.mubr.f32.gmra.mxu0 %v955
        %v3281 = vpop.f32.mrf.mxu0
        %v3282 = vadd.f32 %v3057, %v3281
        %v3283 = vpop.f32.mrf.mxu0
        %3284 = vmatprep.mubr.f32.mxu0 %v988
        %3285 = vmatmul.mubr.f32.gmra.mxu0 %v987
        %v3286 = vpop.f32.mrf.mxu0
        %v3287 = vadd.f32 %v3062, %v3286
        %v3288 = vpop.f32.mrf.mxu0
        %3289 = vmatprep.mubr.f32.mxu0 %v1020
        %3290 = vmatmul.mubr.f32.gmra.mxu0 %v1019
        %v3291 = vpop.f32.mrf.mxu0
        %v3292 = vadd.f32 %v3067, %v3291
        %v3293 = vpop.f32.mrf.mxu0
        %3294 = vmatprep.mubr.f32.mxu0 %v1052
        %3295 = vmatmul.mubr.f32.gmra.mxu0 %v1051
        %v3296 = vpop.f32.mrf.mxu0
        %v3297 = vadd.f32 %v3072, %v3296
        %v3298 = vpop.f32.mrf.mxu0
        %3299 = vmatprep.mubr.f32.mxu0 %v1084
        %3300 = vmatmul.mubr.f32.gmra.mxu0 %v1083
        %v3301 = vpop.f32.mrf.mxu0
        %v3302 = vadd.f32 %v3077, %v3301
        %v3303 = vpop.f32.mrf.mxu0
        %3304 = vmatprep.mubr.f32.mxu0 %v1116
        %3305 = vmatmul.mubr.f32.gmra.mxu0 %v1115
        %v3306 = vpop.f32.mrf.mxu0
        %v3307 = vadd.f32 %v3082, %v3306
        %v3308 = vpop.f32.mrf.mxu0
        %3309 = vmatprep.mubr.f32.mxu0 %v1148
        %3310 = vmatmul.mubr.f32.gmra.mxu0 %v1147
        %v3311 = vpop.f32.mrf.mxu0
        %v3312 = vadd.f32 %v3087, %v3311
        %v3313 = vpop.f32.mrf.mxu0
        %3314 = vmatprep.mubr.f32.mxu0 %v1180
        %3315 = vmatmul.mubr.f32.gmra.mxu0 %v1179
        %v3316 = vpop.f32.mrf.mxu0
        %v3317 = vadd.f32 %v3092, %v3316
        %v3318 = vpop.f32.mrf.mxu0
        %3319 = vmatprep.mubr.f32.mxu0 %v1212
        %3320 = vmatmul.mubr.f32.gmra.mxu0 %v1211
        %v3321 = vpop.f32.mrf.mxu0
        %v3322 = vadd.f32 %v3097, %v3321
        %v3323 = vpop.f32.mrf.mxu0
        %3324 = vdwg.mxu0
        %3325 = vmatprep.subr.mxu0 0.0
        %3326 = vmatpush1.msra.mxu0 %v1470
        %3327 = vmatprep.subr.mxu0 0.0
        %3328 = vmatpush1.msra.mxu0 %v1469
        %3329 = vmatprep.subr.mxu0 0.0
        %3330 = vmatpush1.msra.mxu0 %v1468
        %3331 = vmatprep.subr.mxu0 0.0
        %3332 = vmatpush1.msra.mxu0 %v1467
        %3333 = vmatprep.subr.mxu0 0.0
        %3334 = vmatpush1.msra.mxu0 %v1466
        %3335 = vmatprep.subr.mxu0 0.0
        %3336 = vmatpush1.msra.mxu0 %v1465
        %3337 = vmatprep.subr.mxu0 0.0
        %3338 = vmatpush1.msra.mxu0 %v1464
        %3339 = vmatprep.subr.mxu0 0.0
        %3340 = vmatpush1.msra.mxu0 %v1463
        %3341 = vmatprep.subr.mxu0 0.0
        %3342 = vmatpush1.msra.mxu0 %v1462
        %3343 = vmatprep.subr.mxu0 0.0
        %3344 = vmatpush1.msra.mxu0 %v1461
        %3345 = vmatprep.subr.mxu0 0.0
        %3346 = vmatpush1.msra.mxu0 %v1460
        %3347 = vmatprep.subr.mxu0 0.0
        %3348 = vmatpush1.msra.mxu0 %v1459
        %3349 = vmatprep.subr.mxu0 0.0
        %3350 = vmatpush1.msra.mxu0 %v1458
        %3351 = vmatprep.subr.mxu0 0.0
        %3352 = vmatpush1.msra.mxu0 %v1457
        %3353 = vmatprep.subr.mxu0 0.0
        %3354 = vmatpush1.msra.mxu0 %v1456
        %3355 = vmatprep.subr.mxu0 0.0
        %3356 = vmatpush1.msra.mxu0 %v1455
        %3357 = vmatprep.subr.mxu0 0.0
        %3358 = vmatpush2.msra.mxu0 %v1486
        %3359 = vmatprep.subr.mxu0 0.0
        %3360 = vmatpush2.msra.mxu0 %v1485
        %3361 = vmatprep.subr.mxu0 0.0
        %3362 = vmatpush2.msra.mxu0 %v1484
        %3363 = vmatprep.subr.mxu0 0.0
        %3364 = vmatpush2.msra.mxu0 %v1483
        %3365 = vmatprep.subr.mxu0 0.0
        %3366 = vmatpush2.msra.mxu0 %v1482
        %3367 = vmatprep.subr.mxu0 0.0
        %3368 = vmatpush2.msra.mxu0 %v1481
        %3369 = vmatprep.subr.mxu0 0.0
        %3370 = vmatpush2.msra.mxu0 %v1480
        %3371 = vmatprep.subr.mxu0 0.0
        %3372 = vmatpush2.msra.mxu0 %v1479
        %3373 = vmatprep.subr.mxu0 0.0
        %3374 = vmatpush2.msra.mxu0 %v1478
        %3375 = vmatprep.subr.mxu0 0.0
        %3376 = vmatpush2.msra.mxu0 %v1477
        %3377 = vmatprep.subr.mxu0 0.0
        %3378 = vmatpush2.msra.mxu0 %v1476
        %3379 = vmatprep.subr.mxu0 0.0
        %3380 = vmatpush2.msra.mxu0 %v1475
        %3381 = vmatprep.subr.mxu0 0.0
        %3382 = vmatpush2.msra.mxu0 %v1474
        %3383 = vmatprep.subr.mxu0 0.0
        %3384 = vmatpush2.msra.mxu0 %v1473
        %3385 = vmatprep.subr.mxu0 0.0
        %3386 = vmatpush2.msra.mxu0 %v1472
        %3387 = vmatprep.subr.mxu0 0.0
        %3388 = vmatpush2.msra.mxu0 %v1471
        %3389 = vmatprep.mubr.f32.mxu0 %v222
        %3390 = vmatmul.mubr.f32.gmra.mxu0 %v221
        %v3391 = vpop.f32.mrf.mxu0
        %v3392 = vadd.f32 %v3167, %v3391
        %v3393 = vpop.f32.mrf.mxu0
        %3394 = vmatprep.mubr.f32.mxu0 %v254
        %3395 = vmatmul.mubr.f32.gmra.mxu0 %v253
        %v3396 = vpop.f32.mrf.mxu0
        %v3397 = vadd.f32 %v3172, %v3396
        %v3398 = vpop.f32.mrf.mxu0
        %3399 = vmatprep.mubr.f32.mxu0 %v286
        %3400 = vmatmul.mubr.f32.gmra.mxu0 %v285
        %v3401 = vpop.f32.mrf.mxu0
        %v3402 = vadd.f32 %v3177, %v3401
        %v3403 = vpop.f32.mrf.mxu0
        %3404 = vmatprep.mubr.f32.mxu0 %v318
        %3405 = vmatmul.mubr.f32.gmra.mxu0 %v317
        %v3406 = vpop.f32.mrf.mxu0
        %v3407 = vadd.f32 %v3182, %v3406
        %v3408 = vpop.f32.mrf.mxu0
        %3409 = vmatprep.mubr.f32.mxu0 %v350
        %3410 = vmatmul.mubr.f32.gmra.mxu0 %v349
        %v3411 = vpop.f32.mrf.mxu0
        %v3412 = vadd.f32 %v3187, %v3411
        %v3413 = vpop.f32.mrf.mxu0
        %3414 = vmatprep.mubr.f32.mxu0 %v382
        %3415 = vmatmul.mubr.f32.gmra.mxu0 %v381
        %v3416 = vpop.f32.mrf.mxu0
        %v3417 = vadd.f32 %v3192, %v3416
        %v3418 = vpop.f32.mrf.mxu0
        %3419 = vmatprep.mubr.f32.mxu0 %v414
        %3420 = vmatmul.mubr.f32.gmra.mxu0 %v413
        %v3421 = vpop.f32.mrf.mxu0
        %v3422 = vadd.f32 %v3197, %v3421
        %v3423 = vpop.f32.mrf.mxu0
        %3424 = vmatprep.mubr.f32.mxu0 %v446
        %3425 = vmatmul.mubr.f32.gmra.mxu0 %v445
        %v3426 = vpop.f32.mrf.mxu0
        %v3427 = vadd.f32 %v3202, %v3426
        %v3428 = vpop.f32.mrf.mxu0
        %3429 = vmatprep.mubr.f32.mxu0 %v478
        %3430 = vmatmul.mubr.f32.gmra.mxu0 %v477
        %v3431 = vpop.f32.mrf.mxu0
        %v3432 = vadd.f32 %v3207, %v3431
        %v3433 = vpop.f32.mrf.mxu0
        %3434 = vmatprep.mubr.f32.mxu0 %v510
        %3435 = vmatmul.mubr.f32.gmra.mxu0 %v509
        %v3436 = vpop.f32.mrf.mxu0
        %v3437 = vadd.f32 %v3212, %v3436
        %v3438 = vpop.f32.mrf.mxu0
        %3439 = vmatprep.mubr.f32.mxu0 %v542
        %3440 = vmatmul.mubr.f32.gmra.mxu0 %v541
        %v3441 = vpop.f32.mrf.mxu0
        %v3442 = vadd.f32 %v3217, %v3441
        %v3443 = vpop.f32.mrf.mxu0
        %3444 = vmatprep.mubr.f32.mxu0 %v574
        %3445 = vmatmul.mubr.f32.gmra.mxu0 %v573
        %v3446 = vpop.f32.mrf.mxu0
        %v3447 = vadd.f32 %v3222, %v3446
        %v3448 = vpop.f32.mrf.mxu0
        %3449 = vmatprep.mubr.f32.mxu0 %v606
        %3450 = vmatmul.mubr.f32.gmra.mxu0 %v605
        %v3451 = vpop.f32.mrf.mxu0
        %v3452 = vadd.f32 %v3227, %v3451
        %v3453 = vpop.f32.mrf.mxu0
        %3454 = vmatprep.mubr.f32.mxu0 %v638
        %3455 = vmatmul.mubr.f32.gmra.mxu0 %v637
        %v3456 = vpop.f32.mrf.mxu0
        %v3457 = vadd.f32 %v3232, %v3456
        %v3458 = vpop.f32.mrf.mxu0
        %3459 = vmatprep.mubr.f32.mxu0 %v670
        %3460 = vmatmul.mubr.f32.gmra.mxu0 %v669
        %v3461 = vpop.f32.mrf.mxu0
        %v3462 = vadd.f32 %v3237, %v3461
        %v3463 = vpop.f32.mrf.mxu0
        %3464 = vmatprep.mubr.f32.mxu0 %v702
        %3465 = vmatmul.mubr.f32.gmra.mxu0 %v701
        %v3466 = vpop.f32.mrf.mxu0
        %v3467 = vadd.f32 %v3242, %v3466
        %v3468 = vpop.f32.mrf.mxu0
        %3469 = vmatprep.mubr.f32.mxu0 %v734
        %3470 = vmatmul.mubr.f32.gmra.mxu0 %v733
        %v3471 = vpop.f32.mrf.mxu0
        %v3472 = vadd.f32 %v3247, %v3471
        %v3473 = vpop.f32.mrf.mxu0
        %3474 = vmatprep.mubr.f32.mxu0 %v766
        %3475 = vmatmul.mubr.f32.gmra.mxu0 %v765
        %v3476 = vpop.f32.mrf.mxu0
        %v3477 = vadd.f32 %v3252, %v3476
        %v3478 = vpop.f32.mrf.mxu0
        %3479 = vmatprep.mubr.f32.mxu0 %v798
        %3480 = vmatmul.mubr.f32.gmra.mxu0 %v797
        %v3481 = vpop.f32.mrf.mxu0
        %v3482 = vadd.f32 %v3257, %v3481
        %v3483 = vpop.f32.mrf.mxu0
        %3484 = vmatprep.mubr.f32.mxu0 %v830
        %3485 = vmatmul.mubr.f32.gmra.mxu0 %v829
        %v3486 = vpop.f32.mrf.mxu0
        %v3487 = vadd.f32 %v3262, %v3486
        %v3488 = vpop.f32.mrf.mxu0
        %3489 = vmatprep.mubr.f32.mxu0 %v862
        %3490 = vmatmul.mubr.f32.gmra.mxu0 %v861
        %v3491 = vpop.f32.mrf.mxu0
        %v3492 = vadd.f32 %v3267, %v3491
        %v3493 = vpop.f32.mrf.mxu0
        %3494 = vmatprep.mubr.f32.mxu0 %v894
        %3495 = vmatmul.mubr.f32.gmra.mxu0 %v893
        %v3496 = vpop.f32.mrf.mxu0
        %v3497 = vadd.f32 %v3272, %v3496
        %v3498 = vpop.f32.mrf.mxu0
        %3499 = vmatprep.mubr.f32.mxu0 %v926
        %3500 = vmatmul.mubr.f32.gmra.mxu0 %v925
        %v3501 = vpop.f32.mrf.mxu0
        %v3502 = vadd.f32 %v3277, %v3501
        %v3503 = vpop.f32.mrf.mxu0
        %3504 = vmatprep.mubr.f32.mxu0 %v958
        %3505 = vmatmul.mubr.f32.gmra.mxu0 %v957
        %v3506 = vpop.f32.mrf.mxu0
        %v3507 = vadd.f32 %v3282, %v3506
        %v3508 = vpop.f32.mrf.mxu0
        %3509 = vmatprep.mubr.f32.mxu0 %v990
        %3510 = vmatmul.mubr.f32.gmra.mxu0 %v989
        %v3511 = vpop.f32.mrf.mxu0
        %v3512 = vadd.f32 %v3287, %v3511
        %v3513 = vpop.f32.mrf.mxu0
        %3514 = vmatprep.mubr.f32.mxu0 %v1022
        %3515 = vmatmul.mubr.f32.gmra.mxu0 %v1021
        %v3516 = vpop.f32.mrf.mxu0
        %v3517 = vadd.f32 %v3292, %v3516
        %v3518 = vpop.f32.mrf.mxu0
        %3519 = vmatprep.mubr.f32.mxu0 %v1054
        %3520 = vmatmul.mubr.f32.gmra.mxu0 %v1053
        %v3521 = vpop.f32.mrf.mxu0
        %v3522 = vadd.f32 %v3297, %v3521
        %v3523 = vpop.f32.mrf.mxu0
        %3524 = vmatprep.mubr.f32.mxu0 %v1086
        %3525 = vmatmul.mubr.f32.gmra.mxu0 %v1085
        %v3526 = vpop.f32.mrf.mxu0
        %v3527 = vadd.f32 %v3302, %v3526
        %v3528 = vpop.f32.mrf.mxu0
        %3529 = vmatprep.mubr.f32.mxu0 %v1118
        %3530 = vmatmul.mubr.f32.gmra.mxu0 %v1117
        %v3531 = vpop.f32.mrf.mxu0
        %v3532 = vadd.f32 %v3307, %v3531
        %v3533 = vpop.f32.mrf.mxu0
        %3534 = vmatprep.mubr.f32.mxu0 %v1150
        %3535 = vmatmul.mubr.f32.gmra.mxu0 %v1149
        %v3536 = vpop.f32.mrf.mxu0
        %v3537 = vadd.f32 %v3312, %v3536
        %v3538 = vpop.f32.mrf.mxu0
        %3539 = vmatprep.mubr.f32.mxu0 %v1182
        %3540 = vmatmul.mubr.f32.gmra.mxu0 %v1181
        %v3541 = vpop.f32.mrf.mxu0
        %v3542 = vadd.f32 %v3317, %v3541
        %v3543 = vpop.f32.mrf.mxu0
        %3544 = vmatprep.mubr.f32.mxu0 %v1214
        %3545 = vmatmul.mubr.f32.gmra.mxu0 %v1213
        %v3546 = vpop.f32.mrf.mxu0
        %v3547 = vadd.f32 %v3322, %v3546
        %v3548 = vpop.f32.mrf.mxu0
        %3549 = vdwg.mxu0
        %3550 = vmatprep.subr.mxu0 0.0
        %3551 = vmatpush1.msra.mxu0 %v1502
        %3552 = vmatprep.subr.mxu0 0.0
        %3553 = vmatpush1.msra.mxu0 %v1501
        %3554 = vmatprep.subr.mxu0 0.0
        %3555 = vmatpush1.msra.mxu0 %v1500
        %3556 = vmatprep.subr.mxu0 0.0
        %3557 = vmatpush1.msra.mxu0 %v1499
        %3558 = vmatprep.subr.mxu0 0.0
        %3559 = vmatpush1.msra.mxu0 %v1498
        %3560 = vmatprep.subr.mxu0 0.0
        %3561 = vmatpush1.msra.mxu0 %v1497
        %3562 = vmatprep.subr.mxu0 0.0
        %3563 = vmatpush1.msra.mxu0 %v1496
        %3564 = vmatprep.subr.mxu0 0.0
        %3565 = vmatpush1.msra.mxu0 %v1495
        %3566 = vmatprep.subr.mxu0 0.0
        %3567 = vmatpush1.msra.mxu0 %v1494
        %3568 = vmatprep.subr.mxu0 0.0
        %3569 = vmatpush1.msra.mxu0 %v1493
        %3570 = vmatprep.subr.mxu0 0.0
        %3571 = vmatpush1.msra.mxu0 %v1492
        %3572 = vmatprep.subr.mxu0 0.0
        %3573 = vmatpush1.msra.mxu0 %v1491
        %3574 = vmatprep.subr.mxu0 0.0
        %3575 = vmatpush1.msra.mxu0 %v1490
        %3576 = vmatprep.subr.mxu0 0.0
        %3577 = vmatpush1.msra.mxu0 %v1489
        %3578 = vmatprep.subr.mxu0 0.0
        %3579 = vmatpush1.msra.mxu0 %v1488
        %3580 = vmatprep.subr.mxu0 0.0
        %3581 = vmatpush1.msra.mxu0 %v1487
        %3582 = vmatprep.subr.mxu0 0.0
        %3583 = vmatpush2.msra.mxu0 %v1518
        %3584 = vmatprep.subr.mxu0 0.0
        %3585 = vmatpush2.msra.mxu0 %v1517
        %3586 = vmatprep.subr.mxu0 0.0
        %3587 = vmatpush2.msra.mxu0 %v1516
        %3588 = vmatprep.subr.mxu0 0.0
        %3589 = vmatpush2.msra.mxu0 %v1515
        %3590 = vmatprep.subr.mxu0 0.0
        %3591 = vmatpush2.msra.mxu0 %v1514
        %3592 = vmatprep.subr.mxu0 0.0
        %3593 = vmatpush2.msra.mxu0 %v1513
        %3594 = vmatprep.subr.mxu0 0.0
        %3595 = vmatpush2.msra.mxu0 %v1512
        %3596 = vmatprep.subr.mxu0 0.0
        %3597 = vmatpush2.msra.mxu0 %v1511
        %3598 = vmatprep.subr.mxu0 0.0
        %3599 = vmatpush2.msra.mxu0 %v1510
        %3600 = vmatprep.subr.mxu0 0.0
        %3601 = vmatpush2.msra.mxu0 %v1509
        %3602 = vmatprep.subr.mxu0 0.0
        %3603 = vmatpush2.msra.mxu0 %v1508
        %3604 = vmatprep.subr.mxu0 0.0
        %3605 = vmatpush2.msra.mxu0 %v1507
        %3606 = vmatprep.subr.mxu0 0.0
        %3607 = vmatpush2.msra.mxu0 %v1506
        %3608 = vmatprep.subr.mxu0 0.0
        %3609 = vmatpush2.msra.mxu0 %v1505
        %3610 = vmatprep.subr.mxu0 0.0
        %3611 = vmatpush2.msra.mxu0 %v1504
        %3612 = vmatprep.subr.mxu0 0.0
        %3613 = vmatpush2.msra.mxu0 %v1503
        %3614 = vmatprep.mubr.f32.mxu0 %v224
        %3615 = vmatmul.mubr.f32.gmra.mxu0 %v223
        %v3616 = vpop.f32.mrf.mxu0
        %v3617 = vadd.f32 %v3392, %v3616
        %v3618 = vpop.f32.mrf.mxu0
        %3619 = vmatprep.mubr.f32.mxu0 %v256
        %3620 = vmatmul.mubr.f32.gmra.mxu0 %v255
        %v3621 = vpop.f32.mrf.mxu0
        %v3622 = vadd.f32 %v3397, %v3621
        %v3623 = vpop.f32.mrf.mxu0
        %3624 = vmatprep.mubr.f32.mxu0 %v288
        %3625 = vmatmul.mubr.f32.gmra.mxu0 %v287
        %v3626 = vpop.f32.mrf.mxu0
        %v3627 = vadd.f32 %v3402, %v3626
        %v3628 = vpop.f32.mrf.mxu0
        %3629 = vmatprep.mubr.f32.mxu0 %v320
        %3630 = vmatmul.mubr.f32.gmra.mxu0 %v319
        %v3631 = vpop.f32.mrf.mxu0
        %v3632 = vadd.f32 %v3407, %v3631
        %v3633 = vpop.f32.mrf.mxu0
        %3634 = vmatprep.mubr.f32.mxu0 %v352
        %3635 = vmatmul.mubr.f32.gmra.mxu0 %v351
        %v3636 = vpop.f32.mrf.mxu0
        %v3637 = vadd.f32 %v3412, %v3636
        %v3638 = vpop.f32.mrf.mxu0
        %3639 = vmatprep.mubr.f32.mxu0 %v384
        %3640 = vmatmul.mubr.f32.gmra.mxu0 %v383
        %v3641 = vpop.f32.mrf.mxu0
        %v3642 = vadd.f32 %v3417, %v3641
        %v3643 = vpop.f32.mrf.mxu0
        %3644 = vmatprep.mubr.f32.mxu0 %v416
        %3645 = vmatmul.mubr.f32.gmra.mxu0 %v415
        %v3646 = vpop.f32.mrf.mxu0
        %v3647 = vadd.f32 %v3422, %v3646
        %v3648 = vpop.f32.mrf.mxu0
        %3649 = vmatprep.mubr.f32.mxu0 %v448
        %3650 = vmatmul.mubr.f32.gmra.mxu0 %v447
        %v3651 = vpop.f32.mrf.mxu0
        %v3652 = vadd.f32 %v3427, %v3651
        %v3653 = vpop.f32.mrf.mxu0
        %3654 = vmatprep.mubr.f32.mxu0 %v480
        %3655 = vmatmul.mubr.f32.gmra.mxu0 %v479
        %v3656 = vpop.f32.mrf.mxu0
        %v3657 = vadd.f32 %v3432, %v3656
        %v3658 = vpop.f32.mrf.mxu0
        %3659 = vmatprep.mubr.f32.mxu0 %v512
        %3660 = vmatmul.mubr.f32.gmra.mxu0 %v511
        %v3661 = vpop.f32.mrf.mxu0
        %v3662 = vadd.f32 %v3437, %v3661
        %v3663 = vpop.f32.mrf.mxu0
        %3664 = vmatprep.mubr.f32.mxu0 %v544
        %3665 = vmatmul.mubr.f32.gmra.mxu0 %v543
        %v3666 = vpop.f32.mrf.mxu0
        %v3667 = vadd.f32 %v3442, %v3666
        %v3668 = vpop.f32.mrf.mxu0
        %3669 = vmatprep.mubr.f32.mxu0 %v576
        %3670 = vmatmul.mubr.f32.gmra.mxu0 %v575
        %v3671 = vpop.f32.mrf.mxu0
        %v3672 = vadd.f32 %v3447, %v3671
        %v3673 = vpop.f32.mrf.mxu0
        %3674 = vmatprep.mubr.f32.mxu0 %v608
        %3675 = vmatmul.mubr.f32.gmra.mxu0 %v607
        %v3676 = vpop.f32.mrf.mxu0
        %v3677 = vadd.f32 %v3452, %v3676
        %v3678 = vpop.f32.mrf.mxu0
        %3679 = vmatprep.mubr.f32.mxu0 %v640
        %3680 = vmatmul.mubr.f32.gmra.mxu0 %v639
        %v3681 = vpop.f32.mrf.mxu0
        %v3682 = vadd.f32 %v3457, %v3681
        %v3683 = vpop.f32.mrf.mxu0
        %3684 = vmatprep.mubr.f32.mxu0 %v672
        %3685 = vmatmul.mubr.f32.gmra.mxu0 %v671
        %v3686 = vpop.f32.mrf.mxu0
        %v3687 = vadd.f32 %v3462, %v3686
        %v3688 = vpop.f32.mrf.mxu0
        %3689 = vmatprep.mubr.f32.mxu0 %v704
        %3690 = vmatmul.mubr.f32.gmra.mxu0 %v703
        %v3691 = vpop.f32.mrf.mxu0
        %v3692 = vadd.f32 %v3467, %v3691
        %v3693 = vpop.f32.mrf.mxu0
        %3694 = vmatprep.mubr.f32.mxu0 %v736
        %3695 = vmatmul.mubr.f32.gmra.mxu0 %v735
        %v3696 = vpop.f32.mrf.mxu0
        %v3697 = vadd.f32 %v3472, %v3696
        %v3698 = vpop.f32.mrf.mxu0
        %3699 = vmatprep.mubr.f32.mxu0 %v768
        %3700 = vmatmul.mubr.f32.gmra.mxu0 %v767
        %v3701 = vpop.f32.mrf.mxu0
        %v3702 = vadd.f32 %v3477, %v3701
        %v3703 = vpop.f32.mrf.mxu0
        %3704 = vmatprep.mubr.f32.mxu0 %v800
        %3705 = vmatmul.mubr.f32.gmra.mxu0 %v799
        %v3706 = vpop.f32.mrf.mxu0
        %v3707 = vadd.f32 %v3482, %v3706
        %v3708 = vpop.f32.mrf.mxu0
        %3709 = vmatprep.mubr.f32.mxu0 %v832
        %3710 = vmatmul.mubr.f32.gmra.mxu0 %v831
        %v3711 = vpop.f32.mrf.mxu0
        %v3712 = vadd.f32 %v3487, %v3711
        %v3713 = vpop.f32.mrf.mxu0
        %3714 = vmatprep.mubr.f32.mxu0 %v864
        %3715 = vmatmul.mubr.f32.gmra.mxu0 %v863
        %v3716 = vpop.f32.mrf.mxu0
        %v3717 = vadd.f32 %v3492, %v3716
        %v3718 = vpop.f32.mrf.mxu0
        %3719 = vmatprep.mubr.f32.mxu0 %v896
        %3720 = vmatmul.mubr.f32.gmra.mxu0 %v895
        %v3721 = vpop.f32.mrf.mxu0
        %v3722 = vadd.f32 %v3497, %v3721
        %v3723 = vpop.f32.mrf.mxu0
        %3724 = vmatprep.mubr.f32.mxu0 %v928
        %3725 = vmatmul.mubr.f32.gmra.mxu0 %v927
        %v3726 = vpop.f32.mrf.mxu0
        %v3727 = vadd.f32 %v3502, %v3726
        %v3728 = vpop.f32.mrf.mxu0
        %3729 = vmatprep.mubr.f32.mxu0 %v960
        %3730 = vmatmul.mubr.f32.gmra.mxu0 %v959
        %v3731 = vpop.f32.mrf.mxu0
        %v3732 = vadd.f32 %v3507, %v3731
        %v3733 = vpop.f32.mrf.mxu0
        %3734 = vmatprep.mubr.f32.mxu0 %v992
        %3735 = vmatmul.mubr.f32.gmra.mxu0 %v991
        %v3736 = vpop.f32.mrf.mxu0
        %v3737 = vadd.f32 %v3512, %v3736
        %v3738 = vpop.f32.mrf.mxu0
        %3739 = vmatprep.mubr.f32.mxu0 %v1024
        %3740 = vmatmul.mubr.f32.gmra.mxu0 %v1023
        %v3741 = vpop.f32.mrf.mxu0
        %v3742 = vadd.f32 %v3517, %v3741
        %v3743 = vpop.f32.mrf.mxu0
        %3744 = vmatprep.mubr.f32.mxu0 %v1056
        %3745 = vmatmul.mubr.f32.gmra.mxu0 %v1055
        %v3746 = vpop.f32.mrf.mxu0
        %v3747 = vadd.f32 %v3522, %v3746
        %v3748 = vpop.f32.mrf.mxu0
        %3749 = vmatprep.mubr.f32.mxu0 %v1088
        %3750 = vmatmul.mubr.f32.gmra.mxu0 %v1087
        %v3751 = vpop.f32.mrf.mxu0
        %v3752 = vadd.f32 %v3527, %v3751
        %v3753 = vpop.f32.mrf.mxu0
        %3754 = vmatprep.mubr.f32.mxu0 %v1120
        %3755 = vmatmul.mubr.f32.gmra.mxu0 %v1119
        %v3756 = vpop.f32.mrf.mxu0
        %v3757 = vadd.f32 %v3532, %v3756
        %v3758 = vpop.f32.mrf.mxu0
        %3759 = vmatprep.mubr.f32.mxu0 %v1152
        %3760 = vmatmul.mubr.f32.gmra.mxu0 %v1151
        %v3761 = vpop.f32.mrf.mxu0
        %v3762 = vadd.f32 %v3537, %v3761
        %v3763 = vpop.f32.mrf.mxu0
        %3764 = vmatprep.mubr.f32.mxu0 %v1184
        %3765 = vmatmul.mubr.f32.gmra.mxu0 %v1183
        %v3766 = vpop.f32.mrf.mxu0
        %v3767 = vadd.f32 %v3542, %v3766
        %v3768 = vpop.f32.mrf.mxu0
        %3769 = vmatprep.mubr.f32.mxu0 %v1216
        %3770 = vmatmul.mubr.f32.gmra.mxu0 %v1215
        %v3771 = vpop.f32.mrf.mxu0
        %v3772 = vadd.f32 %v3547, %v3771
        %v3773 = vpop.f32.mrf.mxu0
        %3774 = vdwg.mxu0
        %3775 = vmatprep.subr.mxu0 0.0
        %3776 = vmatpush1.msra.mxu0 %v1534
        %3777 = vmatprep.subr.mxu0 0.0
        %3778 = vmatpush1.msra.mxu0 %v1533
        %3779 = vmatprep.subr.mxu0 0.0
        %3780 = vmatpush1.msra.mxu0 %v1532
        %3781 = vmatprep.subr.mxu0 0.0
        %3782 = vmatpush1.msra.mxu0 %v1531
        %3783 = vmatprep.subr.mxu0 0.0
        %3784 = vmatpush1.msra.mxu0 %v1530
        %3785 = vmatprep.subr.mxu0 0.0
        %3786 = vmatpush1.msra.mxu0 %v1529
        %3787 = vmatprep.subr.mxu0 0.0
        %3788 = vmatpush1.msra.mxu0 %v1528
        %3789 = vmatprep.subr.mxu0 0.0
        %3790 = vmatpush1.msra.mxu0 %v1527
        %3791 = vmatprep.subr.mxu0 0.0
        %3792 = vmatpush1.msra.mxu0 %v1526
        %3793 = vmatprep.subr.mxu0 0.0
        %3794 = vmatpush1.msra.mxu0 %v1525
        %3795 = vmatprep.subr.mxu0 0.0
        %3796 = vmatpush1.msra.mxu0 %v1524
        %3797 = vmatprep.subr.mxu0 0.0
        %3798 = vmatpush1.msra.mxu0 %v1523
        %3799 = vmatprep.subr.mxu0 0.0
        %3800 = vmatpush1.msra.mxu0 %v1522
        %3801 = vmatprep.subr.mxu0 0.0
        %3802 = vmatpush1.msra.mxu0 %v1521
        %3803 = vmatprep.subr.mxu0 0.0
        %3804 = vmatpush1.msra.mxu0 %v1520
        %3805 = vmatprep.subr.mxu0 0.0
        %3806 = vmatpush1.msra.mxu0 %v1519
        %3807 = vmatprep.subr.mxu0 0.0
        %3808 = vmatpush2.msra.mxu0 %v1550
        %3809 = vmatprep.subr.mxu0 0.0
        %3810 = vmatpush2.msra.mxu0 %v1549
        %3811 = vmatprep.subr.mxu0 0.0
        %3812 = vmatpush2.msra.mxu0 %v1548
        %3813 = vmatprep.subr.mxu0 0.0
        %3814 = vmatpush2.msra.mxu0 %v1547
        %3815 = vmatprep.subr.mxu0 0.0
        %3816 = vmatpush2.msra.mxu0 %v1546
        %3817 = vmatprep.subr.mxu0 0.0
        %3818 = vmatpush2.msra.mxu0 %v1545
        %3819 = vmatprep.subr.mxu0 0.0
        %3820 = vmatpush2.msra.mxu0 %v1544
        %3821 = vmatprep.subr.mxu0 0.0
        %3822 = vmatpush2.msra.mxu0 %v1543
        %3823 = vmatprep.subr.mxu0 0.0
        %3824 = vmatpush2.msra.mxu0 %v1542
        %3825 = vmatprep.subr.mxu0 0.0
        %3826 = vmatpush2.msra.mxu0 %v1541
        %3827 = vmatprep.subr.mxu0 0.0
        %3828 = vmatpush2.msra.mxu0 %v1540
        %3829 = vmatprep.subr.mxu0 0.0
        %3830 = vmatpush2.msra.mxu0 %v1539
        %3831 = vmatprep.subr.mxu0 0.0
        %3832 = vmatpush2.msra.mxu0 %v1538
        %3833 = vmatprep.subr.mxu0 0.0
        %3834 = vmatpush2.msra.mxu0 %v1537
        %3835 = vmatprep.subr.mxu0 0.0
        %3836 = vmatpush2.msra.mxu0 %v1536
        %3837 = vmatprep.subr.mxu0 0.0
        %3838 = vmatpush2.msra.mxu0 %v1535
        %3839 = vmatprep.mubr.f32.mxu0 %v226
        %3840 = vmatmul.mubr.f32.gmra.mxu0 %v225
        %v3841 = vpop.f32.mrf.mxu0
        %v3842 = vadd.f32 %v3617, %v3841
        %v3843 = vpop.f32.mrf.mxu0
        %3844 = vmatprep.mubr.f32.mxu0 %v258
        %3845 = vmatmul.mubr.f32.gmra.mxu0 %v257
        %v3846 = vpop.f32.mrf.mxu0
        %v3847 = vadd.f32 %v3622, %v3846
        %v3848 = vpop.f32.mrf.mxu0
        %3849 = vmatprep.mubr.f32.mxu0 %v290
        %3850 = vmatmul.mubr.f32.gmra.mxu0 %v289
        %v3851 = vpop.f32.mrf.mxu0
        %v3852 = vadd.f32 %v3627, %v3851
        %v3853 = vpop.f32.mrf.mxu0
        %3854 = vmatprep.mubr.f32.mxu0 %v322
        %3855 = vmatmul.mubr.f32.gmra.mxu0 %v321
        %v3856 = vpop.f32.mrf.mxu0
        %v3857 = vadd.f32 %v3632, %v3856
        %v3858 = vpop.f32.mrf.mxu0
        %3859 = vmatprep.mubr.f32.mxu0 %v354
        %3860 = vmatmul.mubr.f32.gmra.mxu0 %v353
        %v3861 = vpop.f32.mrf.mxu0
        %v3862 = vadd.f32 %v3637, %v3861
        %v3863 = vpop.f32.mrf.mxu0
        %3864 = vmatprep.mubr.f32.mxu0 %v386
        %3865 = vmatmul.mubr.f32.gmra.mxu0 %v385
        %v3866 = vpop.f32.mrf.mxu0
        %v3867 = vadd.f32 %v3642, %v3866
        %v3868 = vpop.f32.mrf.mxu0
        %3869 = vmatprep.mubr.f32.mxu0 %v418
        %3870 = vmatmul.mubr.f32.gmra.mxu0 %v417
        %v3871 = vpop.f32.mrf.mxu0
        %v3872 = vadd.f32 %v3647, %v3871
        %v3873 = vpop.f32.mrf.mxu0
        %3874 = vmatprep.mubr.f32.mxu0 %v450
        %3875 = vmatmul.mubr.f32.gmra.mxu0 %v449
        %v3876 = vpop.f32.mrf.mxu0
        %v3877 = vadd.f32 %v3652, %v3876
        %v3878 = vpop.f32.mrf.mxu0
        %3879 = vmatprep.mubr.f32.mxu0 %v482
        %3880 = vmatmul.mubr.f32.gmra.mxu0 %v481
        %v3881 = vpop.f32.mrf.mxu0
        %v3882 = vadd.f32 %v3657, %v3881
        %v3883 = vpop.f32.mrf.mxu0
        %3884 = vmatprep.mubr.f32.mxu0 %v514
        %3885 = vmatmul.mubr.f32.gmra.mxu0 %v513
        %v3886 = vpop.f32.mrf.mxu0
        %v3887 = vadd.f32 %v3662, %v3886
        %v3888 = vpop.f32.mrf.mxu0
        %3889 = vmatprep.mubr.f32.mxu0 %v546
        %3890 = vmatmul.mubr.f32.gmra.mxu0 %v545
        %v3891 = vpop.f32.mrf.mxu0
        %v3892 = vadd.f32 %v3667, %v3891
        %v3893 = vpop.f32.mrf.mxu0
        %3894 = vmatprep.mubr.f32.mxu0 %v578
        %3895 = vmatmul.mubr.f32.gmra.mxu0 %v577
        %v3896 = vpop.f32.mrf.mxu0
        %v3897 = vadd.f32 %v3672, %v3896
        %v3898 = vpop.f32.mrf.mxu0
        %3899 = vmatprep.mubr.f32.mxu0 %v610
        %3900 = vmatmul.mubr.f32.gmra.mxu0 %v609
        %v3901 = vpop.f32.mrf.mxu0
        %v3902 = vadd.f32 %v3677, %v3901
        %v3903 = vpop.f32.mrf.mxu0
        %3904 = vmatprep.mubr.f32.mxu0 %v642
        %3905 = vmatmul.mubr.f32.gmra.mxu0 %v641
        %v3906 = vpop.f32.mrf.mxu0
        %v3907 = vadd.f32 %v3682, %v3906
        %v3908 = vpop.f32.mrf.mxu0
        %3909 = vmatprep.mubr.f32.mxu0 %v674
        %3910 = vmatmul.mubr.f32.gmra.mxu0 %v673
        %v3911 = vpop.f32.mrf.mxu0
        %v3912 = vadd.f32 %v3687, %v3911
        %v3913 = vpop.f32.mrf.mxu0
        %3914 = vmatprep.mubr.f32.mxu0 %v706
        %3915 = vmatmul.mubr.f32.gmra.mxu0 %v705
        %v3916 = vpop.f32.mrf.mxu0
        %v3917 = vadd.f32 %v3692, %v3916
        %v3918 = vpop.f32.mrf.mxu0
        %3919 = vmatprep.mubr.f32.mxu0 %v738
        %3920 = vmatmul.mubr.f32.gmra.mxu0 %v737
        %v3921 = vpop.f32.mrf.mxu0
        %v3922 = vadd.f32 %v3697, %v3921
        %v3923 = vpop.f32.mrf.mxu0
        %3924 = vmatprep.mubr.f32.mxu0 %v770
        %3925 = vmatmul.mubr.f32.gmra.mxu0 %v769
        %v3926 = vpop.f32.mrf.mxu0
        %v3927 = vadd.f32 %v3702, %v3926
        %v3928 = vpop.f32.mrf.mxu0
        %3929 = vmatprep.mubr.f32.mxu0 %v802
        %3930 = vmatmul.mubr.f32.gmra.mxu0 %v801
        %v3931 = vpop.f32.mrf.mxu0
        %v3932 = vadd.f32 %v3707, %v3931
        %v3933 = vpop.f32.mrf.mxu0
        %3934 = vmatprep.mubr.f32.mxu0 %v834
        %3935 = vmatmul.mubr.f32.gmra.mxu0 %v833
        %v3936 = vpop.f32.mrf.mxu0
        %v3937 = vadd.f32 %v3712, %v3936
        %v3938 = vpop.f32.mrf.mxu0
        %3939 = vmatprep.mubr.f32.mxu0 %v866
        %3940 = vmatmul.mubr.f32.gmra.mxu0 %v865
        %v3941 = vpop.f32.mrf.mxu0
        %v3942 = vadd.f32 %v3717, %v3941
        %v3943 = vpop.f32.mrf.mxu0
        %3944 = vmatprep.mubr.f32.mxu0 %v898
        %3945 = vmatmul.mubr.f32.gmra.mxu0 %v897
        %v3946 = vpop.f32.mrf.mxu0
        %v3947 = vadd.f32 %v3722, %v3946
        %v3948 = vpop.f32.mrf.mxu0
        %3949 = vmatprep.mubr.f32.mxu0 %v930
        %3950 = vmatmul.mubr.f32.gmra.mxu0 %v929
        %v3951 = vpop.f32.mrf.mxu0
        %v3952 = vadd.f32 %v3727, %v3951
        %v3953 = vpop.f32.mrf.mxu0
        %3954 = vmatprep.mubr.f32.mxu0 %v962
        %3955 = vmatmul.mubr.f32.gmra.mxu0 %v961
        %v3956 = vpop.f32.mrf.mxu0
        %v3957 = vadd.f32 %v3732, %v3956
        %v3958 = vpop.f32.mrf.mxu0
        %3959 = vmatprep.mubr.f32.mxu0 %v994
        %3960 = vmatmul.mubr.f32.gmra.mxu0 %v993
        %v3961 = vpop.f32.mrf.mxu0
        %v3962 = vadd.f32 %v3737, %v3961
        %v3963 = vpop.f32.mrf.mxu0
        %3964 = vmatprep.mubr.f32.mxu0 %v1026
        %3965 = vmatmul.mubr.f32.gmra.mxu0 %v1025
        %v3966 = vpop.f32.mrf.mxu0
        %v3967 = vadd.f32 %v3742, %v3966
        %v3968 = vpop.f32.mrf.mxu0
        %3969 = vmatprep.mubr.f32.mxu0 %v1058
        %3970 = vmatmul.mubr.f32.gmra.mxu0 %v1057
        %v3971 = vpop.f32.mrf.mxu0
        %v3972 = vadd.f32 %v3747, %v3971
        %v3973 = vpop.f32.mrf.mxu0
        %3974 = vmatprep.mubr.f32.mxu0 %v1090
        %3975 = vmatmul.mubr.f32.gmra.mxu0 %v1089
        %v3976 = vpop.f32.mrf.mxu0
        %v3977 = vadd.f32 %v3752, %v3976
        %v3978 = vpop.f32.mrf.mxu0
        %3979 = vmatprep.mubr.f32.mxu0 %v1122
        %3980 = vmatmul.mubr.f32.gmra.mxu0 %v1121
        %v3981 = vpop.f32.mrf.mxu0
        %v3982 = vadd.f32 %v3757, %v3981
        %v3983 = vpop.f32.mrf.mxu0
        %3984 = vmatprep.mubr.f32.mxu0 %v1154
        %3985 = vmatmul.mubr.f32.gmra.mxu0 %v1153
        %v3986 = vpop.f32.mrf.mxu0
        %v3987 = vadd.f32 %v3762, %v3986
        %v3988 = vpop.f32.mrf.mxu0
        %3989 = vmatprep.mubr.f32.mxu0 %v1186
        %3990 = vmatmul.mubr.f32.gmra.mxu0 %v1185
        %v3991 = vpop.f32.mrf.mxu0
        %v3992 = vadd.f32 %v3767, %v3991
        %v3993 = vpop.f32.mrf.mxu0
        %3994 = vmatprep.mubr.f32.mxu0 %v1218
        %3995 = vmatmul.mubr.f32.gmra.mxu0 %v1217
        %v3996 = vpop.f32.mrf.mxu0
        %v3997 = vadd.f32 %v3772, %v3996
        %v3998 = vpop.f32.mrf.mxu0
        %3999 = vdwg.mxu0
        %4000 = vmatprep.subr.mxu0 0.0
        %4001 = vmatpush1.msra.mxu0 %v1566
        %4002 = vmatprep.subr.mxu0 0.0
        %4003 = vmatpush1.msra.mxu0 %v1565
        %4004 = vmatprep.subr.mxu0 0.0
        %4005 = vmatpush1.msra.mxu0 %v1564
        %4006 = vmatprep.subr.mxu0 0.0
        %4007 = vmatpush1.msra.mxu0 %v1563
        %4008 = vmatprep.subr.mxu0 0.0
        %4009 = vmatpush1.msra.mxu0 %v1562
        %4010 = vmatprep.subr.mxu0 0.0
        %4011 = vmatpush1.msra.mxu0 %v1561
        %4012 = vmatprep.subr.mxu0 0.0
        %4013 = vmatpush1.msra.mxu0 %v1560
        %4014 = vmatprep.subr.mxu0 0.0
        %4015 = vmatpush1.msra.mxu0 %v1559
        %4016 = vmatprep.subr.mxu0 0.0
        %4017 = vmatpush1.msra.mxu0 %v1558
        %4018 = vmatprep.subr.mxu0 0.0
        %4019 = vmatpush1.msra.mxu0 %v1557
        %4020 = vmatprep.subr.mxu0 0.0
        %4021 = vmatpush1.msra.mxu0 %v1556
        %4022 = vmatprep.subr.mxu0 0.0
        %4023 = vmatpush1.msra.mxu0 %v1555
        %4024 = vmatprep.subr.mxu0 0.0
        %4025 = vmatpush1.msra.mxu0 %v1554
        %4026 = vmatprep.subr.mxu0 0.0
        %4027 = vmatpush1.msra.mxu0 %v1553
        %4028 = vmatprep.subr.mxu0 0.0
        %4029 = vmatpush1.msra.mxu0 %v1552
        %4030 = vmatprep.subr.mxu0 0.0
        %4031 = vmatpush1.msra.mxu0 %v1551
        %4032 = vmatprep.subr.mxu0 0.0
        %4033 = vmatpush2.msra.mxu0 %v1582
        %4034 = vmatprep.subr.mxu0 0.0
        %4035 = vmatpush2.msra.mxu0 %v1581
        %4036 = vmatprep.subr.mxu0 0.0
        %4037 = vmatpush2.msra.mxu0 %v1580
        %4038 = vmatprep.subr.mxu0 0.0
        %4039 = vmatpush2.msra.mxu0 %v1579
        %4040 = vmatprep.subr.mxu0 0.0
        %4041 = vmatpush2.msra.mxu0 %v1578
        %4042 = vmatprep.subr.mxu0 0.0
        %4043 = vmatpush2.msra.mxu0 %v1577
        %4044 = vmatprep.subr.mxu0 0.0
        %4045 = vmatpush2.msra.mxu0 %v1576
        %4046 = vmatprep.subr.mxu0 0.0
        %4047 = vmatpush2.msra.mxu0 %v1575
        %4048 = vmatprep.subr.mxu0 0.0
        %4049 = vmatpush2.msra.mxu0 %v1574
        %4050 = vmatprep.subr.mxu0 0.0
        %4051 = vmatpush2.msra.mxu0 %v1573
        %4052 = vmatprep.subr.mxu0 0.0
        %4053 = vmatpush2.msra.mxu0 %v1572
        %4054 = vmatprep.subr.mxu0 0.0
        %4055 = vmatpush2.msra.mxu0 %v1571
        %4056 = vmatprep.subr.mxu0 0.0
        %4057 = vmatpush2.msra.mxu0 %v1570
        %4058 = vmatprep.subr.mxu0 0.0
        %4059 = vmatpush2.msra.mxu0 %v1569
        %4060 = vmatprep.subr.mxu0 0.0
        %4061 = vmatpush2.msra.mxu0 %v1568
        %4062 = vmatprep.subr.mxu0 0.0
        %4063 = vmatpush2.msra.mxu0 %v1567
        %4064 = vmatprep.mubr.f32.mxu0 %v228
        %4065 = vmatmul.mubr.f32.gmra.mxu0 %v227
        %v4066 = vpop.f32.mrf.mxu0
        %v4067 = vadd.f32 %v3842, %v4066
        %v4068 = vpop.f32.mrf.mxu0
        %4069 = vmatprep.mubr.f32.mxu0 %v260
        %4070 = vmatmul.mubr.f32.gmra.mxu0 %v259
        %v4071 = vpop.f32.mrf.mxu0
        %v4072 = vadd.f32 %v3847, %v4071
        %v4073 = vpop.f32.mrf.mxu0
        %4074 = vmatprep.mubr.f32.mxu0 %v292
        %4075 = vmatmul.mubr.f32.gmra.mxu0 %v291
        %v4076 = vpop.f32.mrf.mxu0
        %v4077 = vadd.f32 %v3852, %v4076
        %v4078 = vpop.f32.mrf.mxu0
        %4079 = vmatprep.mubr.f32.mxu0 %v324
        %4080 = vmatmul.mubr.f32.gmra.mxu0 %v323
        %v4081 = vpop.f32.mrf.mxu0
        %v4082 = vadd.f32 %v3857, %v4081
        %v4083 = vpop.f32.mrf.mxu0
        %4084 = vmatprep.mubr.f32.mxu0 %v356
        %4085 = vmatmul.mubr.f32.gmra.mxu0 %v355
        %v4086 = vpop.f32.mrf.mxu0
        %v4087 = vadd.f32 %v3862, %v4086
        %v4088 = vpop.f32.mrf.mxu0
        %4089 = vmatprep.mubr.f32.mxu0 %v388
        %4090 = vmatmul.mubr.f32.gmra.mxu0 %v387
        %v4091 = vpop.f32.mrf.mxu0
        %v4092 = vadd.f32 %v3867, %v4091
        %v4093 = vpop.f32.mrf.mxu0
        %4094 = vmatprep.mubr.f32.mxu0 %v420
        %4095 = vmatmul.mubr.f32.gmra.mxu0 %v419
        %v4096 = vpop.f32.mrf.mxu0
        %v4097 = vadd.f32 %v3872, %v4096
        %v4098 = vpop.f32.mrf.mxu0
        %4099 = vmatprep.mubr.f32.mxu0 %v452
        %4100 = vmatmul.mubr.f32.gmra.mxu0 %v451
        %v4101 = vpop.f32.mrf.mxu0
        %v4102 = vadd.f32 %v3877, %v4101
        %v4103 = vpop.f32.mrf.mxu0
        %4104 = vmatprep.mubr.f32.mxu0 %v484
        %4105 = vmatmul.mubr.f32.gmra.mxu0 %v483
        %v4106 = vpop.f32.mrf.mxu0
        %v4107 = vadd.f32 %v3882, %v4106
        %v4108 = vpop.f32.mrf.mxu0
        %4109 = vmatprep.mubr.f32.mxu0 %v516
        %4110 = vmatmul.mubr.f32.gmra.mxu0 %v515
        %v4111 = vpop.f32.mrf.mxu0
        %v4112 = vadd.f32 %v3887, %v4111
        %v4113 = vpop.f32.mrf.mxu0
        %4114 = vmatprep.mubr.f32.mxu0 %v548
        %4115 = vmatmul.mubr.f32.gmra.mxu0 %v547
        %v4116 = vpop.f32.mrf.mxu0
        %v4117 = vadd.f32 %v3892, %v4116
        %v4118 = vpop.f32.mrf.mxu0
        %4119 = vmatprep.mubr.f32.mxu0 %v580
        %4120 = vmatmul.mubr.f32.gmra.mxu0 %v579
        %v4121 = vpop.f32.mrf.mxu0
        %v4122 = vadd.f32 %v3897, %v4121
        %v4123 = vpop.f32.mrf.mxu0
        %4124 = vmatprep.mubr.f32.mxu0 %v612
        %4125 = vmatmul.mubr.f32.gmra.mxu0 %v611
        %v4126 = vpop.f32.mrf.mxu0
        %v4127 = vadd.f32 %v3902, %v4126
        %v4128 = vpop.f32.mrf.mxu0
        %4129 = vmatprep.mubr.f32.mxu0 %v644
        %4130 = vmatmul.mubr.f32.gmra.mxu0 %v643
        %v4131 = vpop.f32.mrf.mxu0
        %v4132 = vadd.f32 %v3907, %v4131
        %v4133 = vpop.f32.mrf.mxu0
        %4134 = vmatprep.mubr.f32.mxu0 %v676
        %4135 = vmatmul.mubr.f32.gmra.mxu0 %v675
        %v4136 = vpop.f32.mrf.mxu0
        %v4137 = vadd.f32 %v3912, %v4136
        %v4138 = vpop.f32.mrf.mxu0
        %4139 = vmatprep.mubr.f32.mxu0 %v708
        %4140 = vmatmul.mubr.f32.gmra.mxu0 %v707
        %v4141 = vpop.f32.mrf.mxu0
        %v4142 = vadd.f32 %v3917, %v4141
        %v4143 = vpop.f32.mrf.mxu0
        %4144 = vmatprep.mubr.f32.mxu0 %v740
        %4145 = vmatmul.mubr.f32.gmra.mxu0 %v739
        %v4146 = vpop.f32.mrf.mxu0
        %v4147 = vadd.f32 %v3922, %v4146
        %v4148 = vpop.f32.mrf.mxu0
        %4149 = vmatprep.mubr.f32.mxu0 %v772
        %4150 = vmatmul.mubr.f32.gmra.mxu0 %v771
        %v4151 = vpop.f32.mrf.mxu0
        %v4152 = vadd.f32 %v3927, %v4151
        %v4153 = vpop.f32.mrf.mxu0
        %4154 = vmatprep.mubr.f32.mxu0 %v804
        %4155 = vmatmul.mubr.f32.gmra.mxu0 %v803
        %v4156 = vpop.f32.mrf.mxu0
        %v4157 = vadd.f32 %v3932, %v4156
        %v4158 = vpop.f32.mrf.mxu0
        %4159 = vmatprep.mubr.f32.mxu0 %v836
        %4160 = vmatmul.mubr.f32.gmra.mxu0 %v835
        %v4161 = vpop.f32.mrf.mxu0
        %v4162 = vadd.f32 %v3937, %v4161
        %v4163 = vpop.f32.mrf.mxu0
        %4164 = vmatprep.mubr.f32.mxu0 %v868
        %4165 = vmatmul.mubr.f32.gmra.mxu0 %v867
        %v4166 = vpop.f32.mrf.mxu0
        %v4167 = vadd.f32 %v3942, %v4166
        %v4168 = vpop.f32.mrf.mxu0
        %4169 = vmatprep.mubr.f32.mxu0 %v900
        %4170 = vmatmul.mubr.f32.gmra.mxu0 %v899
        %v4171 = vpop.f32.mrf.mxu0
        %v4172 = vadd.f32 %v3947, %v4171
        %v4173 = vpop.f32.mrf.mxu0
        %4174 = vmatprep.mubr.f32.mxu0 %v932
        %4175 = vmatmul.mubr.f32.gmra.mxu0 %v931
        %v4176 = vpop.f32.mrf.mxu0
        %v4177 = vadd.f32 %v3952, %v4176
        %v4178 = vpop.f32.mrf.mxu0
        %4179 = vmatprep.mubr.f32.mxu0 %v964
        %4180 = vmatmul.mubr.f32.gmra.mxu0 %v963
        %v4181 = vpop.f32.mrf.mxu0
        %v4182 = vadd.f32 %v3957, %v4181
        %v4183 = vpop.f32.mrf.mxu0
        %4184 = vmatprep.mubr.f32.mxu0 %v996
        %4185 = vmatmul.mubr.f32.gmra.mxu0 %v995
        %v4186 = vpop.f32.mrf.mxu0
        %v4187 = vadd.f32 %v3962, %v4186
        %v4188 = vpop.f32.mrf.mxu0
        %4189 = vmatprep.mubr.f32.mxu0 %v1028
        %4190 = vmatmul.mubr.f32.gmra.mxu0 %v1027
        %v4191 = vpop.f32.mrf.mxu0
        %v4192 = vadd.f32 %v3967, %v4191
        %v4193 = vpop.f32.mrf.mxu0
        %4194 = vmatprep.mubr.f32.mxu0 %v1060
        %4195 = vmatmul.mubr.f32.gmra.mxu0 %v1059
        %v4196 = vpop.f32.mrf.mxu0
        %v4197 = vadd.f32 %v3972, %v4196
        %v4198 = vpop.f32.mrf.mxu0
        %4199 = vmatprep.mubr.f32.mxu0 %v1092
        %4200 = vmatmul.mubr.f32.gmra.mxu0 %v1091
        %v4201 = vpop.f32.mrf.mxu0
        %v4202 = vadd.f32 %v3977, %v4201
        %v4203 = vpop.f32.mrf.mxu0
        %4204 = vmatprep.mubr.f32.mxu0 %v1124
        %4205 = vmatmul.mubr.f32.gmra.mxu0 %v1123
        %v4206 = vpop.f32.mrf.mxu0
        %v4207 = vadd.f32 %v3982, %v4206
        %v4208 = vpop.f32.mrf.mxu0
        %4209 = vmatprep.mubr.f32.mxu0 %v1156
        %4210 = vmatmul.mubr.f32.gmra.mxu0 %v1155
        %v4211 = vpop.f32.mrf.mxu0
        %v4212 = vadd.f32 %v3987, %v4211
        %v4213 = vpop.f32.mrf.mxu0
        %4214 = vmatprep.mubr.f32.mxu0 %v1188
        %4215 = vmatmul.mubr.f32.gmra.mxu0 %v1187
        %v4216 = vpop.f32.mrf.mxu0
        %v4217 = vadd.f32 %v3992, %v4216
        %v4218 = vpop.f32.mrf.mxu0
        %4219 = vmatprep.mubr.f32.mxu0 %v1220
        %4220 = vmatmul.mubr.f32.gmra.mxu0 %v1219
        %v4221 = vpop.f32.mrf.mxu0
        %v4222 = vadd.f32 %v3997, %v4221
        %v4223 = vpop.f32.mrf.mxu0
        %4224 = vdwg.mxu0
        %4225 = vmatprep.subr.mxu0 0.0
        %4226 = vmatpush1.msra.mxu0 %v1598
        %4227 = vmatprep.subr.mxu0 0.0
        %4228 = vmatpush1.msra.mxu0 %v1597
        %4229 = vmatprep.subr.mxu0 0.0
        %4230 = vmatpush1.msra.mxu0 %v1596
        %4231 = vmatprep.subr.mxu0 0.0
        %4232 = vmatpush1.msra.mxu0 %v1595
        %4233 = vmatprep.subr.mxu0 0.0
        %4234 = vmatpush1.msra.mxu0 %v1594
        %4235 = vmatprep.subr.mxu0 0.0
        %4236 = vmatpush1.msra.mxu0 %v1593
        %4237 = vmatprep.subr.mxu0 0.0
        %4238 = vmatpush1.msra.mxu0 %v1592
        %4239 = vmatprep.subr.mxu0 0.0
        %4240 = vmatpush1.msra.mxu0 %v1591
        %4241 = vmatprep.subr.mxu0 0.0
        %4242 = vmatpush1.msra.mxu0 %v1590
        %4243 = vmatprep.subr.mxu0 0.0
        %4244 = vmatpush1.msra.mxu0 %v1589
        %4245 = vmatprep.subr.mxu0 0.0
        %4246 = vmatpush1.msra.mxu0 %v1588
        %4247 = vmatprep.subr.mxu0 0.0
        %4248 = vmatpush1.msra.mxu0 %v1587
        %4249 = vmatprep.subr.mxu0 0.0
        %4250 = vmatpush1.msra.mxu0 %v1586
        %4251 = vmatprep.subr.mxu0 0.0
        %4252 = vmatpush1.msra.mxu0 %v1585
        %4253 = vmatprep.subr.mxu0 0.0
        %4254 = vmatpush1.msra.mxu0 %v1584
        %4255 = vmatprep.subr.mxu0 0.0
        %4256 = vmatpush1.msra.mxu0 %v1583
        %4257 = vmatprep.subr.mxu0 0.0
        %4258 = vmatpush2.msra.mxu0 %v1614
        %4259 = vmatprep.subr.mxu0 0.0
        %4260 = vmatpush2.msra.mxu0 %v1613
        %4261 = vmatprep.subr.mxu0 0.0
        %4262 = vmatpush2.msra.mxu0 %v1612
        %4263 = vmatprep.subr.mxu0 0.0
        %4264 = vmatpush2.msra.mxu0 %v1611
        %4265 = vmatprep.subr.mxu0 0.0
        %4266 = vmatpush2.msra.mxu0 %v1610
        %4267 = vmatprep.subr.mxu0 0.0
        %4268 = vmatpush2.msra.mxu0 %v1609
        %4269 = vmatprep.subr.mxu0 0.0
        %4270 = vmatpush2.msra.mxu0 %v1608
        %4271 = vmatprep.subr.mxu0 0.0
        %4272 = vmatpush2.msra.mxu0 %v1607
        %4273 = vmatprep.subr.mxu0 0.0
        %4274 = vmatpush2.msra.mxu0 %v1606
        %4275 = vmatprep.subr.mxu0 0.0
        %4276 = vmatpush2.msra.mxu0 %v1605
        %4277 = vmatprep.subr.mxu0 0.0
        %4278 = vmatpush2.msra.mxu0 %v1604
        %4279 = vmatprep.subr.mxu0 0.0
        %4280 = vmatpush2.msra.mxu0 %v1603
        %4281 = vmatprep.subr.mxu0 0.0
        %4282 = vmatpush2.msra.mxu0 %v1602
        %4283 = vmatprep.subr.mxu0 0.0
        %4284 = vmatpush2.msra.mxu0 %v1601
        %4285 = vmatprep.subr.mxu0 0.0
        %4286 = vmatpush2.msra.mxu0 %v1600
        %4287 = vmatprep.subr.mxu0 0.0
        %4288 = vmatpush2.msra.mxu0 %v1599
        %4289 = vmatprep.mubr.f32.mxu0 %v230
        %4290 = vmatmul.mubr.f32.gmra.mxu0 %v229
        %v4291 = vpop.f32.mrf.mxu0
        %v4292 = vadd.f32 %v4067, %v4291
        %v4293 = vpop.f32.mrf.mxu0
        %4294 = vmatprep.mubr.f32.mxu0 %v262
        %4295 = vmatmul.mubr.f32.gmra.mxu0 %v261
        %v4296 = vpop.f32.mrf.mxu0
        %v4297 = vadd.f32 %v4072, %v4296
        %v4298 = vpop.f32.mrf.mxu0
        %4299 = vmatprep.mubr.f32.mxu0 %v294
        %4300 = vmatmul.mubr.f32.gmra.mxu0 %v293
        %v4301 = vpop.f32.mrf.mxu0
        %v4302 = vadd.f32 %v4077, %v4301
        %v4303 = vpop.f32.mrf.mxu0
        %4304 = vmatprep.mubr.f32.mxu0 %v326
        %4305 = vmatmul.mubr.f32.gmra.mxu0 %v325
        %v4306 = vpop.f32.mrf.mxu0
        %v4307 = vadd.f32 %v4082, %v4306
        %v4308 = vpop.f32.mrf.mxu0
        %4309 = vmatprep.mubr.f32.mxu0 %v358
        %4310 = vmatmul.mubr.f32.gmra.mxu0 %v357
        %v4311 = vpop.f32.mrf.mxu0
        %v4312 = vadd.f32 %v4087, %v4311
        %v4313 = vpop.f32.mrf.mxu0
        %4314 = vmatprep.mubr.f32.mxu0 %v390
        %4315 = vmatmul.mubr.f32.gmra.mxu0 %v389
        %v4316 = vpop.f32.mrf.mxu0
        %v4317 = vadd.f32 %v4092, %v4316
        %v4318 = vpop.f32.mrf.mxu0
        %4319 = vmatprep.mubr.f32.mxu0 %v422
        %4320 = vmatmul.mubr.f32.gmra.mxu0 %v421
        %v4321 = vpop.f32.mrf.mxu0
        %v4322 = vadd.f32 %v4097, %v4321
        %v4323 = vpop.f32.mrf.mxu0
        %4324 = vmatprep.mubr.f32.mxu0 %v454
        %4325 = vmatmul.mubr.f32.gmra.mxu0 %v453
        %v4326 = vpop.f32.mrf.mxu0
        %v4327 = vadd.f32 %v4102, %v4326
        %v4328 = vpop.f32.mrf.mxu0
        %4329 = vmatprep.mubr.f32.mxu0 %v486
        %4330 = vmatmul.mubr.f32.gmra.mxu0 %v485
        %v4331 = vpop.f32.mrf.mxu0
        %v4332 = vadd.f32 %v4107, %v4331
        %v4333 = vpop.f32.mrf.mxu0
        %4334 = vmatprep.mubr.f32.mxu0 %v518
        %4335 = vmatmul.mubr.f32.gmra.mxu0 %v517
        %v4336 = vpop.f32.mrf.mxu0
        %v4337 = vadd.f32 %v4112, %v4336
        %v4338 = vpop.f32.mrf.mxu0
        %4339 = vmatprep.mubr.f32.mxu0 %v550
        %4340 = vmatmul.mubr.f32.gmra.mxu0 %v549
        %v4341 = vpop.f32.mrf.mxu0
        %v4342 = vadd.f32 %v4117, %v4341
        %v4343 = vpop.f32.mrf.mxu0
        %4344 = vmatprep.mubr.f32.mxu0 %v582
        %4345 = vmatmul.mubr.f32.gmra.mxu0 %v581
        %v4346 = vpop.f32.mrf.mxu0
        %v4347 = vadd.f32 %v4122, %v4346
        %v4348 = vpop.f32.mrf.mxu0
        %4349 = vmatprep.mubr.f32.mxu0 %v614
        %4350 = vmatmul.mubr.f32.gmra.mxu0 %v613
        %v4351 = vpop.f32.mrf.mxu0
        %v4352 = vadd.f32 %v4127, %v4351
        %v4353 = vpop.f32.mrf.mxu0
        %4354 = vmatprep.mubr.f32.mxu0 %v646
        %4355 = vmatmul.mubr.f32.gmra.mxu0 %v645
        %v4356 = vpop.f32.mrf.mxu0
        %v4357 = vadd.f32 %v4132, %v4356
        %v4358 = vpop.f32.mrf.mxu0
        %4359 = vmatprep.mubr.f32.mxu0 %v678
        %4360 = vmatmul.mubr.f32.gmra.mxu0 %v677
        %v4361 = vpop.f32.mrf.mxu0
        %v4362 = vadd.f32 %v4137, %v4361
        %v4363 = vpop.f32.mrf.mxu0
        %4364 = vmatprep.mubr.f32.mxu0 %v710
        %4365 = vmatmul.mubr.f32.gmra.mxu0 %v709
        %v4366 = vpop.f32.mrf.mxu0
        %v4367 = vadd.f32 %v4142, %v4366
        %v4368 = vpop.f32.mrf.mxu0
        %4369 = vmatprep.mubr.f32.mxu0 %v742
        %4370 = vmatmul.mubr.f32.gmra.mxu0 %v741
        %v4371 = vpop.f32.mrf.mxu0
        %v4372 = vadd.f32 %v4147, %v4371
        %v4373 = vpop.f32.mrf.mxu0
        %4374 = vmatprep.mubr.f32.mxu0 %v774
        %4375 = vmatmul.mubr.f32.gmra.mxu0 %v773
        %v4376 = vpop.f32.mrf.mxu0
        %v4377 = vadd.f32 %v4152, %v4376
        %v4378 = vpop.f32.mrf.mxu0
        %4379 = vmatprep.mubr.f32.mxu0 %v806
        %4380 = vmatmul.mubr.f32.gmra.mxu0 %v805
        %v4381 = vpop.f32.mrf.mxu0
        %v4382 = vadd.f32 %v4157, %v4381
        %v4383 = vpop.f32.mrf.mxu0
        %4384 = vmatprep.mubr.f32.mxu0 %v838
        %4385 = vmatmul.mubr.f32.gmra.mxu0 %v837
        %v4386 = vpop.f32.mrf.mxu0
        %v4387 = vadd.f32 %v4162, %v4386
        %v4388 = vpop.f32.mrf.mxu0
        %4389 = vmatprep.mubr.f32.mxu0 %v870
        %4390 = vmatmul.mubr.f32.gmra.mxu0 %v869
        %v4391 = vpop.f32.mrf.mxu0
        %v4392 = vadd.f32 %v4167, %v4391
        %v4393 = vpop.f32.mrf.mxu0
        %4394 = vmatprep.mubr.f32.mxu0 %v902
        %4395 = vmatmul.mubr.f32.gmra.mxu0 %v901
        %v4396 = vpop.f32.mrf.mxu0
        %v4397 = vadd.f32 %v4172, %v4396
        %v4398 = vpop.f32.mrf.mxu0
        %4399 = vmatprep.mubr.f32.mxu0 %v934
        %4400 = vmatmul.mubr.f32.gmra.mxu0 %v933
        %v4401 = vpop.f32.mrf.mxu0
        %v4402 = vadd.f32 %v4177, %v4401
        %v4403 = vpop.f32.mrf.mxu0
        %4404 = vmatprep.mubr.f32.mxu0 %v966
        %4405 = vmatmul.mubr.f32.gmra.mxu0 %v965
        %v4406 = vpop.f32.mrf.mxu0
        %v4407 = vadd.f32 %v4182, %v4406
        %v4408 = vpop.f32.mrf.mxu0
        %4409 = vmatprep.mubr.f32.mxu0 %v998
        %4410 = vmatmul.mubr.f32.gmra.mxu0 %v997
        %v4411 = vpop.f32.mrf.mxu0
        %v4412 = vadd.f32 %v4187, %v4411
        %v4413 = vpop.f32.mrf.mxu0
        %4414 = vmatprep.mubr.f32.mxu0 %v1030
        %4415 = vmatmul.mubr.f32.gmra.mxu0 %v1029
        %v4416 = vpop.f32.mrf.mxu0
        %v4417 = vadd.f32 %v4192, %v4416
        %v4418 = vpop.f32.mrf.mxu0
        %4419 = vmatprep.mubr.f32.mxu0 %v1062
        %4420 = vmatmul.mubr.f32.gmra.mxu0 %v1061
        %v4421 = vpop.f32.mrf.mxu0
        %v4422 = vadd.f32 %v4197, %v4421
        %v4423 = vpop.f32.mrf.mxu0
        %4424 = vmatprep.mubr.f32.mxu0 %v1094
        %4425 = vmatmul.mubr.f32.gmra.mxu0 %v1093
        %v4426 = vpop.f32.mrf.mxu0
        %v4427 = vadd.f32 %v4202, %v4426
        %v4428 = vpop.f32.mrf.mxu0
        %4429 = vmatprep.mubr.f32.mxu0 %v1126
        %4430 = vmatmul.mubr.f32.gmra.mxu0 %v1125
        %v4431 = vpop.f32.mrf.mxu0
        %v4432 = vadd.f32 %v4207, %v4431
        %v4433 = vpop.f32.mrf.mxu0
        %4434 = vmatprep.mubr.f32.mxu0 %v1158
        %4435 = vmatmul.mubr.f32.gmra.mxu0 %v1157
        %v4436 = vpop.f32.mrf.mxu0
        %v4437 = vadd.f32 %v4212, %v4436
        %v4438 = vpop.f32.mrf.mxu0
        %4439 = vmatprep.mubr.f32.mxu0 %v1190
        %4440 = vmatmul.mubr.f32.gmra.mxu0 %v1189
        %v4441 = vpop.f32.mrf.mxu0
        %v4442 = vadd.f32 %v4217, %v4441
        %v4443 = vpop.f32.mrf.mxu0
        %4444 = vmatprep.mubr.f32.mxu0 %v1222
        %4445 = vmatmul.mubr.f32.gmra.mxu0 %v1221
        %v4446 = vpop.f32.mrf.mxu0
        %v4447 = vadd.f32 %v4222, %v4446
        %v4448 = vpop.f32.mrf.mxu0
        %4449 = vdwg.mxu0
        %4450 = vmatprep.subr.mxu0 0.0
        %4451 = vmatpush1.msra.mxu0 %v1630
        %4452 = vmatprep.subr.mxu0 0.0
        %4453 = vmatpush1.msra.mxu0 %v1629
        %4454 = vmatprep.subr.mxu0 0.0
        %4455 = vmatpush1.msra.mxu0 %v1628
        %4456 = vmatprep.subr.mxu0 0.0
        %4457 = vmatpush1.msra.mxu0 %v1627
        %4458 = vmatprep.subr.mxu0 0.0
        %4459 = vmatpush1.msra.mxu0 %v1626
        %4460 = vmatprep.subr.mxu0 0.0
        %4461 = vmatpush1.msra.mxu0 %v1625
        %4462 = vmatprep.subr.mxu0 0.0
        %4463 = vmatpush1.msra.mxu0 %v1624
        %4464 = vmatprep.subr.mxu0 0.0
        %4465 = vmatpush1.msra.mxu0 %v1623
        %4466 = vmatprep.subr.mxu0 0.0
        %4467 = vmatpush1.msra.mxu0 %v1622
        %4468 = vmatprep.subr.mxu0 0.0
        %4469 = vmatpush1.msra.mxu0 %v1621
        %4470 = vmatprep.subr.mxu0 0.0
        %4471 = vmatpush1.msra.mxu0 %v1620
        %4472 = vmatprep.subr.mxu0 0.0
        %4473 = vmatpush1.msra.mxu0 %v1619
        %4474 = vmatprep.subr.mxu0 0.0
        %4475 = vmatpush1.msra.mxu0 %v1618
        %4476 = vmatprep.subr.mxu0 0.0
        %4477 = vmatpush1.msra.mxu0 %v1617
        %4478 = vmatprep.subr.mxu0 0.0
        %4479 = vmatpush1.msra.mxu0 %v1616
        %4480 = vmatprep.subr.mxu0 0.0
        %4481 = vmatpush1.msra.mxu0 %v1615
        %4482 = vmatprep.subr.mxu0 0.0
        %4483 = vmatpush2.msra.mxu0 %v1646
        %4484 = vmatprep.subr.mxu0 0.0
        %4485 = vmatpush2.msra.mxu0 %v1645
        %4486 = vmatprep.subr.mxu0 0.0
        %4487 = vmatpush2.msra.mxu0 %v1644
        %4488 = vmatprep.subr.mxu0 0.0
        %4489 = vmatpush2.msra.mxu0 %v1643
        %4490 = vmatprep.subr.mxu0 0.0
        %4491 = vmatpush2.msra.mxu0 %v1642
        %4492 = vmatprep.subr.mxu0 0.0
        %4493 = vmatpush2.msra.mxu0 %v1641
        %4494 = vmatprep.subr.mxu0 0.0
        %4495 = vmatpush2.msra.mxu0 %v1640
        %4496 = vmatprep.subr.mxu0 0.0
        %4497 = vmatpush2.msra.mxu0 %v1639
        %4498 = vmatprep.subr.mxu0 0.0
        %4499 = vmatpush2.msra.mxu0 %v1638
        %4500 = vmatprep.subr.mxu0 0.0
        %4501 = vmatpush2.msra.mxu0 %v1637
        %4502 = vmatprep.subr.mxu0 0.0
        %4503 = vmatpush2.msra.mxu0 %v1636
        %4504 = vmatprep.subr.mxu0 0.0
        %4505 = vmatpush2.msra.mxu0 %v1635
        %4506 = vmatprep.subr.mxu0 0.0
        %4507 = vmatpush2.msra.mxu0 %v1634
        %4508 = vmatprep.subr.mxu0 0.0
        %4509 = vmatpush2.msra.mxu0 %v1633
        %4510 = vmatprep.subr.mxu0 0.0
        %4511 = vmatpush2.msra.mxu0 %v1632
        %4512 = vmatprep.subr.mxu0 0.0
        %4513 = vmatpush2.msra.mxu0 %v1631
        %4514 = vmatprep.mubr.f32.mxu0 %v232
        %4515 = vmatmul.mubr.f32.gmra.mxu0 %v231
        %v4516 = vpop.f32.mrf.mxu0
        %v4517 = vadd.f32 %v4292, %v4516
        %v4518 = vpop.f32.mrf.mxu0
        %4519 = vmatprep.mubr.f32.mxu0 %v264
        %4520 = vmatmul.mubr.f32.gmra.mxu0 %v263
        %v4521 = vpop.f32.mrf.mxu0
        %v4522 = vadd.f32 %v4297, %v4521
        %v4523 = vpop.f32.mrf.mxu0
        %4524 = vmatprep.mubr.f32.mxu0 %v296
        %4525 = vmatmul.mubr.f32.gmra.mxu0 %v295
        %v4526 = vpop.f32.mrf.mxu0
        %v4527 = vadd.f32 %v4302, %v4526
        %v4528 = vpop.f32.mrf.mxu0
        %4529 = vmatprep.mubr.f32.mxu0 %v328
        %4530 = vmatmul.mubr.f32.gmra.mxu0 %v327
        %v4531 = vpop.f32.mrf.mxu0
        %v4532 = vadd.f32 %v4307, %v4531
        %v4533 = vpop.f32.mrf.mxu0
        %4534 = vmatprep.mubr.f32.mxu0 %v360
        %4535 = vmatmul.mubr.f32.gmra.mxu0 %v359
        %v4536 = vpop.f32.mrf.mxu0
        %v4537 = vadd.f32 %v4312, %v4536
        %v4538 = vpop.f32.mrf.mxu0
        %4539 = vmatprep.mubr.f32.mxu0 %v392
        %4540 = vmatmul.mubr.f32.gmra.mxu0 %v391
        %v4541 = vpop.f32.mrf.mxu0
        %v4542 = vadd.f32 %v4317, %v4541
        %v4543 = vpop.f32.mrf.mxu0
        %4544 = vmatprep.mubr.f32.mxu0 %v424
        %4545 = vmatmul.mubr.f32.gmra.mxu0 %v423
        %v4546 = vpop.f32.mrf.mxu0
        %v4547 = vadd.f32 %v4322, %v4546
        %v4548 = vpop.f32.mrf.mxu0
        %4549 = vmatprep.mubr.f32.mxu0 %v456
        %4550 = vmatmul.mubr.f32.gmra.mxu0 %v455
        %v4551 = vpop.f32.mrf.mxu0
        %v4552 = vadd.f32 %v4327, %v4551
        %v4553 = vpop.f32.mrf.mxu0
        %4554 = vmatprep.mubr.f32.mxu0 %v488
        %4555 = vmatmul.mubr.f32.gmra.mxu0 %v487
        %v4556 = vpop.f32.mrf.mxu0
        %v4557 = vadd.f32 %v4332, %v4556
        %v4558 = vpop.f32.mrf.mxu0
        %4559 = vmatprep.mubr.f32.mxu0 %v520
        %4560 = vmatmul.mubr.f32.gmra.mxu0 %v519
        %v4561 = vpop.f32.mrf.mxu0
        %v4562 = vadd.f32 %v4337, %v4561
        %v4563 = vpop.f32.mrf.mxu0
        %4564 = vmatprep.mubr.f32.mxu0 %v552
        %4565 = vmatmul.mubr.f32.gmra.mxu0 %v551
        %v4566 = vpop.f32.mrf.mxu0
        %v4567 = vadd.f32 %v4342, %v4566
        %v4568 = vpop.f32.mrf.mxu0
        %4569 = vmatprep.mubr.f32.mxu0 %v584
        %4570 = vmatmul.mubr.f32.gmra.mxu0 %v583
        %v4571 = vpop.f32.mrf.mxu0
        %v4572 = vadd.f32 %v4347, %v4571
        %v4573 = vpop.f32.mrf.mxu0
        %4574 = vmatprep.mubr.f32.mxu0 %v616
        %4575 = vmatmul.mubr.f32.gmra.mxu0 %v615
        %v4576 = vpop.f32.mrf.mxu0
        %v4577 = vadd.f32 %v4352, %v4576
        %v4578 = vpop.f32.mrf.mxu0
        %4579 = vmatprep.mubr.f32.mxu0 %v648
        %4580 = vmatmul.mubr.f32.gmra.mxu0 %v647
        %v4581 = vpop.f32.mrf.mxu0
        %v4582 = vadd.f32 %v4357, %v4581
        %v4583 = vpop.f32.mrf.mxu0
        %4584 = vmatprep.mubr.f32.mxu0 %v680
        %4585 = vmatmul.mubr.f32.gmra.mxu0 %v679
        %v4586 = vpop.f32.mrf.mxu0
        %v4587 = vadd.f32 %v4362, %v4586
        %v4588 = vpop.f32.mrf.mxu0
        %4589 = vmatprep.mubr.f32.mxu0 %v712
        %4590 = vmatmul.mubr.f32.gmra.mxu0 %v711
        %v4591 = vpop.f32.mrf.mxu0
        %v4592 = vadd.f32 %v4367, %v4591
        %v4593 = vpop.f32.mrf.mxu0
        %4594 = vmatprep.mubr.f32.mxu0 %v744
        %4595 = vmatmul.mubr.f32.gmra.mxu0 %v743
        %v4596 = vpop.f32.mrf.mxu0
        %v4597 = vadd.f32 %v4372, %v4596
        %v4598 = vpop.f32.mrf.mxu0
        %4599 = vmatprep.mubr.f32.mxu0 %v776
        %4600 = vmatmul.mubr.f32.gmra.mxu0 %v775
        %v4601 = vpop.f32.mrf.mxu0
        %v4602 = vadd.f32 %v4377, %v4601
        %v4603 = vpop.f32.mrf.mxu0
        %4604 = vmatprep.mubr.f32.mxu0 %v808
        %4605 = vmatmul.mubr.f32.gmra.mxu0 %v807
        %v4606 = vpop.f32.mrf.mxu0
        %v4607 = vadd.f32 %v4382, %v4606
        %v4608 = vpop.f32.mrf.mxu0
        %4609 = vmatprep.mubr.f32.mxu0 %v840
        %4610 = vmatmul.mubr.f32.gmra.mxu0 %v839
        %v4611 = vpop.f32.mrf.mxu0
        %v4612 = vadd.f32 %v4387, %v4611
        %v4613 = vpop.f32.mrf.mxu0
        %4614 = vmatprep.mubr.f32.mxu0 %v872
        %4615 = vmatmul.mubr.f32.gmra.mxu0 %v871
        %v4616 = vpop.f32.mrf.mxu0
        %v4617 = vadd.f32 %v4392, %v4616
        %v4618 = vpop.f32.mrf.mxu0
        %4619 = vmatprep.mubr.f32.mxu0 %v904
        %4620 = vmatmul.mubr.f32.gmra.mxu0 %v903
        %v4621 = vpop.f32.mrf.mxu0
        %v4622 = vadd.f32 %v4397, %v4621
        %v4623 = vpop.f32.mrf.mxu0
        %4624 = vmatprep.mubr.f32.mxu0 %v936
        %4625 = vmatmul.mubr.f32.gmra.mxu0 %v935
        %v4626 = vpop.f32.mrf.mxu0
        %v4627 = vadd.f32 %v4402, %v4626
        %v4628 = vpop.f32.mrf.mxu0
        %4629 = vmatprep.mubr.f32.mxu0 %v968
        %4630 = vmatmul.mubr.f32.gmra.mxu0 %v967
        %v4631 = vpop.f32.mrf.mxu0
        %v4632 = vadd.f32 %v4407, %v4631
        %v4633 = vpop.f32.mrf.mxu0
        %4634 = vmatprep.mubr.f32.mxu0 %v1000
        %4635 = vmatmul.mubr.f32.gmra.mxu0 %v999
        %v4636 = vpop.f32.mrf.mxu0
        %v4637 = vadd.f32 %v4412, %v4636
        %v4638 = vpop.f32.mrf.mxu0
        %4639 = vmatprep.mubr.f32.mxu0 %v1032
        %4640 = vmatmul.mubr.f32.gmra.mxu0 %v1031
        %v4641 = vpop.f32.mrf.mxu0
        %v4642 = vadd.f32 %v4417, %v4641
        %v4643 = vpop.f32.mrf.mxu0
        %4644 = vmatprep.mubr.f32.mxu0 %v1064
        %4645 = vmatmul.mubr.f32.gmra.mxu0 %v1063
        %v4646 = vpop.f32.mrf.mxu0
        %v4647 = vadd.f32 %v4422, %v4646
        %v4648 = vpop.f32.mrf.mxu0
        %4649 = vmatprep.mubr.f32.mxu0 %v1096
        %4650 = vmatmul.mubr.f32.gmra.mxu0 %v1095
        %v4651 = vpop.f32.mrf.mxu0
        %v4652 = vadd.f32 %v4427, %v4651
        %v4653 = vpop.f32.mrf.mxu0
        %4654 = vmatprep.mubr.f32.mxu0 %v1128
        %4655 = vmatmul.mubr.f32.gmra.mxu0 %v1127
        %v4656 = vpop.f32.mrf.mxu0
        %v4657 = vadd.f32 %v4432, %v4656
        %v4658 = vpop.f32.mrf.mxu0
        %4659 = vmatprep.mubr.f32.mxu0 %v1160
        %4660 = vmatmul.mubr.f32.gmra.mxu0 %v1159
        %v4661 = vpop.f32.mrf.mxu0
        %v4662 = vadd.f32 %v4437, %v4661
        %v4663 = vpop.f32.mrf.mxu0
        %4664 = vmatprep.mubr.f32.mxu0 %v1192
        %4665 = vmatmul.mubr.f32.gmra.mxu0 %v1191
        %v4666 = vpop.f32.mrf.mxu0
        %v4667 = vadd.f32 %v4442, %v4666
        %v4668 = vpop.f32.mrf.mxu0
        %4669 = vmatprep.mubr.f32.mxu0 %v1224
        %4670 = vmatmul.mubr.f32.gmra.mxu0 %v1223
        %v4671 = vpop.f32.mrf.mxu0
        %v4672 = vadd.f32 %v4447, %v4671
        %v4673 = vpop.f32.mrf.mxu0
        %4674 = vdwg.mxu0
        %4675 = vmatprep.subr.mxu0 0.0
        %4676 = vmatpush1.msra.mxu0 %v1662
        %4677 = vmatprep.subr.mxu0 0.0
        %4678 = vmatpush1.msra.mxu0 %v1661
        %4679 = vmatprep.subr.mxu0 0.0
        %4680 = vmatpush1.msra.mxu0 %v1660
        %4681 = vmatprep.subr.mxu0 0.0
        %4682 = vmatpush1.msra.mxu0 %v1659
        %4683 = vmatprep.subr.mxu0 0.0
        %4684 = vmatpush1.msra.mxu0 %v1658
        %4685 = vmatprep.subr.mxu0 0.0
        %4686 = vmatpush1.msra.mxu0 %v1657
        %4687 = vmatprep.subr.mxu0 0.0
        %4688 = vmatpush1.msra.mxu0 %v1656
        %4689 = vmatprep.subr.mxu0 0.0
        %4690 = vmatpush1.msra.mxu0 %v1655
        %4691 = vmatprep.subr.mxu0 0.0
        %4692 = vmatpush1.msra.mxu0 %v1654
        %4693 = vmatprep.subr.mxu0 0.0
        %4694 = vmatpush1.msra.mxu0 %v1653
        %4695 = vmatprep.subr.mxu0 0.0
        %4696 = vmatpush1.msra.mxu0 %v1652
        %4697 = vmatprep.subr.mxu0 0.0
        %4698 = vmatpush1.msra.mxu0 %v1651
        %4699 = vmatprep.subr.mxu0 0.0
        %4700 = vmatpush1.msra.mxu0 %v1650
        %4701 = vmatprep.subr.mxu0 0.0
        %4702 = vmatpush1.msra.mxu0 %v1649
        %4703 = vmatprep.subr.mxu0 0.0
        %4704 = vmatpush1.msra.mxu0 %v1648
        %4705 = vmatprep.subr.mxu0 0.0
        %4706 = vmatpush1.msra.mxu0 %v1647
        %4707 = vmatprep.subr.mxu0 0.0
        %4708 = vmatpush2.msra.mxu0 %v1678
        %4709 = vmatprep.subr.mxu0 0.0
        %4710 = vmatpush2.msra.mxu0 %v1677
        %4711 = vmatprep.subr.mxu0 0.0
        %4712 = vmatpush2.msra.mxu0 %v1676
        %4713 = vmatprep.subr.mxu0 0.0
        %4714 = vmatpush2.msra.mxu0 %v1675
        %4715 = vmatprep.subr.mxu0 0.0
        %4716 = vmatpush2.msra.mxu0 %v1674
        %4717 = vmatprep.subr.mxu0 0.0
        %4718 = vmatpush2.msra.mxu0 %v1673
        %4719 = vmatprep.subr.mxu0 0.0
        %4720 = vmatpush2.msra.mxu0 %v1672
        %4721 = vmatprep.subr.mxu0 0.0
        %4722 = vmatpush2.msra.mxu0 %v1671
        %4723 = vmatprep.subr.mxu0 0.0
        %4724 = vmatpush2.msra.mxu0 %v1670
        %4725 = vmatprep.subr.mxu0 0.0
        %4726 = vmatpush2.msra.mxu0 %v1669
        %4727 = vmatprep.subr.mxu0 0.0
        %4728 = vmatpush2.msra.mxu0 %v1668
        %4729 = vmatprep.subr.mxu0 0.0
        %4730 = vmatpush2.msra.mxu0 %v1667
        %4731 = vmatprep.subr.mxu0 0.0
        %4732 = vmatpush2.msra.mxu0 %v1666
        %4733 = vmatprep.subr.mxu0 0.0
        %4734 = vmatpush2.msra.mxu0 %v1665
        %4735 = vmatprep.subr.mxu0 0.0
        %4736 = vmatpush2.msra.mxu0 %v1664
        %4737 = vmatprep.subr.mxu0 0.0
        %4738 = vmatpush2.msra.mxu0 %v1663
        %4739 = vmatprep.mubr.f32.mxu0 %v234
        %4740 = vmatmul.mubr.f32.gmra.mxu0 %v233
        %v4741 = vpop.f32.mrf.mxu0
        %v4742 = vadd.f32 %v4517, %v4741
        %v4743 = vpop.f32.mrf.mxu0
        %4744 = vmatprep.mubr.f32.mxu0 %v266
        %4745 = vmatmul.mubr.f32.gmra.mxu0 %v265
        %v4746 = vpop.f32.mrf.mxu0
        %v4747 = vadd.f32 %v4522, %v4746
        %v4748 = vpop.f32.mrf.mxu0
        %4749 = vmatprep.mubr.f32.mxu0 %v298
        %4750 = vmatmul.mubr.f32.gmra.mxu0 %v297
        %v4751 = vpop.f32.mrf.mxu0
        %v4752 = vadd.f32 %v4527, %v4751
        %v4753 = vpop.f32.mrf.mxu0
        %4754 = vmatprep.mubr.f32.mxu0 %v330
        %4755 = vmatmul.mubr.f32.gmra.mxu0 %v329
        %v4756 = vpop.f32.mrf.mxu0
        %v4757 = vadd.f32 %v4532, %v4756
        %v4758 = vpop.f32.mrf.mxu0
        %4759 = vmatprep.mubr.f32.mxu0 %v362
        %4760 = vmatmul.mubr.f32.gmra.mxu0 %v361
        %v4761 = vpop.f32.mrf.mxu0
        %v4762 = vadd.f32 %v4537, %v4761
        %v4763 = vpop.f32.mrf.mxu0
        %4764 = vmatprep.mubr.f32.mxu0 %v394
        %4765 = vmatmul.mubr.f32.gmra.mxu0 %v393
        %v4766 = vpop.f32.mrf.mxu0
        %v4767 = vadd.f32 %v4542, %v4766
        %v4768 = vpop.f32.mrf.mxu0
        %4769 = vmatprep.mubr.f32.mxu0 %v426
        %4770 = vmatmul.mubr.f32.gmra.mxu0 %v425
        %v4771 = vpop.f32.mrf.mxu0
        %v4772 = vadd.f32 %v4547, %v4771
        %v4773 = vpop.f32.mrf.mxu0
        %4774 = vmatprep.mubr.f32.mxu0 %v458
        %4775 = vmatmul.mubr.f32.gmra.mxu0 %v457
        %v4776 = vpop.f32.mrf.mxu0
        %v4777 = vadd.f32 %v4552, %v4776
        %v4778 = vpop.f32.mrf.mxu0
        %4779 = vmatprep.mubr.f32.mxu0 %v490
        %4780 = vmatmul.mubr.f32.gmra.mxu0 %v489
        %v4781 = vpop.f32.mrf.mxu0
        %v4782 = vadd.f32 %v4557, %v4781
        %v4783 = vpop.f32.mrf.mxu0
        %4784 = vmatprep.mubr.f32.mxu0 %v522
        %4785 = vmatmul.mubr.f32.gmra.mxu0 %v521
        %v4786 = vpop.f32.mrf.mxu0
        %v4787 = vadd.f32 %v4562, %v4786
        %v4788 = vpop.f32.mrf.mxu0
        %4789 = vmatprep.mubr.f32.mxu0 %v554
        %4790 = vmatmul.mubr.f32.gmra.mxu0 %v553
        %v4791 = vpop.f32.mrf.mxu0
        %v4792 = vadd.f32 %v4567, %v4791
        %v4793 = vpop.f32.mrf.mxu0
        %4794 = vmatprep.mubr.f32.mxu0 %v586
        %4795 = vmatmul.mubr.f32.gmra.mxu0 %v585
        %v4796 = vpop.f32.mrf.mxu0
        %v4797 = vadd.f32 %v4572, %v4796
        %v4798 = vpop.f32.mrf.mxu0
        %4799 = vmatprep.mubr.f32.mxu0 %v618
        %4800 = vmatmul.mubr.f32.gmra.mxu0 %v617
        %v4801 = vpop.f32.mrf.mxu0
        %v4802 = vadd.f32 %v4577, %v4801
        %v4803 = vpop.f32.mrf.mxu0
        %4804 = vmatprep.mubr.f32.mxu0 %v650
        %4805 = vmatmul.mubr.f32.gmra.mxu0 %v649
        %v4806 = vpop.f32.mrf.mxu0
        %v4807 = vadd.f32 %v4582, %v4806
        %v4808 = vpop.f32.mrf.mxu0
        %4809 = vmatprep.mubr.f32.mxu0 %v682
        %4810 = vmatmul.mubr.f32.gmra.mxu0 %v681
        %v4811 = vpop.f32.mrf.mxu0
        %v4812 = vadd.f32 %v4587, %v4811
        %v4813 = vpop.f32.mrf.mxu0
        %4814 = vmatprep.mubr.f32.mxu0 %v714
        %4815 = vmatmul.mubr.f32.gmra.mxu0 %v713
        %v4816 = vpop.f32.mrf.mxu0
        %v4817 = vadd.f32 %v4592, %v4816
        %v4818 = vpop.f32.mrf.mxu0
        %4819 = vmatprep.mubr.f32.mxu0 %v746
        %4820 = vmatmul.mubr.f32.gmra.mxu0 %v745
        %v4821 = vpop.f32.mrf.mxu0
        %v4822 = vadd.f32 %v4597, %v4821
        %v4823 = vpop.f32.mrf.mxu0
        %4824 = vmatprep.mubr.f32.mxu0 %v778
        %4825 = vmatmul.mubr.f32.gmra.mxu0 %v777
        %v4826 = vpop.f32.mrf.mxu0
        %v4827 = vadd.f32 %v4602, %v4826
        %v4828 = vpop.f32.mrf.mxu0
        %4829 = vmatprep.mubr.f32.mxu0 %v810
        %4830 = vmatmul.mubr.f32.gmra.mxu0 %v809
        %v4831 = vpop.f32.mrf.mxu0
        %v4832 = vadd.f32 %v4607, %v4831
        %v4833 = vpop.f32.mrf.mxu0
        %4834 = vmatprep.mubr.f32.mxu0 %v842
        %4835 = vmatmul.mubr.f32.gmra.mxu0 %v841
        %v4836 = vpop.f32.mrf.mxu0
        %v4837 = vadd.f32 %v4612, %v4836
        %v4838 = vpop.f32.mrf.mxu0
        %4839 = vmatprep.mubr.f32.mxu0 %v874
        %4840 = vmatmul.mubr.f32.gmra.mxu0 %v873
        %v4841 = vpop.f32.mrf.mxu0
        %v4842 = vadd.f32 %v4617, %v4841
        %v4843 = vpop.f32.mrf.mxu0
        %4844 = vmatprep.mubr.f32.mxu0 %v906
        %4845 = vmatmul.mubr.f32.gmra.mxu0 %v905
        %v4846 = vpop.f32.mrf.mxu0
        %v4847 = vadd.f32 %v4622, %v4846
        %v4848 = vpop.f32.mrf.mxu0
        %4849 = vmatprep.mubr.f32.mxu0 %v938
        %4850 = vmatmul.mubr.f32.gmra.mxu0 %v937
        %v4851 = vpop.f32.mrf.mxu0
        %v4852 = vadd.f32 %v4627, %v4851
        %v4853 = vpop.f32.mrf.mxu0
        %4854 = vmatprep.mubr.f32.mxu0 %v970
        %4855 = vmatmul.mubr.f32.gmra.mxu0 %v969
        %v4856 = vpop.f32.mrf.mxu0
        %v4857 = vadd.f32 %v4632, %v4856
        %v4858 = vpop.f32.mrf.mxu0
        %4859 = vmatprep.mubr.f32.mxu0 %v1002
        %4860 = vmatmul.mubr.f32.gmra.mxu0 %v1001
        %v4861 = vpop.f32.mrf.mxu0
        %v4862 = vadd.f32 %v4637, %v4861
        %v4863 = vpop.f32.mrf.mxu0
        %4864 = vmatprep.mubr.f32.mxu0 %v1034
        %4865 = vmatmul.mubr.f32.gmra.mxu0 %v1033
        %v4866 = vpop.f32.mrf.mxu0
        %v4867 = vadd.f32 %v4642, %v4866
        %v4868 = vpop.f32.mrf.mxu0
        %4869 = vmatprep.mubr.f32.mxu0 %v1066
        %4870 = vmatmul.mubr.f32.gmra.mxu0 %v1065
        %v4871 = vpop.f32.mrf.mxu0
        %v4872 = vadd.f32 %v4647, %v4871
        %v4873 = vpop.f32.mrf.mxu0
        %4874 = vmatprep.mubr.f32.mxu0 %v1098
        %4875 = vmatmul.mubr.f32.gmra.mxu0 %v1097
        %v4876 = vpop.f32.mrf.mxu0
        %v4877 = vadd.f32 %v4652, %v4876
        %v4878 = vpop.f32.mrf.mxu0
        %4879 = vmatprep.mubr.f32.mxu0 %v1130
        %4880 = vmatmul.mubr.f32.gmra.mxu0 %v1129
        %v4881 = vpop.f32.mrf.mxu0
        %v4882 = vadd.f32 %v4657, %v4881
        %v4883 = vpop.f32.mrf.mxu0
        %4884 = vmatprep.mubr.f32.mxu0 %v1162
        %4885 = vmatmul.mubr.f32.gmra.mxu0 %v1161
        %v4886 = vpop.f32.mrf.mxu0
        %v4887 = vadd.f32 %v4662, %v4886
        %v4888 = vpop.f32.mrf.mxu0
        %4889 = vmatprep.mubr.f32.mxu0 %v1194
        %4890 = vmatmul.mubr.f32.gmra.mxu0 %v1193
        %v4891 = vpop.f32.mrf.mxu0
        %v4892 = vadd.f32 %v4667, %v4891
        %v4893 = vpop.f32.mrf.mxu0
        %4894 = vmatprep.mubr.f32.mxu0 %v1226
        %4895 = vmatmul.mubr.f32.gmra.mxu0 %v1225
        %v4896 = vpop.f32.mrf.mxu0
        %v4897 = vadd.f32 %v4672, %v4896
        %v4898 = vpop.f32.mrf.mxu0
        %4899 = vdwg.mxu0
        %4900 = vmatprep.subr.mxu0 0.0
        %4901 = vmatpush1.msra.mxu0 %v1694
        %4902 = vmatprep.subr.mxu0 0.0
        %4903 = vmatpush1.msra.mxu0 %v1693
        %4904 = vmatprep.subr.mxu0 0.0
        %4905 = vmatpush1.msra.mxu0 %v1692
        %4906 = vmatprep.subr.mxu0 0.0
        %4907 = vmatpush1.msra.mxu0 %v1691
        %4908 = vmatprep.subr.mxu0 0.0
        %4909 = vmatpush1.msra.mxu0 %v1690
        %4910 = vmatprep.subr.mxu0 0.0
        %4911 = vmatpush1.msra.mxu0 %v1689
        %4912 = vmatprep.subr.mxu0 0.0
        %4913 = vmatpush1.msra.mxu0 %v1688
        %4914 = vmatprep.subr.mxu0 0.0
        %4915 = vmatpush1.msra.mxu0 %v1687
        %4916 = vmatprep.subr.mxu0 0.0
        %4917 = vmatpush1.msra.mxu0 %v1686
        %4918 = vmatprep.subr.mxu0 0.0
        %4919 = vmatpush1.msra.mxu0 %v1685
        %4920 = vmatprep.subr.mxu0 0.0
        %4921 = vmatpush1.msra.mxu0 %v1684
        %4922 = vmatprep.subr.mxu0 0.0
        %4923 = vmatpush1.msra.mxu0 %v1683
        %4924 = vmatprep.subr.mxu0 0.0
        %4925 = vmatpush1.msra.mxu0 %v1682
        %4926 = vmatprep.subr.mxu0 0.0
        %4927 = vmatpush1.msra.mxu0 %v1681
        %4928 = vmatprep.subr.mxu0 0.0
        %4929 = vmatpush1.msra.mxu0 %v1680
        %4930 = vmatprep.subr.mxu0 0.0
        %4931 = vmatpush1.msra.mxu0 %v1679
        %4932 = vmatprep.subr.mxu0 0.0
        %4933 = vmatpush2.msra.mxu0 %v1710
        %4934 = vmatprep.subr.mxu0 0.0
        %4935 = vmatpush2.msra.mxu0 %v1709
        %4936 = vmatprep.subr.mxu0 0.0
        %4937 = vmatpush2.msra.mxu0 %v1708
        %4938 = vmatprep.subr.mxu0 0.0
        %4939 = vmatpush2.msra.mxu0 %v1707
        %4940 = vmatprep.subr.mxu0 0.0
        %4941 = vmatpush2.msra.mxu0 %v1706
        %4942 = vmatprep.subr.mxu0 0.0
        %4943 = vmatpush2.msra.mxu0 %v1705
        %4944 = vmatprep.subr.mxu0 0.0
        %4945 = vmatpush2.msra.mxu0 %v1704
        %4946 = vmatprep.subr.mxu0 0.0
        %4947 = vmatpush2.msra.mxu0 %v1703
        %4948 = vmatprep.subr.mxu0 0.0
        %4949 = vmatpush2.msra.mxu0 %v1702
        %4950 = vmatprep.subr.mxu0 0.0
        %4951 = vmatpush2.msra.mxu0 %v1701
        %4952 = vmatprep.subr.mxu0 0.0
        %4953 = vmatpush2.msra.mxu0 %v1700
        %4954 = vmatprep.subr.mxu0 0.0
        %4955 = vmatpush2.msra.mxu0 %v1699
        %4956 = vmatprep.subr.mxu0 0.0
        %4957 = vmatpush2.msra.mxu0 %v1698
        %4958 = vmatprep.subr.mxu0 0.0
        %4959 = vmatpush2.msra.mxu0 %v1697
        %4960 = vmatprep.subr.mxu0 0.0
        %4961 = vmatpush2.msra.mxu0 %v1696
        %4962 = vmatprep.subr.mxu0 0.0
        %4963 = vmatpush2.msra.mxu0 %v1695
        %4964 = vmatprep.mubr.f32.mxu0 %v236
        %4965 = vmatmul.mubr.f32.gmra.mxu0 %v235
        %v4966 = vpop.f32.mrf.mxu0
        %v4967 = vadd.f32 %v4742, %v4966
        %v4968 = vpop.f32.mrf.mxu0
        %4969 = vmatprep.mubr.f32.mxu0 %v268
        %4970 = vmatmul.mubr.f32.gmra.mxu0 %v267
        %v4971 = vpop.f32.mrf.mxu0
        %v4972 = vadd.f32 %v4747, %v4971
        %v4973 = vpop.f32.mrf.mxu0
        %4974 = vmatprep.mubr.f32.mxu0 %v300
        %4975 = vmatmul.mubr.f32.gmra.mxu0 %v299
        %v4976 = vpop.f32.mrf.mxu0
        %v4977 = vadd.f32 %v4752, %v4976
        %v4978 = vpop.f32.mrf.mxu0
        %4979 = vmatprep.mubr.f32.mxu0 %v332
        %4980 = vmatmul.mubr.f32.gmra.mxu0 %v331
        %v4981 = vpop.f32.mrf.mxu0
        %v4982 = vadd.f32 %v4757, %v4981
        %v4983 = vpop.f32.mrf.mxu0
        %4984 = vmatprep.mubr.f32.mxu0 %v364
        %4985 = vmatmul.mubr.f32.gmra.mxu0 %v363
        %v4986 = vpop.f32.mrf.mxu0
        %v4987 = vadd.f32 %v4762, %v4986
        %v4988 = vpop.f32.mrf.mxu0
        %4989 = vmatprep.mubr.f32.mxu0 %v396
        %4990 = vmatmul.mubr.f32.gmra.mxu0 %v395
        %v4991 = vpop.f32.mrf.mxu0
        %v4992 = vadd.f32 %v4767, %v4991
        %v4993 = vpop.f32.mrf.mxu0
        %4994 = vmatprep.mubr.f32.mxu0 %v428
        %4995 = vmatmul.mubr.f32.gmra.mxu0 %v427
        %v4996 = vpop.f32.mrf.mxu0
        %v4997 = vadd.f32 %v4772, %v4996
        %v4998 = vpop.f32.mrf.mxu0
        %4999 = vmatprep.mubr.f32.mxu0 %v460
        %5000 = vmatmul.mubr.f32.gmra.mxu0 %v459
        %v5001 = vpop.f32.mrf.mxu0
        %v5002 = vadd.f32 %v4777, %v5001
        %v5003 = vpop.f32.mrf.mxu0
        %5004 = vmatprep.mubr.f32.mxu0 %v492
        %5005 = vmatmul.mubr.f32.gmra.mxu0 %v491
        %v5006 = vpop.f32.mrf.mxu0
        %v5007 = vadd.f32 %v4782, %v5006
        %v5008 = vpop.f32.mrf.mxu0
        %5009 = vmatprep.mubr.f32.mxu0 %v524
        %5010 = vmatmul.mubr.f32.gmra.mxu0 %v523
        %v5011 = vpop.f32.mrf.mxu0
        %v5012 = vadd.f32 %v4787, %v5011
        %v5013 = vpop.f32.mrf.mxu0
        %5014 = vmatprep.mubr.f32.mxu0 %v556
        %5015 = vmatmul.mubr.f32.gmra.mxu0 %v555
        %v5016 = vpop.f32.mrf.mxu0
        %v5017 = vadd.f32 %v4792, %v5016
        %v5018 = vpop.f32.mrf.mxu0
        %5019 = vmatprep.mubr.f32.mxu0 %v588
        %5020 = vmatmul.mubr.f32.gmra.mxu0 %v587
        %v5021 = vpop.f32.mrf.mxu0
        %v5022 = vadd.f32 %v4797, %v5021
        %v5023 = vpop.f32.mrf.mxu0
        %5024 = vmatprep.mubr.f32.mxu0 %v620
        %5025 = vmatmul.mubr.f32.gmra.mxu0 %v619
        %v5026 = vpop.f32.mrf.mxu0
        %v5027 = vadd.f32 %v4802, %v5026
        %v5028 = vpop.f32.mrf.mxu0
        %5029 = vmatprep.mubr.f32.mxu0 %v652
        %5030 = vmatmul.mubr.f32.gmra.mxu0 %v651
        %v5031 = vpop.f32.mrf.mxu0
        %v5032 = vadd.f32 %v4807, %v5031
        %v5033 = vpop.f32.mrf.mxu0
        %5034 = vmatprep.mubr.f32.mxu0 %v684
        %5035 = vmatmul.mubr.f32.gmra.mxu0 %v683
        %v5036 = vpop.f32.mrf.mxu0
        %v5037 = vadd.f32 %v4812, %v5036
        %v5038 = vpop.f32.mrf.mxu0
        %5039 = vmatprep.mubr.f32.mxu0 %v716
        %5040 = vmatmul.mubr.f32.gmra.mxu0 %v715
        %v5041 = vpop.f32.mrf.mxu0
        %v5042 = vadd.f32 %v4817, %v5041
        %v5043 = vpop.f32.mrf.mxu0
        %5044 = vmatprep.mubr.f32.mxu0 %v748
        %5045 = vmatmul.mubr.f32.gmra.mxu0 %v747
        %v5046 = vpop.f32.mrf.mxu0
        %v5047 = vadd.f32 %v4822, %v5046
        %v5048 = vpop.f32.mrf.mxu0
        %5049 = vmatprep.mubr.f32.mxu0 %v780
        %5050 = vmatmul.mubr.f32.gmra.mxu0 %v779
        %v5051 = vpop.f32.mrf.mxu0
        %v5052 = vadd.f32 %v4827, %v5051
        %v5053 = vpop.f32.mrf.mxu0
        %5054 = vmatprep.mubr.f32.mxu0 %v812
        %5055 = vmatmul.mubr.f32.gmra.mxu0 %v811
        %v5056 = vpop.f32.mrf.mxu0
        %v5057 = vadd.f32 %v4832, %v5056
        %v5058 = vpop.f32.mrf.mxu0
        %5059 = vmatprep.mubr.f32.mxu0 %v844
        %5060 = vmatmul.mubr.f32.gmra.mxu0 %v843
        %v5061 = vpop.f32.mrf.mxu0
        %v5062 = vadd.f32 %v4837, %v5061
        %v5063 = vpop.f32.mrf.mxu0
        %5064 = vmatprep.mubr.f32.mxu0 %v876
        %5065 = vmatmul.mubr.f32.gmra.mxu0 %v875
        %v5066 = vpop.f32.mrf.mxu0
        %v5067 = vadd.f32 %v4842, %v5066
        %v5068 = vpop.f32.mrf.mxu0
        %5069 = vmatprep.mubr.f32.mxu0 %v908
        %5070 = vmatmul.mubr.f32.gmra.mxu0 %v907
        %v5071 = vpop.f32.mrf.mxu0
        %v5072 = vadd.f32 %v4847, %v5071
        %v5073 = vpop.f32.mrf.mxu0
        %5074 = vmatprep.mubr.f32.mxu0 %v940
        %5075 = vmatmul.mubr.f32.gmra.mxu0 %v939
        %v5076 = vpop.f32.mrf.mxu0
        %v5077 = vadd.f32 %v4852, %v5076
        %v5078 = vpop.f32.mrf.mxu0
        %5079 = vmatprep.mubr.f32.mxu0 %v972
        %5080 = vmatmul.mubr.f32.gmra.mxu0 %v971
        %v5081 = vpop.f32.mrf.mxu0
        %v5082 = vadd.f32 %v4857, %v5081
        %v5083 = vpop.f32.mrf.mxu0
        %5084 = vmatprep.mubr.f32.mxu0 %v1004
        %5085 = vmatmul.mubr.f32.gmra.mxu0 %v1003
        %v5086 = vpop.f32.mrf.mxu0
        %v5087 = vadd.f32 %v4862, %v5086
        %v5088 = vpop.f32.mrf.mxu0
        %5089 = vmatprep.mubr.f32.mxu0 %v1036
        %5090 = vmatmul.mubr.f32.gmra.mxu0 %v1035
        %v5091 = vpop.f32.mrf.mxu0
        %v5092 = vadd.f32 %v4867, %v5091
        %v5093 = vpop.f32.mrf.mxu0
        %5094 = vmatprep.mubr.f32.mxu0 %v1068
        %5095 = vmatmul.mubr.f32.gmra.mxu0 %v1067
        %v5096 = vpop.f32.mrf.mxu0
        %v5097 = vadd.f32 %v4872, %v5096
        %v5098 = vpop.f32.mrf.mxu0
        %5099 = vmatprep.mubr.f32.mxu0 %v1100
        %5100 = vmatmul.mubr.f32.gmra.mxu0 %v1099
        %v5101 = vpop.f32.mrf.mxu0
        %v5102 = vadd.f32 %v4877, %v5101
        %v5103 = vpop.f32.mrf.mxu0
        %5104 = vmatprep.mubr.f32.mxu0 %v1132
        %5105 = vmatmul.mubr.f32.gmra.mxu0 %v1131
        %v5106 = vpop.f32.mrf.mxu0
        %v5107 = vadd.f32 %v4882, %v5106
        %v5108 = vpop.f32.mrf.mxu0
        %5109 = vmatprep.mubr.f32.mxu0 %v1164
        %5110 = vmatmul.mubr.f32.gmra.mxu0 %v1163
        %v5111 = vpop.f32.mrf.mxu0
        %v5112 = vadd.f32 %v4887, %v5111
        %v5113 = vpop.f32.mrf.mxu0
        %5114 = vmatprep.mubr.f32.mxu0 %v1196
        %5115 = vmatmul.mubr.f32.gmra.mxu0 %v1195
        %v5116 = vpop.f32.mrf.mxu0
        %v5117 = vadd.f32 %v4892, %v5116
        %v5118 = vpop.f32.mrf.mxu0
        %5119 = vmatprep.mubr.f32.mxu0 %v1228
        %5120 = vmatmul.mubr.f32.gmra.mxu0 %v1227
        %v5121 = vpop.f32.mrf.mxu0
        %v5122 = vadd.f32 %v4897, %v5121
        %v5123 = vpop.f32.mrf.mxu0
        %5124 = vdwg.mxu0
        %5125 = vmatprep.subr.mxu0 0.0
        %5126 = vmatpush1.msra.mxu0 %v1726
        %5127 = vmatprep.subr.mxu0 0.0
        %5128 = vmatpush1.msra.mxu0 %v1725
        %5129 = vmatprep.subr.mxu0 0.0
        %5130 = vmatpush1.msra.mxu0 %v1724
        %5131 = vmatprep.subr.mxu0 0.0
        %5132 = vmatpush1.msra.mxu0 %v1723
        %5133 = vmatprep.subr.mxu0 0.0
        %5134 = vmatpush1.msra.mxu0 %v1722
        %5135 = vmatprep.subr.mxu0 0.0
        %5136 = vmatpush1.msra.mxu0 %v1721
        %5137 = vmatprep.subr.mxu0 0.0
        %5138 = vmatpush1.msra.mxu0 %v1720
        %5139 = vmatprep.subr.mxu0 0.0
        %5140 = vmatpush1.msra.mxu0 %v1719
        %5141 = vmatprep.subr.mxu0 0.0
        %5142 = vmatpush1.msra.mxu0 %v1718
        %5143 = vmatprep.subr.mxu0 0.0
        %5144 = vmatpush1.msra.mxu0 %v1717
        %5145 = vmatprep.subr.mxu0 0.0
        %5146 = vmatpush1.msra.mxu0 %v1716
        %5147 = vmatprep.subr.mxu0 0.0
        %5148 = vmatpush1.msra.mxu0 %v1715
        %5149 = vmatprep.subr.mxu0 0.0
        %5150 = vmatpush1.msra.mxu0 %v1714
        %5151 = vmatprep.subr.mxu0 0.0
        %5152 = vmatpush1.msra.mxu0 %v1713
        %5153 = vmatprep.subr.mxu0 0.0
        %5154 = vmatpush1.msra.mxu0 %v1712
        %5155 = vmatprep.subr.mxu0 0.0
        %5156 = vmatpush1.msra.mxu0 %v1711
        %5157 = vmatprep.subr.mxu0 0.0
        %5158 = vmatpush2.msra.mxu0 %v1742
        %5159 = vmatprep.subr.mxu0 0.0
        %5160 = vmatpush2.msra.mxu0 %v1741
        %5161 = vmatprep.subr.mxu0 0.0
        %5162 = vmatpush2.msra.mxu0 %v1740
        %5163 = vmatprep.subr.mxu0 0.0
        %5164 = vmatpush2.msra.mxu0 %v1739
        %5165 = vmatprep.subr.mxu0 0.0
        %5166 = vmatpush2.msra.mxu0 %v1738
        %5167 = vmatprep.subr.mxu0 0.0
        %5168 = vmatpush2.msra.mxu0 %v1737
        %5169 = vmatprep.subr.mxu0 0.0
        %5170 = vmatpush2.msra.mxu0 %v1736
        %5171 = vmatprep.subr.mxu0 0.0
        %5172 = vmatpush2.msra.mxu0 %v1735
        %5173 = vmatprep.subr.mxu0 0.0
        %5174 = vmatpush2.msra.mxu0 %v1734
        %5175 = vmatprep.subr.mxu0 0.0
        %5176 = vmatpush2.msra.mxu0 %v1733
        %5177 = vmatprep.subr.mxu0 0.0
        %5178 = vmatpush2.msra.mxu0 %v1732
        %5179 = vmatprep.subr.mxu0 0.0
        %5180 = vmatpush2.msra.mxu0 %v1731
        %5181 = vmatprep.subr.mxu0 0.0
        %5182 = vmatpush2.msra.mxu0 %v1730
        %5183 = vmatprep.subr.mxu0 0.0
        %5184 = vmatpush2.msra.mxu0 %v1729
        %5185 = vmatprep.subr.mxu0 0.0
        %5186 = vmatpush2.msra.mxu0 %v1728
        %5187 = vmatprep.subr.mxu0 0.0
        %5188 = vmatpush2.msra.mxu0 %v1727
        %5189 = vmatprep.mubr.f32.mxu0 %v238
        %5190 = vmatmul.mubr.f32.gmra.mxu0 %v237
        %v5191 = vpop.f32.mrf.mxu0
        %v5192 = vadd.f32 %v4967, %v5191
        %v5193 = vpop.f32.mrf.mxu0
        %5194 = vmatprep.mubr.f32.mxu0 %v270
        %5195 = vmatmul.mubr.f32.gmra.mxu0 %v269
        %v5196 = vpop.f32.mrf.mxu0
        %v5197 = vadd.f32 %v4972, %v5196
        %v5198 = vpop.f32.mrf.mxu0
        %5199 = vmatprep.mubr.f32.mxu0 %v302
        %5200 = vmatmul.mubr.f32.gmra.mxu0 %v301
        %v5201 = vpop.f32.mrf.mxu0
        %v5202 = vadd.f32 %v4977, %v5201
        %v5203 = vpop.f32.mrf.mxu0
        %5204 = vmatprep.mubr.f32.mxu0 %v334
        %5205 = vmatmul.mubr.f32.gmra.mxu0 %v333
        %v5206 = vpop.f32.mrf.mxu0
        %v5207 = vadd.f32 %v4982, %v5206
        %v5208 = vpop.f32.mrf.mxu0
        %5209 = vmatprep.mubr.f32.mxu0 %v366
        %5210 = vmatmul.mubr.f32.gmra.mxu0 %v365
        %v5211 = vpop.f32.mrf.mxu0
        %v5212 = vadd.f32 %v4987, %v5211
        %v5213 = vpop.f32.mrf.mxu0
        %5214 = vmatprep.mubr.f32.mxu0 %v398
        %5215 = vmatmul.mubr.f32.gmra.mxu0 %v397
        %v5216 = vpop.f32.mrf.mxu0
        %v5217 = vadd.f32 %v4992, %v5216
        %v5218 = vpop.f32.mrf.mxu0
        %5219 = vmatprep.mubr.f32.mxu0 %v430
        %5220 = vmatmul.mubr.f32.gmra.mxu0 %v429
        %v5221 = vpop.f32.mrf.mxu0
        %v5222 = vadd.f32 %v4997, %v5221
        %v5223 = vpop.f32.mrf.mxu0
        %5224 = vmatprep.mubr.f32.mxu0 %v462
        %5225 = vmatmul.mubr.f32.gmra.mxu0 %v461
        %v5226 = vpop.f32.mrf.mxu0
        %v5227 = vadd.f32 %v5002, %v5226
        %v5228 = vpop.f32.mrf.mxu0
        %5229 = vmatprep.mubr.f32.mxu0 %v494
        %5230 = vmatmul.mubr.f32.gmra.mxu0 %v493
        %v5231 = vpop.f32.mrf.mxu0
        %v5232 = vadd.f32 %v5007, %v5231
        %v5233 = vpop.f32.mrf.mxu0
        %5234 = vmatprep.mubr.f32.mxu0 %v526
        %5235 = vmatmul.mubr.f32.gmra.mxu0 %v525
        %v5236 = vpop.f32.mrf.mxu0
        %v5237 = vadd.f32 %v5012, %v5236
        %v5238 = vpop.f32.mrf.mxu0
        %5239 = vmatprep.mubr.f32.mxu0 %v558
        %5240 = vmatmul.mubr.f32.gmra.mxu0 %v557
        %v5241 = vpop.f32.mrf.mxu0
        %v5242 = vadd.f32 %v5017, %v5241
        %v5243 = vpop.f32.mrf.mxu0
        %5244 = vmatprep.mubr.f32.mxu0 %v590
        %5245 = vmatmul.mubr.f32.gmra.mxu0 %v589
        %v5246 = vpop.f32.mrf.mxu0
        %v5247 = vadd.f32 %v5022, %v5246
        %v5248 = vpop.f32.mrf.mxu0
        %5249 = vmatprep.mubr.f32.mxu0 %v622
        %5250 = vmatmul.mubr.f32.gmra.mxu0 %v621
        %v5251 = vpop.f32.mrf.mxu0
        %v5252 = vadd.f32 %v5027, %v5251
        %v5253 = vpop.f32.mrf.mxu0
        %5254 = vmatprep.mubr.f32.mxu0 %v654
        %5255 = vmatmul.mubr.f32.gmra.mxu0 %v653
        %v5256 = vpop.f32.mrf.mxu0
        %v5257 = vadd.f32 %v5032, %v5256
        %v5258 = vpop.f32.mrf.mxu0
        %5259 = vmatprep.mubr.f32.mxu0 %v686
        %5260 = vmatmul.mubr.f32.gmra.mxu0 %v685
        %v5261 = vpop.f32.mrf.mxu0
        %v5262 = vadd.f32 %v5037, %v5261
        %v5263 = vpop.f32.mrf.mxu0
        %5264 = vmatprep.mubr.f32.mxu0 %v718
        %5265 = vmatmul.mubr.f32.gmra.mxu0 %v717
        %v5266 = vpop.f32.mrf.mxu0
        %v5267 = vadd.f32 %v5042, %v5266
        %v5268 = vpop.f32.mrf.mxu0
        %5269 = vmatprep.mubr.f32.mxu0 %v750
        %5270 = vmatmul.mubr.f32.gmra.mxu0 %v749
        %v5271 = vpop.f32.mrf.mxu0
        %v5272 = vadd.f32 %v5047, %v5271
        %v5273 = vpop.f32.mrf.mxu0
        %5274 = vmatprep.mubr.f32.mxu0 %v782
        %5275 = vmatmul.mubr.f32.gmra.mxu0 %v781
        %v5276 = vpop.f32.mrf.mxu0
        %v5277 = vadd.f32 %v5052, %v5276
        %v5278 = vpop.f32.mrf.mxu0
        %5279 = vmatprep.mubr.f32.mxu0 %v814
        %5280 = vmatmul.mubr.f32.gmra.mxu0 %v813
        %v5281 = vpop.f32.mrf.mxu0
        %v5282 = vadd.f32 %v5057, %v5281
        %v5283 = vpop.f32.mrf.mxu0
        %5284 = vmatprep.mubr.f32.mxu0 %v846
        %5285 = vmatmul.mubr.f32.gmra.mxu0 %v845
        %v5286 = vpop.f32.mrf.mxu0
        %v5287 = vadd.f32 %v5062, %v5286
        %v5288 = vpop.f32.mrf.mxu0
        %5289 = vmatprep.mubr.f32.mxu0 %v878
        %5290 = vmatmul.mubr.f32.gmra.mxu0 %v877
        %v5291 = vpop.f32.mrf.mxu0
        %v5292 = vadd.f32 %v5067, %v5291
        %v5293 = vpop.f32.mrf.mxu0
        %5294 = vmatprep.mubr.f32.mxu0 %v910
        %5295 = vmatmul.mubr.f32.gmra.mxu0 %v909
        %v5296 = vpop.f32.mrf.mxu0
        %v5297 = vadd.f32 %v5072, %v5296
        %v5298 = vpop.f32.mrf.mxu0
        %5299 = vmatprep.mubr.f32.mxu0 %v942
        %5300 = vmatmul.mubr.f32.gmra.mxu0 %v941
        %v5301 = vpop.f32.mrf.mxu0
        %v5302 = vadd.f32 %v5077, %v5301
        %v5303 = vpop.f32.mrf.mxu0
        %5304 = vmatprep.mubr.f32.mxu0 %v974
        %5305 = vmatmul.mubr.f32.gmra.mxu0 %v973
        %v5306 = vpop.f32.mrf.mxu0
        %v5307 = vadd.f32 %v5082, %v5306
        %v5308 = vpop.f32.mrf.mxu0
        %5309 = vmatprep.mubr.f32.mxu0 %v1006
        %5310 = vmatmul.mubr.f32.gmra.mxu0 %v1005
        %v5311 = vpop.f32.mrf.mxu0
        %v5312 = vadd.f32 %v5087, %v5311
        %v5313 = vpop.f32.mrf.mxu0
        %5314 = vmatprep.mubr.f32.mxu0 %v1038
        %5315 = vmatmul.mubr.f32.gmra.mxu0 %v1037
        %v5316 = vpop.f32.mrf.mxu0
        %v5317 = vadd.f32 %v5092, %v5316
        %v5318 = vpop.f32.mrf.mxu0
        %5319 = vmatprep.mubr.f32.mxu0 %v1070
        %5320 = vmatmul.mubr.f32.gmra.mxu0 %v1069
        %v5321 = vpop.f32.mrf.mxu0
        %v5322 = vadd.f32 %v5097, %v5321
        %v5323 = vpop.f32.mrf.mxu0
        %5324 = vmatprep.mubr.f32.mxu0 %v1102
        %5325 = vmatmul.mubr.f32.gmra.mxu0 %v1101
        %v5326 = vpop.f32.mrf.mxu0
        %v5327 = vadd.f32 %v5102, %v5326
        %v5328 = vpop.f32.mrf.mxu0
        %5329 = vmatprep.mubr.f32.mxu0 %v1134
        %5330 = vmatmul.mubr.f32.gmra.mxu0 %v1133
        %v5331 = vpop.f32.mrf.mxu0
        %v5332 = vadd.f32 %v5107, %v5331
        %v5333 = vpop.f32.mrf.mxu0
        %5334 = vmatprep.mubr.f32.mxu0 %v1166
        %5335 = vmatmul.mubr.f32.gmra.mxu0 %v1165
        %v5336 = vpop.f32.mrf.mxu0
        %v5337 = vadd.f32 %v5112, %v5336
        %v5338 = vpop.f32.mrf.mxu0
        %5339 = vmatprep.mubr.f32.mxu0 %v1198
        %5340 = vmatmul.mubr.f32.gmra.mxu0 %v1197
        %v5341 = vpop.f32.mrf.mxu0
        %v5342 = vadd.f32 %v5117, %v5341
        %v5343 = vpop.f32.mrf.mxu0
        %5344 = vmatprep.mubr.f32.mxu0 %v1230
        %5345 = vmatmul.mubr.f32.gmra.mxu0 %v1229
        %v5346 = vpop.f32.mrf.mxu0
        %v5347 = vadd.f32 %v5122, %v5346
        %v5348 = vpop.f32.mrf.mxu0
        %5349 = vdwg.mxu0
        %v5350 = vmax.f32 %v5192, 0.0
        %v5351 = vmax.f32 %v5197, 0.0
        %v5352 = vmax.f32 %v5202, 0.0
        %v5353 = vmax.f32 %v5207, 0.0
        %v5354 = vmax.f32 %v5212, 0.0
        %v5355 = vmax.f32 %v5217, 0.0
        %v5356 = vmax.f32 %v5222, 0.0
        %v5357 = vmax.f32 %v5227, 0.0
        %v5358 = vmax.f32 %v5232, 0.0
        %v5359 = vmax.f32 %v5237, 0.0
        %v5360 = vmax.f32 %v5242, 0.0
        %v5361 = vmax.f32 %v5247, 0.0
        %v5362 = vmax.f32 %v5252, 0.0
        %v5363 = vmax.f32 %v5257, 0.0
        %v5364 = vmax.f32 %v5262, 0.0
        %v5365 = vmax.f32 %v5267, 0.0
        %v5366 = vmax.f32 %v5272, 0.0
        %v5367 = vmax.f32 %v5277, 0.0
        %v5368 = vmax.f32 %v5282, 0.0
        %v5369 = vmax.f32 %v5287, 0.0
        %v5370 = vmax.f32 %v5292, 0.0
        %v5371 = vmax.f32 %v5297, 0.0
        %v5372 = vmax.f32 %v5302, 0.0
        %v5373 = vmax.f32 %v5307, 0.0
        %v5374 = vmax.f32 %v5312, 0.0
        %v5375 = vmax.f32 %v5317, 0.0
        %v5376 = vmax.f32 %v5322, 0.0
        %v5377 = vmax.f32 %v5327, 0.0
        %v5378 = vmax.f32 %v5332, 0.0
        %v5379 = vmax.f32 %v5337, 0.0
        %v5380 = vmax.f32 %v5342, 0.0
        %v5381 = vmax.f32 %v5347, 0.0
        %vm5382 = vcmask 523264
        %5383 = vst.msk [vmem:[%s205] sm:$0xff] %vm5382, %v5350
        %5384 = vst.msk [vmem:[%s205 + $0x8] sm:$0xff] %vm5382, %v5351
        %5385 = vst.msk [vmem:[%s205 + $0x10] sm:$0xff] %vm5382, %v5352
        %5386 = vst.msk [vmem:[%s205 + $0x18] sm:$0xff] %vm5382, %v5353
        %5387 = vst.msk [vmem:[%s205 + $0x20] sm:$0xff] %vm5382, %v5354
        %5388 = vst.msk [vmem:[%s205 + $0x28] sm:$0xff] %vm5382, %v5355
        %5389 = vst.msk [vmem:[%s205 + $0x30] sm:$0xff] %vm5382, %v5356
        %5390 = vst.msk [vmem:[%s205 + $0x38] sm:$0xff] %vm5382, %v5357
        %5391 = vst.msk [vmem:[%s205 + $0x40] sm:$0xff] %vm5382, %v5358
        %5392 = vst.msk [vmem:[%s205 + $0x48] sm:$0xff] %vm5382, %v5359
        %5393 = vst.msk [vmem:[%s205 + $0x50] sm:$0xff] %vm5382, %v5360
        %5394 = vst.msk [vmem:[%s205 + $0x58] sm:$0xff] %vm5382, %v5361
        %5395 = vst.msk [vmem:[%s205 + $0x60] sm:$0xff] %vm5382, %v5362
        %5396 = vst.msk [vmem:[%s205 + $0x68] sm:$0xff] %vm5382, %v5363
        %5397 = vst.msk [vmem:[%s205 + $0x70] sm:$0xff] %vm5382, %v5364
        %5398 = vst.msk [vmem:[%s205 + $0x78] sm:$0xff] %vm5382, %v5365
        %5399 = vst.msk [vmem:[%s205 + $0x80] sm:$0xff] %vm5382, %v5366
        %5400 = vst.msk [vmem:[%s205 + $0x88] sm:$0xff] %vm5382, %v5367
        %5401 = vst.msk [vmem:[%s205 + $0x90] sm:$0xff] %vm5382, %v5368
        %5402 = vst.msk [vmem:[%s205 + $0x98] sm:$0xff] %vm5382, %v5369
        %5403 = vst.msk [vmem:[%s205 + $0xa0] sm:$0xff] %vm5382, %v5370
        %5404 = vst.msk [vmem:[%s205 + $0xa8] sm:$0xff] %vm5382, %v5371
        %5405 = vst.msk [vmem:[%s205 + $0xb0] sm:$0xff] %vm5382, %v5372
        %5406 = vst.msk [vmem:[%s205 + $0xb8] sm:$0xff] %vm5382, %v5373
        %5407 = vst.msk [vmem:[%s205 + $0xc0] sm:$0xff] %vm5382, %v5374
        %5408 = vst.msk [vmem:[%s205 + $0xc8] sm:$0xff] %vm5382, %v5375
        %5409 = vst.msk [vmem:[%s205 + $0xd0] sm:$0xff] %vm5382, %v5376
        %5410 = vst.msk [vmem:[%s205 + $0xd8] sm:$0xff] %vm5382, %v5377
        %5411 = vst.msk [vmem:[%s205 + $0xe0] sm:$0xff] %vm5382, %v5378
        %5412 = vst.msk [vmem:[%s205 + $0xe8] sm:$0xff] %vm5382, %v5379
        %5413 = vst.msk [vmem:[%s205 + $0xf0] sm:$0xff] %vm5382, %v5380
        %5414 = vst.msk [vmem:[%s205 + $0xf8] sm:$0xff] %vm5382, %v5381
        %s5415 = smul.u32 32, %s18
        %p5416 = scmp.lt.s32.totalorder %s5415, 63
        %s5417 = scalar_select %p5416, %s5415, 63
        %s5418 = smul.addr %s5417, 8
        %s5419 = scalar_lea.vmem %s3, %s5418
        // Predicated region
        $region41: #{tpu_custom_call.1} parent=31 // pred_check
          %p5420 = pneg %p104
        $region42: #{tpu_custom_call.1} parent=31 // pred_check_branch
          %5422 = sbr.rel (%p5420) target = $region44
        $region43: #{tpu_custom_call.1} parent=31 // pred_region
          %s5423 = smul.u32 32, %s18
        $region44: #{tpu_custom_call.1} parent=31 // pred_fallthru
          _
      $region32: #{tpu_custom_call.1} parent=5 // pred_fallthru
        _
      %p5424 = scmp.le.s32.totalorder 2, %s13
      // Predicated region
      $region45: #{tpu_custom_call.1} parent=5 // pred_check
        %p5425 = pneg %p5424
      $region46: #{tpu_custom_call.1} parent=5 // pred_check_branch
        %5427 = sbr.rel (%p5425) target = $region48
      $region47: #{tpu_custom_call.1} parent=5 // pred_region
        %s5428 = ssub.s32 %s13, 2
        // Predicated region
        $region49: #{tpu_custom_call.1} parent=47 // pred_check
          %p5429 = pneg %p110
        $region50: #{tpu_custom_call.1} parent=47 // pred_check_branch
          %5431 = sbr.rel (%p5429) target = $region52
        $region51: #{tpu_custom_call.1} parent=47 // pred_region
          %s5432 = smul.u32 32, %s19
          %p5433 = scmp.lt.s32.totalorder %s5432, 63
          %s5434 = scalar_select %p5433, %s5432, 63
          %s5435 = smul.addr %s5434, 8
          %s5436 = scalar_lea.vmem %s3, %s5435
        $region52: #{tpu_custom_call.1} parent=47 // pred_fallthru
          _
      $region48: #{tpu_custom_call.1} parent=5 // pred_fallthru
        _
    $region6: #{tpu_custom_call.1} parent=1 // loop_footer
      %s17 = sadd.s32 1, %s13
    $region7: #{tpu_custom_call.1} parent=1 // loop_footer_branch
      %12 = sbr.rel target = $region3
    $region8: #{tpu_custom_call.1} parent=1 // loop_exit
      _
    %5437 = vsyncpa [#allocation3], 1
    %s5438 = scalar_lea.sflag [#allocation3], 1
    %5439 = vsyncpa %s5438, 1
    %5440 = vsyncpa [#allocation5], 1

</llo_original>
